<compile_context>
chip_gen: v7x
topology: tpu7x:2x2x1
jax: 0.10.0
libtpu: 0.0.40
codegen_flags: <defaults>
</compile_context>

<pallas_src>
import functools
import math

import jax
import jax.numpy as jnp
from jax import lax
from jax.experimental import pallas as pl
from jax.experimental.pallas import tpu as pltpu


def _encoder_kernel(x_ref,
                    wih0_ref, whh0_ref, bih0_ref, bhh0_ref,
                    wih1_ref, whh1_ref, bih1_ref, bhh1_ref,
                    wqkv_ref, bqkv_ref, wo_ref, bo_ref,
                    gamma_ref, beta_ref,
                    out_ref,
                    gi0_ref, gi1_ref, h0s_ref, h1s_ref,
                    *, num_heads):
    Bb, T, D = x_ref.shape          # batch block, time, input dim
    H = out_ref.shape[-1]
    d = H // num_heads
    scale = 1.0 / math.sqrt(d)
    f32 = jnp.float32
    cdt = wih0_ref.dtype            # matmul compute dtype (bf16 or f32)

    # ---- hoisted layer-0 input projection: one (T*Bb, D) x (D, 3H) matmul -------------------
    # cast the x block here (per-block, hidden by the pipeline) and lay the result out t-major
    # so the recurrences index the (untiled) leading axis with a dynamic fori_loop counter.
    xT = jnp.transpose(x_ref[...].astype(cdt), (1, 0, 2)).reshape(T * Bb, D)
    gi0 = jnp.dot(xT, wih0_ref[...], preferred_element_type=f32) + bih0_ref[...]
    gi0_ref[...] = gi0.astype(gi0_ref.dtype).reshape(T, Bb, 3 * H)

    def gru_update(gi, gh, h_prev):                               # gate order r | z | n (f32)
        r = jax.nn.sigmoid(gi[:, :H] + gh[:, :H])
        z = jax.nn.sigmoid(gi[:, H:2 * H] + gh[:, H:2 * H])
        n = jnp.tanh(gi[:, 2 * H:] + r * gh[:, 2 * H:])
        return (1.0 - z) * n + z * h_prev

    # ---- layer-0 recurrence: 1 serial hidden-path matmul per step, live ranges bounded ------
    def l0_body(t, h0):
        gh0 = (jnp.dot(h0.astype(cdt), whh0_ref[...], preferred_element_type=f32)
               + bhh0_ref[...])
        h0 = gru_update(gi0_ref[t].astype(f32), gh0, h0)
        h0s_ref[t] = h0.astype(h0s_ref.dtype)
        return h0
    lax.fori_loop(0, T, l0_body, jnp.zeros((Bb, H), f32))

    # ---- hoisted layer-1 input projection: one (T*Bb, H) x (H, 3H) matmul -------------------
    h0_2d = h0s_ref[...].reshape(T * Bb, H)
    gi1 = jnp.dot(h0_2d, wih1_ref[...], preferred_element_type=f32) + bih1_ref[...]
    gi1_ref[...] = gi1.astype(gi1_ref.dtype).reshape(T, Bb, 3 * H)

    # ---- layer-1 recurrence ------------------------------------------------------------------
    def l1_body(t, h1):
        gh1 = (jnp.dot(h1.astype(cdt), whh1_ref[...], preferred_element_type=f32)
               + bhh1_ref[...])
        h1 = gru_update(gi1_ref[t].astype(f32), gh1, h1)
        h1s_ref[t] = h1.astype(h1s_ref.dtype)
        return h1
    lax.fori_loop(0, T, l1_body, jnp.zeros((Bb, H), f32))

    # ---- multi-head self-attention over time, pooled before the value/out projections -------
    # single lane-preserving transpose (T,Bb,H) -> (Bb,T,H), then one fused QKV matmul.
    seq_b = jnp.transpose(h1s_ref[...], (1, 0, 2))                # (Bb, T, H), cdt
    seq2d = seq_b.reshape(Bb * T, H)
    qkv = jnp.dot(seq2d, wqkv_ref[...], preferred_element_type=f32) + bqkv_ref[...]
    qkv = qkv.reshape(Bb, T, 3 * H).astype(cdt)
    q, k, v = qkv[:, :, :H], qkv[:, :, H:2 * H], qkv[:, :, 2 * H:]

    head_ctx = []
    for head in range(num_heads):                                 # static, tiny loop (NH=4)
        lo = head * d
        qh = q[:, :, lo:lo + d]                                   # (Bb, T, d)
        kh = k[:, :, lo:lo + d]
        vh = v[:, :, lo:lo + d]
        s = jnp.einsum("btd,bsd->bts", qh, kh, preferred_element_type=f32) * scale
        s = s - jnp.max(s, axis=-1, keepdims=True)
        p = jnp.exp(s)
        p = p * pl.reciprocal(jnp.sum(p, axis=-1, keepdims=True), approx=True)
        # mean over query positions commutes with the value matmul (linearity)
        p_mean = jnp.mean(p, axis=1, keepdims=True)               # (Bb, 1, T)
        ctx = jnp.einsum("bqs,bsd->bqd", p_mean.astype(cdt), vh,
                         preferred_element_type=f32)              # (Bb, 1, d)
        head_ctx.append(ctx[:, 0, :])                             # (Bb, d)
    pooled_ctx = jnp.concatenate(head_ctx, axis=-1)               # (Bb, H), lane-dense

    # ---- out-projection (after pooling, exact by linearity), then LayerNorm ------------------
    pooled = jnp.dot(pooled_ctx.astype(cdt), wo_ref[...],
                     preferred_element_type=f32) + bo_ref[...]    # (Bb, H)
    mu = jnp.mean(pooled, axis=-1, keepdims=True)
    var = jnp.mean((pooled - mu) ** 2, axis=-1, keepdims=True)
    normed = (pooled - mu) * lax.rsqrt(var + 1e-5)
    out_ref[...] = (normed * gamma_ref[...] + beta_ref[...]).astype(out_ref.dtype)


def _pick_block_b(B, max_bb=128):
    """Largest multiple-of-8 batch block <= max_bb dividing B, preferring grid >= 2 (v7x)."""
    cands = [bb for bb in range(8, min(B, max_bb) + 1, 8) if B % bb == 0]
    if not cands:
        return B                      # tiny batch: single full-batch block
    ge2 = [bb for bb in cands if B // bb >= 2]
    return max(ge2) if ge2 else max(cands)


def temporal_state_encoder(x, params, num_heads, *, block_b=None,
                           compute_dtype=jnp.bfloat16):
    """x: (B, T, D) batch_first, matching the PyTorch module.  Returns (B, H)."""
    B, T, D = x.shape
    H = params["wo"].shape[0]
    assert H % num_heads == 0

    if block_b is None:
        block_b = _pick_block_b(B)
    assert B % block_b == 0
    assert block_b % 8 == 0 or block_b == B
    grid = (B // block_b,)

    matmul_w = {"wih0", "whh0", "wih1", "whh1", "wqkv", "wo"}
    order = ["wih0", "whh0", "bih0", "bhh0", "wih1", "whh1", "bih1", "bhh1",
             "wqkv", "bqkv", "wo", "bo", "gamma", "beta"]
    # x is NOT cast here: per-block cast inside the kernel avoids a separate full-HBM XLA pass.
    inputs = [x]
    inputs += [params[k].astype(compute_dtype if k in matmul_w else jnp.float32)
               for k in order]

    def full_spec(a):
        return pl.BlockSpec(a.shape, lambda i, _n=a.ndim: (0,) * _n)

    in_specs = [pl.BlockSpec((block_b, T, D), lambda i: (i, 0, 0))]
    in_specs += [full_spec(a) for a in inputs[1:]]

    kernel = functools.partial(_encoder_kernel, num_heads=num_heads)
    return pl.pallas_call(
        kernel,
        out_shape=jax.ShapeDtypeStruct((B, H), jnp.float32),
        grid_spec=pltpu.PrefetchScalarGridSpec(
            num_scalar_prefetch=0,
            grid=grid,
            in_specs=in_specs,
            out_specs=pl.BlockSpec((block_b, H), lambda i: (i, 0)),
            scratch_shapes=[
                pltpu.VMEM((T, block_b, 3 * H), compute_dtype),   # gi0: hoisted layer-0 gates
                pltpu.VMEM((T, block_b, 3 * H), compute_dtype),   # gi1: hoisted layer-1 gates
                pltpu.VMEM((T, block_b, H), compute_dtype),       # layer-0 hidden sequence
                pltpu.VMEM((T, block_b, H), compute_dtype),       # layer-1 hidden sequence
            ],
        ),
        compiler_params=pltpu.CompilerParams(
            dimension_semantics=("parallel",),                    # megacore / v7x 2-TC sharding
            vmem_limit_bytes=32 * 1024 * 1024,                    # safe on v7x's 64 MiB VMEM
        ),
    )(*inputs)


def init_params(key, input_dim, hidden_dim):
    H = hidden_dim
    ks = jax.random.split(key, 12)
    s = 1.0 / math.sqrt(H)

    def u(k, shape):
        return jax.random.uniform(k, shape, jnp.float32, -s, s)

    return dict(
        wih0=u(ks[0], (input_dim, 3 * H)),   # fused GRU l0 input weights, gate order r|z|n
        whh0=u(ks[1], (H, 3 * H)),
        bih0=u(ks[2], (1, 3 * H)),
        bhh0=u(ks[3], (1, 3 * H)),
        wih1=u(ks[4], (H, 3 * H)),
        whh1=u(ks[5], (H, 3 * H)),
        bih1=u(ks[6], (1, 3 * H)),
        bhh1=u(ks[7], (1, 3 * H)),
        wqkv=u(ks[8], (H, 3 * H)),           # fused MHA in_proj, q|k|v
        bqkv=u(ks[9], (1, 3 * H)),
        wo=u(ks[10], (H, H)),                # MHA out_proj (transposed for x @ W)
        bo=u(ks[11], (1, H)),
        gamma=jnp.ones((1, H), jnp.float32),
        beta=jnp.zeros((1, H), jnp.float32),
    )


def ref_forward(x, params, num_heads):
    """Pure-JAX f32 reference mirroring the PyTorch forward (eval mode)."""
    B, T, _ = x.shape
    H = params["wo"].shape[0]
    d = H // num_heads

    def split3(a):
        return a[..., :H], a[..., H:2 * H], a[..., 2 * H:]

    def cell(x_t, h, wih, whh, bih, bhh):
        gi_r, gi_z, gi_n = split3(x_t @ wih + bih)
        gh_r, gh_z, gh_n = split3(h @ whh + bhh)
        r = jax.nn.sigmoid(gi_r + gh_r)
        z = jax.nn.sigmoid(gi_z + gh_z)
        n = jnp.tanh(gi_n + r * gh_n)
        return (1.0 - z) * n + z * h

    h0 = jnp.zeros((B, H), jnp.float32)
    h1 = jnp.zeros((B, H), jnp.float32)
    outs = []
    for t in range(T):
        h0 = cell(x[:, t], h0, params["wih0"], params["whh0"], params["bih0"], params["bhh0"])
        h1 = cell(h0, h1, params["wih1"], params["whh1"], params["bih1"], params["bhh1"])
        outs.append(h1)
    seq = jnp.stack(outs, axis=0)                                   # (T, B, H) == permute(1,0,2)

    q, k, v = split3(seq @ params["wqkv"] + params["bqkv"])
    q = q.reshape(T, B, num_heads, d)
    k = k.reshape(T, B, num_heads, d)
    v = v.reshape(T, B, num_heads, d)
    scores = jnp.einsum("tbhd,sbhd->bhts", q, k) / math.sqrt(d)
    attn = jax.nn.softmax(scores, axis=-1)
    ctx = jnp.einsum("bhts,sbhd->tbhd", attn, v).reshape(T, B, H)
    attn_out = ctx @ params["wo"] + params["bo"]                    # (T, B, H)
    pooled = attn_out.mean(axis=0)                                  # (B, H)
    mu = pooled.mean(-1, keepdims=True)
    var = ((pooled - mu) ** 2).mean(-1, keepdims=True)
    return (pooled - mu) / jnp.sqrt(var + 1e-5) * params["gamma"] + params["beta"]


if __name__ == "__main__":
    # Small shapes consistent with the module (defaults: input_dim=200, hidden_dim=128, 4 heads)
    B, T, D, H, NH = 2, 8, 200, 128, 4
    key = jax.random.PRNGKey(0)
    kx, kp = jax.random.split(key)
    x = jax.random.normal(kx, (B, T, D), jnp.float32)
    params = init_params(kp, D, H)

    ref = ref_forward(x, params, NH)

    # f32 matmul path: tight structural-correctness check (full-batch block, grid=1)
    out_f32 = jax.block_until_ready(
        temporal_state_encoder(x, params, num_heads=NH, compute_dtype=jnp.float32))
    assert out_f32.shape == (B, H)
    err_f32 = float(jnp.max(jnp.abs(out_f32 - ref)))
    print("max abs error (f32 matmuls):", err_f32)
    assert err_f32 < 2e-2, f"f32 path max abs error {err_f32}"

    # bf16-matmul / f32-accumulation path (v6e/v7x default): loose mixed-precision sanity bound
    out_bf16 = jax.block_until_ready(
        temporal_state_encoder(x, params, num_heads=NH))            # compute_dtype=bf16 default
    assert out_bf16.shape == (B, H)
    err_bf16 = float(jnp.max(jnp.abs(out_bf16 - ref)))
    print("max abs error (bf16 matmuls):", err_bf16)
    assert err_bf16 < 0.25, f"bf16 path max abs error {err_bf16}"

    # larger batch: exercises the blocked path (block_b=8, grid=2, "parallel" batch axis)
    B2 = 16
    x2 = jax.random.normal(jax.random.PRNGKey(1), (B2, T, D), jnp.float32)
    ref2 = ref_forward(x2, params, NH)
    out2 = jax.block_until_ready(temporal_state_encoder(x2, params, num_heads=NH))
    assert out2.shape == (B2, H)
    err2 = float(jnp.max(jnp.abs(out2 - ref2)))
    print("max abs error (B=16, bf16, grid=2):", err2)
    assert err2 < 0.25, f"blocked bf16 path max abs error {err2}"

    print("KERNEL_OK")
</pallas_src>

<mosaic_0001>
module attributes {stable_mosaic.version = 11 : i64} {
  func.func @_encoder_kernel(%arg0: i32, %arg1: memref<2x8x200xf32, #tpu.memory_space<vmem>>, %arg2: memref<200x384xf32, #tpu.memory_space<vmem>>, %arg3: memref<128x384xf32, #tpu.memory_space<vmem>>, %arg4: memref<1x384xf32, #tpu.memory_space<vmem>>, %arg5: memref<1x384xf32, #tpu.memory_space<vmem>>, %arg6: memref<128x384xf32, #tpu.memory_space<vmem>>, %arg7: memref<128x384xf32, #tpu.memory_space<vmem>>, %arg8: memref<1x384xf32, #tpu.memory_space<vmem>>, %arg9: memref<1x384xf32, #tpu.memory_space<vmem>>, %arg10: memref<128x384xf32, #tpu.memory_space<vmem>>, %arg11: memref<1x384xf32, #tpu.memory_space<vmem>>, %arg12: memref<128x128xf32, #tpu.memory_space<vmem>>, %arg13: memref<1x128xf32, #tpu.memory_space<vmem>>, %arg14: memref<1x128xf32, #tpu.memory_space<vmem>>, %arg15: memref<1x128xf32, #tpu.memory_space<vmem>>, %arg16: memref<2x128xf32, #tpu.memory_space<vmem>>, %arg17: memref<8x2x384xf32, #tpu.memory_space<vmem>>, %arg18: memref<8x2x384xf32, #tpu.memory_space<vmem>>, %arg19: memref<8x2x128xf32, #tpu.memory_space<vmem>>, %arg20: memref<8x2x128xf32, #tpu.memory_space<vmem>>) attributes {dimension_semantics = [#tpu.dimension_semantics<parallel>], iteration_bounds = array<i64: 1>, scalar_prefetch = 0 : i64, scratch_operands = 4 : i64, tpu.core_type = #tpu.core_type<tc>, window_params = [{transform_indices = @transform_0, window_bounds = array<i64: 2, 8, 200>}, {pipeline_mode = #tpu.pipeline_mode<synchronous>, transform_indices = @transform_1, window_bounds = array<i64: 200, 384>}, {pipeline_mode = #tpu.pipeline_mode<synchronous>, transform_indices = @transform_2, window_bounds = array<i64: 128, 384>}, {pipeline_mode = #tpu.pipeline_mode<synchronous>, transform_indices = @transform_3, window_bounds = array<i64: 1, 384>}, {pipeline_mode = #tpu.pipeline_mode<synchronous>, transform_indices = @transform_4, window_bounds = array<i64: 1, 384>}, {pipeline_mode = #tpu.pipeline_mode<synchronous>, transform_indices = @transform_5, window_bounds = array<i64: 128, 384>}, {pipeline_mode = #tpu.pipeline_mode<synchronous>, transform_indices = @transform_6, window_bounds = array<i64: 128, 384>}, {pipeline_mode = #tpu.pipeline_mode<synchronous>, transform_indices = @transform_7, window_bounds = array<i64: 1, 384>}, {pipeline_mode = #tpu.pipeline_mode<synchronous>, transform_indices = @transform_8, window_bounds = array<i64: 1, 384>}, {pipeline_mode = #tpu.pipeline_mode<synchronous>, transform_indices = @transform_9, window_bounds = array<i64: 128, 384>}, {pipeline_mode = #tpu.pipeline_mode<synchronous>, transform_indices = @transform_10, window_bounds = array<i64: 1, 384>}, {pipeline_mode = #tpu.pipeline_mode<synchronous>, transform_indices = @transform_11, window_bounds = array<i64: 128, 128>}, {pipeline_mode = #tpu.pipeline_mode<synchronous>, transform_indices = @transform_12, window_bounds = array<i64: 1, 128>}, {pipeline_mode = #tpu.pipeline_mode<synchronous>, transform_indices = @transform_13, window_bounds = array<i64: 1, 128>}, {pipeline_mode = #tpu.pipeline_mode<synchronous>, transform_indices = @transform_14, window_bounds = array<i64: 1, 128>}, {transform_indices = @transform_15, window_bounds = array<i64: 2, 128>}]} {
    %c0 = arith.constant 0 : index
    %c0_0 = arith.constant 0 : index
    %c0_1 = arith.constant 0 : index
    %0 = vector.load %arg1[%c0, %c0_0, %c0_1] : memref<2x8x200xf32, #tpu.memory_space<vmem>>, vector<2x8x200xf32>
    %1 = tpu.transpose %0, [1, 0, 2] : vector<2x8x200xf32> -> vector<8x2x200xf32>
    %2 = vector.shape_cast %1 : vector<8x2x200xf32> to vector<16x200xf32>
    %c0_2 = arith.constant 0 : index
    %c0_3 = arith.constant 0 : index
    %3 = vector.load %arg2[%c0_2, %c0_3] : memref<200x384xf32, #tpu.memory_space<vmem>>, vector<200x384xf32>
    %cst = arith.constant dense<0.000000e+00> : vector<16x384xf32>
    %4 = tpu.matmul %2, %3, %cst {dimension_numbers = #tpu.dot_dimension_numbers<[1], [0], [0], [1], [0, 0, 1, 1], [], []>} : vector<16x200xf32>, vector<200x384xf32>, vector<16x384xf32> -> vector<16x384xf32>
    %c0_4 = arith.constant 0 : index
    %c0_5 = arith.constant 0 : index
    %5 = vector.load %arg4[%c0_4, %c0_5] : memref<1x384xf32, #tpu.memory_space<vmem>>, vector<1x384xf32>
    %6 = vector.broadcast %5 : vector<1x384xf32> to vector<16x384xf32>
    %7 = arith.addf %4, %6 : vector<16x384xf32>
    %8 = vector.shape_cast %7 : vector<16x384xf32> to vector<8x2x384xf32>
    %c0_6 = arith.constant 0 : index
    %c0_7 = arith.constant 0 : index
    %c0_8 = arith.constant 0 : index
    %9 = vector.load %arg17[%c0_6, %c0_7, %c0_8] : memref<8x2x384xf32, #tpu.memory_space<vmem>>, vector<8x2x384xf32>
    tpu.vector_store %arg17[%c0_6, %c0_7, %c0_8], %8 {strides = array<i32>} : memref<8x2x384xf32, #tpu.memory_space<vmem>>, vector<8x2x384xf32>,
    %cst_9 = arith.constant 0.000000e+00 : f32
    %10 = vector.broadcast %cst_9 : f32 to vector<2x128xf32>
    %c0_i32 = arith.constant 0 : i32
    %c8_i32 = arith.constant 8 : i32
    %11 = arith.addi %c0_i32, %c8_i32 : i32
    %c1_i32 = arith.constant 1 : i32
    %12 = scf.for %arg21 = %c0_i32 to %11 step %c1_i32 iter_args(%arg22 = %10) -> (vector<2x128xf32>)  : i32 {
      %c0_79 = arith.constant 0 : index
      %c0_80 = arith.constant 0 : index
      %156 = vector.load %arg3[%c0_79, %c0_80] : memref<128x384xf32, #tpu.memory_space<vmem>>, vector<128x384xf32>
      %cst_81 = arith.constant dense<0.000000e+00> : vector<2x384xf32>
      %157 = tpu.matmul %arg22, %156, %cst_81 {dimension_numbers = #tpu.dot_dimension_numbers<[1], [0], [0], [1], [0, 0, 1, 1], [], []>} : vector<2x128xf32>, vector<128x384xf32>, vector<2x384xf32> -> vector<2x384xf32>
      %c0_82 = arith.constant 0 : index
      %c0_83 = arith.constant 0 : index
      %158 = vector.load %arg5[%c0_82, %c0_83] : memref<1x384xf32, #tpu.memory_space<vmem>>, vector<1x384xf32>
      %159 = vector.broadcast %158 : vector<1x384xf32> to vector<2x384xf32>
      %160 = arith.addf %157, %159 : vector<2x384xf32>
      %161 = arith.index_cast %arg21 : i32 to index
      %c0_84 = arith.constant 0 : index
      %c0_85 = arith.constant 0 : index
      %162 = vector.load %arg17[%161, %c0_84, %c0_85] : memref<8x2x384xf32, #tpu.memory_space<vmem>>, vector<1x2x384xf32>
      %163 = vector.shape_cast %162 : vector<1x2x384xf32> to vector<2x384xf32>
      %164 = vector.extract_strided_slice %163 {offsets = [0, 0], sizes = [2, 128], strides = [1, 1]} : vector<2x384xf32> to vector<2x128xf32>
      %165 = vector.extract_strided_slice %160 {offsets = [0, 0], sizes = [2, 128], strides = [1, 1]} : vector<2x384xf32> to vector<2x128xf32>
      %166 = arith.addf %164, %165 : vector<2x128xf32>
      %167 = arith.negf %166 : vector<2x128xf32>
      %168 = math.exp %167 : vector<2x128xf32>
      %cst_86 = arith.constant 1.000000e+00 : f32
      %169 = vector.broadcast %cst_86 : f32 to vector<2x128xf32>
      %170 = arith.addf %169, %168 : vector<2x128xf32>
      %171 = arith.divf %169, %170 : vector<2x128xf32>
      %172 = vector.extract_strided_slice %163 {offsets = [0, 128], sizes = [2, 128], strides = [1, 1]} : vector<2x384xf32> to vector<2x128xf32>
      %173 = vector.extract_strided_slice %160 {offsets = [0, 128], sizes = [2, 128], strides = [1, 1]} : vector<2x384xf32> to vector<2x128xf32>
      %174 = arith.addf %172, %173 : vector<2x128xf32>
      %175 = arith.negf %174 : vector<2x128xf32>
      %176 = math.exp %175 : vector<2x128xf32>
      %cst_87 = arith.constant 1.000000e+00 : f32
      %177 = vector.broadcast %cst_87 : f32 to vector<2x128xf32>
      %178 = arith.addf %177, %176 : vector<2x128xf32>
      %179 = arith.divf %177, %178 : vector<2x128xf32>
      %180 = vector.extract_strided_slice %163 {offsets = [0, 256], sizes = [2, 128], strides = [1, 1]} : vector<2x384xf32> to vector<2x128xf32>
      %181 = vector.extract_strided_slice %160 {offsets = [0, 256], sizes = [2, 128], strides = [1, 1]} : vector<2x384xf32> to vector<2x128xf32>
      %182 = arith.mulf %171, %181 : vector<2x128xf32>
      %183 = arith.addf %180, %182 : vector<2x128xf32>
      %184 = math.tanh %183 : vector<2x128xf32>
      %cst_88 = arith.constant 1.000000e+00 : f32
      %185 = vector.broadcast %cst_88 : f32 to vector<2x128xf32>
      %186 = arith.subf %185, %179 : vector<2x128xf32>
      %187 = arith.mulf %186, %184 : vector<2x128xf32>
      %188 = arith.mulf %179, %arg22 : vector<2x128xf32>
      %189 = arith.addf %187, %188 : vector<2x128xf32>
      %190 = arith.index_cast %arg21 : i32 to index
      %c0_89 = arith.constant 0 : index
      %c0_90 = arith.constant 0 : index
      %191 = vector.load %arg19[%190, %c0_89, %c0_90] : memref<8x2x128xf32, #tpu.memory_space<vmem>>, vector<1x2x128xf32>
      %192 = vector.shape_cast %191 : vector<1x2x128xf32> to vector<2x128xf32>
      %193 = vector.shape_cast %189 : vector<2x128xf32> to vector<1x2x128xf32>
      tpu.vector_store %arg19[%190, %c0_89, %c0_90], %193 {strides = array<i32>} : memref<8x2x128xf32, #tpu.memory_space<vmem>>, vector<1x2x128xf32>,
      scf.yield %189 : vector<2x128xf32>
    }
    %c8_i32_10 = arith.constant 8 : i32
    %c0_11 = arith.constant 0 : index
    %c0_12 = arith.constant 0 : index
    %c0_13 = arith.constant 0 : index
    %13 = vector.load %arg19[%c0_11, %c0_12, %c0_13] : memref<8x2x128xf32, #tpu.memory_space<vmem>>, vector<8x2x128xf32>
    %14 = vector.shape_cast %13 : vector<8x2x128xf32> to vector<16x128xf32>
    %c0_14 = arith.constant 0 : index
    %c0_15 = arith.constant 0 : index
    %15 = vector.load %arg6[%c0_14, %c0_15] : memref<128x384xf32, #tpu.memory_space<vmem>>, vector<128x384xf32>
    %cst_16 = arith.constant dense<0.000000e+00> : vector<16x384xf32>
    %16 = tpu.matmul %14, %15, %cst_16 {dimension_numbers = #tpu.dot_dimension_numbers<[1], [0], [0], [1], [0, 0, 1, 1], [], []>} : vector<16x128xf32>, vector<128x384xf32>, vector<16x384xf32> -> vector<16x384xf32>
    %c0_17 = arith.constant 0 : index
    %c0_18 = arith.constant 0 : index
    %17 = vector.load %arg8[%c0_17, %c0_18] : memref<1x384xf32, #tpu.memory_space<vmem>>, vector<1x384xf32>
    %18 = vector.broadcast %17 : vector<1x384xf32> to vector<16x384xf32>
    %19 = arith.addf %16, %18 : vector<16x384xf32>
    %20 = vector.shape_cast %19 : vector<16x384xf32> to vector<8x2x384xf32>
    %c0_19 = arith.constant 0 : index
    %c0_20 = arith.constant 0 : index
    %c0_21 = arith.constant 0 : index
    %21 = vector.load %arg18[%c0_19, %c0_20, %c0_21] : memref<8x2x384xf32, #tpu.memory_space<vmem>>, vector<8x2x384xf32>
    tpu.vector_store %arg18[%c0_19, %c0_20, %c0_21], %20 {strides = array<i32>} : memref<8x2x384xf32, #tpu.memory_space<vmem>>, vector<8x2x384xf32>,
    %cst_22 = arith.constant 0.000000e+00 : f32
    %22 = vector.broadcast %cst_22 : f32 to vector<2x128xf32>
    %c0_i32_23 = arith.constant 0 : i32
    %c8_i32_24 = arith.constant 8 : i32
    %23 = arith.addi %c0_i32_23, %c8_i32_24 : i32
    %c1_i32_25 = arith.constant 1 : i32
    %24 = scf.for %arg21 = %c0_i32_23 to %23 step %c1_i32_25 iter_args(%arg22 = %22) -> (vector<2x128xf32>)  : i32 {
      %c0_79 = arith.constant 0 : index
      %c0_80 = arith.constant 0 : index
      %156 = vector.load %arg7[%c0_79, %c0_80] : memref<128x384xf32, #tpu.memory_space<vmem>>, vector<128x384xf32>
      %cst_81 = arith.constant dense<0.000000e+00> : vector<2x384xf32>
      %157 = tpu.matmul %arg22, %156, %cst_81 {dimension_numbers = #tpu.dot_dimension_numbers<[1], [0], [0], [1], [0, 0, 1, 1], [], []>} : vector<2x128xf32>, vector<128x384xf32>, vector<2x384xf32> -> vector<2x384xf32>
      %c0_82 = arith.constant 0 : index
      %c0_83 = arith.constant 0 : index
      %158 = vector.load %arg9[%c0_82, %c0_83] : memref<1x384xf32, #tpu.memory_space<vmem>>, vector<1x384xf32>
      %159 = vector.broadcast %158 : vector<1x384xf32> to vector<2x384xf32>
      %160 = arith.addf %157, %159 : vector<2x384xf32>
      %161 = arith.index_cast %arg21 : i32 to index
      %c0_84 = arith.constant 0 : index
      %c0_85 = arith.constant 0 : index
      %162 = vector.load %arg18[%161, %c0_84, %c0_85] : memref<8x2x384xf32, #tpu.memory_space<vmem>>, vector<1x2x384xf32>
      %163 = vector.shape_cast %162 : vector<1x2x384xf32> to vector<2x384xf32>
      %164 = vector.extract_strided_slice %163 {offsets = [0, 0], sizes = [2, 128], strides = [1, 1]} : vector<2x384xf32> to vector<2x128xf32>
      %165 = vector.extract_strided_slice %160 {offsets = [0, 0], sizes = [2, 128], strides = [1, 1]} : vector<2x384xf32> to vector<2x128xf32>
      %166 = arith.addf %164, %165 : vector<2x128xf32>
      %167 = arith.negf %166 : vector<2x128xf32>
      %168 = math.exp %167 : vector<2x128xf32>
      %cst_86 = arith.constant 1.000000e+00 : f32
      %169 = vector.broadcast %cst_86 : f32 to vector<2x128xf32>
      %170 = arith.addf %169, %168 : vector<2x128xf32>
      %171 = arith.divf %169, %170 : vector<2x128xf32>
      %172 = vector.extract_strided_slice %163 {offsets = [0, 128], sizes = [2, 128], strides = [1, 1]} : vector<2x384xf32> to vector<2x128xf32>
      %173 = vector.extract_strided_slice %160 {offsets = [0, 128], sizes = [2, 128], strides = [1, 1]} : vector<2x384xf32> to vector<2x128xf32>
      %174 = arith.addf %172, %173 : vector<2x128xf32>
      %175 = arith.negf %174 : vector<2x128xf32>
      %176 = math.exp %175 : vector<2x128xf32>
      %cst_87 = arith.constant 1.000000e+00 : f32
      %177 = vector.broadcast %cst_87 : f32 to vector<2x128xf32>
      %178 = arith.addf %177, %176 : vector<2x128xf32>
      %179 = arith.divf %177, %178 : vector<2x128xf32>
      %180 = vector.extract_strided_slice %163 {offsets = [0, 256], sizes = [2, 128], strides = [1, 1]} : vector<2x384xf32> to vector<2x128xf32>
      %181 = vector.extract_strided_slice %160 {offsets = [0, 256], sizes = [2, 128], strides = [1, 1]} : vector<2x384xf32> to vector<2x128xf32>
      %182 = arith.mulf %171, %181 : vector<2x128xf32>
      %183 = arith.addf %180, %182 : vector<2x128xf32>
      %184 = math.tanh %183 : vector<2x128xf32>
      %cst_88 = arith.constant 1.000000e+00 : f32
      %185 = vector.broadcast %cst_88 : f32 to vector<2x128xf32>
      %186 = arith.subf %185, %179 : vector<2x128xf32>
      %187 = arith.mulf %186, %184 : vector<2x128xf32>
      %188 = arith.mulf %179, %arg22 : vector<2x128xf32>
      %189 = arith.addf %187, %188 : vector<2x128xf32>
      %190 = arith.index_cast %arg21 : i32 to index
      %c0_89 = arith.constant 0 : index
      %c0_90 = arith.constant 0 : index
      %191 = vector.load %arg20[%190, %c0_89, %c0_90] : memref<8x2x128xf32, #tpu.memory_space<vmem>>, vector<1x2x128xf32>
      %192 = vector.shape_cast %191 : vector<1x2x128xf32> to vector<2x128xf32>
      %193 = vector.shape_cast %189 : vector<2x128xf32> to vector<1x2x128xf32>
      tpu.vector_store %arg20[%190, %c0_89, %c0_90], %193 {strides = array<i32>} : memref<8x2x128xf32, #tpu.memory_space<vmem>>, vector<1x2x128xf32>,
      scf.yield %189 : vector<2x128xf32>
    }
    %c8_i32_26 = arith.constant 8 : i32
    %c0_27 = arith.constant 0 : index
    %c0_28 = arith.constant 0 : index
    %c0_29 = arith.constant 0 : index
    %25 = vector.load %arg20[%c0_27, %c0_28, %c0_29] : memref<8x2x128xf32, #tpu.memory_space<vmem>>, vector<8x2x128xf32>
    %26 = tpu.transpose %25, [1, 0, 2] : vector<8x2x128xf32> -> vector<2x8x128xf32>
    %27 = vector.shape_cast %26 : vector<2x8x128xf32> to vector<16x128xf32>
    %c0_30 = arith.constant 0 : index
    %c0_31 = arith.constant 0 : index
    %28 = vector.load %arg10[%c0_30, %c0_31] : memref<128x384xf32, #tpu.memory_space<vmem>>, vector<128x384xf32>
    %cst_32 = arith.constant dense<0.000000e+00> : vector<16x384xf32>
    %29 = tpu.matmul %27, %28, %cst_32 {dimension_numbers = #tpu.dot_dimension_numbers<[1], [0], [0], [1], [0, 0, 1, 1], [], []>} : vector<16x128xf32>, vector<128x384xf32>, vector<16x384xf32> -> vector<16x384xf32>
    %c0_33 = arith.constant 0 : index
    %c0_34 = arith.constant 0 : index
    %30 = vector.load %arg11[%c0_33, %c0_34] : memref<1x384xf32, #tpu.memory_space<vmem>>, vector<1x384xf32>
    %31 = vector.broadcast %30 : vector<1x384xf32> to vector<16x384xf32>
    %32 = arith.addf %29, %31 : vector<16x384xf32>
    %33 = vector.shape_cast %32 : vector<16x384xf32> to vector<2x8x384xf32>
    %34 = vector.extract_strided_slice %33 {offsets = [0, 0, 0], sizes = [2, 8, 128], strides = [1, 1, 1]} : vector<2x8x384xf32> to vector<2x8x128xf32>
    %35 = vector.extract_strided_slice %33 {offsets = [0, 0, 128], sizes = [2, 8, 128], strides = [1, 1, 1]} : vector<2x8x384xf32> to vector<2x8x128xf32>
    %36 = vector.extract_strided_slice %33 {offsets = [0, 0, 256], sizes = [2, 8, 128], strides = [1, 1, 1]} : vector<2x8x384xf32> to vector<2x8x128xf32>
    %37 = vector.extract_strided_slice %34 {offsets = [0, 0, 0], sizes = [2, 8, 32], strides = [1, 1, 1]} : vector<2x8x128xf32> to vector<2x8x32xf32>
    %38 = vector.extract_strided_slice %35 {offsets = [0, 0, 0], sizes = [2, 8, 32], strides = [1, 1, 1]} : vector<2x8x128xf32> to vector<2x8x32xf32>
    %39 = vector.extract_strided_slice %36 {offsets = [0, 0, 0], sizes = [2, 8, 32], strides = [1, 1, 1]} : vector<2x8x128xf32> to vector<2x8x32xf32>
    "tpu.trace_start"() <{level = 10 : i32, message = "btd,bsd->bts"}> : () -> ()
    %cst_35 = arith.constant dense<0.000000e+00> : vector<2x8x8xf32>
    %40 = tpu.matmul %37, %38, %cst_35 {dimension_numbers = #tpu.dot_dimension_numbers<[2], [2], [1], [1], [0, 0, 0, 1, 1, 1], [0], [0]>} : vector<2x8x32xf32>, vector<2x8x32xf32>, vector<2x8x8xf32> -> vector<2x8x8xf32>
    "tpu.trace_stop"() : () -> ()
    %cst_36 = arith.constant 0.176776692 : f32
    %41 = vector.broadcast %cst_36 : f32 to vector<2x8x8xf32>
    %42 = arith.mulf %40, %41 : vector<2x8x8xf32>
    %cst_37 = arith.constant dense<0xFF800000> : vector<2x8xf32>
    %43 = vector.multi_reduction <maximumf>, %42, %cst_37 [2] : vector<2x8x8xf32> to vector<2x8xf32>
    %44 = vector.shape_cast %43 : vector<2x8xf32> to vector<2x8x1xf32>
    %45 = vector.broadcast %44 : vector<2x8x1xf32> to vector<2x8x8xf32>
    %46 = arith.subf %42, %45 : vector<2x8x8xf32>
    %47 = math.exp %46 : vector<2x8x8xf32>
    %cst_38 = arith.constant dense<0.000000e+00> : vector<2x8xf32>
    %48 = vector.multi_reduction <add>, %47, %cst_38 [2] : vector<2x8x8xf32> to vector<2x8xf32>
    %49 = vector.shape_cast %48 : vector<2x8xf32> to vector<2x8x1xf32>
    %50 = tpu.reciprocal %49 {approx = true} : vector<2x8x1xf32> -> vector<2x8x1xf32>
    %51 = vector.broadcast %50 : vector<2x8x1xf32> to vector<2x8x8xf32>
    %52 = arith.mulf %47, %51 : vector<2x8x8xf32>
    %cst_39 = arith.constant dense<0.000000e+00> : vector<2x8xf32>
    %53 = vector.multi_reduction <add>, %52, %cst_39 [1] : vector<2x8x8xf32> to vector<2x8xf32>
    %54 = vector.shape_cast %53 : vector<2x8xf32> to vector<2x1x8xf32>
    %cst_40 = arith.constant 8.000000e+00 : f32
    %55 = vector.broadcast %cst_40 : f32 to vector<2x1x8xf32>
    %56 = arith.divf %54, %55 : vector<2x1x8xf32>
    "tpu.trace_start"() <{level = 10 : i32, message = "bqs,bsd->bqd"}> : () -> ()
    %cst_41 = arith.constant dense<0.000000e+00> : vector<2x1x32xf32>
    %57 = tpu.matmul %56, %39, %cst_41 {dimension_numbers = #tpu.dot_dimension_numbers<[2], [1], [1], [2], [0, 0, 0, 1, 1, 2], [0], [0]>} : vector<2x1x8xf32>, vector<2x8x32xf32>, vector<2x1x32xf32> -> vector<2x1x32xf32>
    "tpu.trace_stop"() : () -> ()
    %58 = vector.shape_cast %57 : vector<2x1x32xf32> to vector<2x32xf32>
    %59 = vector.extract_strided_slice %34 {offsets = [0, 0, 32], sizes = [2, 8, 32], strides = [1, 1, 1]} : vector<2x8x128xf32> to vector<2x8x32xf32>
    %60 = vector.extract_strided_slice %35 {offsets = [0, 0, 32], sizes = [2, 8, 32], strides = [1, 1, 1]} : vector<2x8x128xf32> to vector<2x8x32xf32>
    %61 = vector.extract_strided_slice %36 {offsets = [0, 0, 32], sizes = [2, 8, 32], strides = [1, 1, 1]} : vector<2x8x128xf32> to vector<2x8x32xf32>
    "tpu.trace_start"() <{level = 10 : i32, message = "btd,bsd->bts"}> : () -> ()
    %cst_42 = arith.constant dense<0.000000e+00> : vector<2x8x8xf32>
    %62 = tpu.matmul %59, %60, %cst_42 {dimension_numbers = #tpu.dot_dimension_numbers<[2], [2], [1], [1], [0, 0, 0, 1, 1, 1], [0], [0]>} : vector<2x8x32xf32>, vector<2x8x32xf32>, vector<2x8x8xf32> -> vector<2x8x8xf32>
    "tpu.trace_stop"() : () -> ()
    %cst_43 = arith.constant 0.176776692 : f32
    %63 = vector.broadcast %cst_43 : f32 to vector<2x8x8xf32>
    %64 = arith.mulf %62, %63 : vector<2x8x8xf32>
    %cst_44 = arith.constant dense<0xFF800000> : vector<2x8xf32>
    %65 = vector.multi_reduction <maximumf>, %64, %cst_44 [2] : vector<2x8x8xf32> to vector<2x8xf32>
    %66 = vector.shape_cast %65 : vector<2x8xf32> to vector<2x8x1xf32>
    %67 = vector.broadcast %66 : vector<2x8x1xf32> to vector<2x8x8xf32>
    %68 = arith.subf %64, %67 : vector<2x8x8xf32>
    %69 = math.exp %68 : vector<2x8x8xf32>
    %cst_45 = arith.constant dense<0.000000e+00> : vector<2x8xf32>
    %70 = vector.multi_reduction <add>, %69, %cst_45 [2] : vector<2x8x8xf32> to vector<2x8xf32>
    %71 = vector.shape_cast %70 : vector<2x8xf32> to vector<2x8x1xf32>
    %72 = tpu.reciprocal %71 {approx = true} : vector<2x8x1xf32> -> vector<2x8x1xf32>
    %73 = vector.broadcast %72 : vector<2x8x1xf32> to vector<2x8x8xf32>
    %74 = arith.mulf %69, %73 : vector<2x8x8xf32>
    %cst_46 = arith.constant dense<0.000000e+00> : vector<2x8xf32>
    %75 = vector.multi_reduction <add>, %74, %cst_46 [1] : vector<2x8x8xf32> to vector<2x8xf32>
    %76 = vector.shape_cast %75 : vector<2x8xf32> to vector<2x1x8xf32>
    %cst_47 = arith.constant 8.000000e+00 : f32
    %77 = vector.broadcast %cst_47 : f32 to vector<2x1x8xf32>
    %78 = arith.divf %76, %77 : vector<2x1x8xf32>
    "tpu.trace_start"() <{level = 10 : i32, message = "bqs,bsd->bqd"}> : () -> ()
    %cst_48 = arith.constant dense<0.000000e+00> : vector<2x1x32xf32>
    %79 = tpu.matmul %78, %61, %cst_48 {dimension_numbers = #tpu.dot_dimension_numbers<[2], [1], [1], [2], [0, 0, 0, 1, 1, 2], [0], [0]>} : vector<2x1x8xf32>, vector<2x8x32xf32>, vector<2x1x32xf32> -> vector<2x1x32xf32>
    "tpu.trace_stop"() : () -> ()
    %80 = vector.shape_cast %79 : vector<2x1x32xf32> to vector<2x32xf32>
    %81 = vector.extract_strided_slice %34 {offsets = [0, 0, 64], sizes = [2, 8, 32], strides = [1, 1, 1]} : vector<2x8x128xf32> to vector<2x8x32xf32>
    %82 = vector.extract_strided_slice %35 {offsets = [0, 0, 64], sizes = [2, 8, 32], strides = [1, 1, 1]} : vector<2x8x128xf32> to vector<2x8x32xf32>
    %83 = vector.extract_strided_slice %36 {offsets = [0, 0, 64], sizes = [2, 8, 32], strides = [1, 1, 1]} : vector<2x8x128xf32> to vector<2x8x32xf32>
    "tpu.trace_start"() <{level = 10 : i32, message = "btd,bsd->bts"}> : () -> ()
    %cst_49 = arith.constant dense<0.000000e+00> : vector<2x8x8xf32>
    %84 = tpu.matmul %81, %82, %cst_49 {dimension_numbers = #tpu.dot_dimension_numbers<[2], [2], [1], [1], [0, 0, 0, 1, 1, 1], [0], [0]>} : vector<2x8x32xf32>, vector<2x8x32xf32>, vector<2x8x8xf32> -> vector<2x8x8xf32>
    "tpu.trace_stop"() : () -> ()
    %cst_50 = arith.constant 0.176776692 : f32
    %85 = vector.broadcast %cst_50 : f32 to vector<2x8x8xf32>
    %86 = arith.mulf %84, %85 : vector<2x8x8xf32>
    %cst_51 = arith.constant dense<0xFF800000> : vector<2x8xf32>
    %87 = vector.multi_reduction <maximumf>, %86, %cst_51 [2] : vector<2x8x8xf32> to vector<2x8xf32>
    %88 = vector.shape_cast %87 : vector<2x8xf32> to vector<2x8x1xf32>
    %89 = vector.broadcast %88 : vector<2x8x1xf32> to vector<2x8x8xf32>
    %90 = arith.subf %86, %89 : vector<2x8x8xf32>
    %91 = math.exp %90 : vector<2x8x8xf32>
    %cst_52 = arith.constant dense<0.000000e+00> : vector<2x8xf32>
    %92 = vector.multi_reduction <add>, %91, %cst_52 [2] : vector<2x8x8xf32> to vector<2x8xf32>
    %93 = vector.shape_cast %92 : vector<2x8xf32> to vector<2x8x1xf32>
    %94 = tpu.reciprocal %93 {approx = true} : vector<2x8x1xf32> -> vector<2x8x1xf32>
    %95 = vector.broadcast %94 : vector<2x8x1xf32> to vector<2x8x8xf32>
    %96 = arith.mulf %91, %95 : vector<2x8x8xf32>
    %cst_53 = arith.constant dense<0.000000e+00> : vector<2x8xf32>
    %97 = vector.multi_reduction <add>, %96, %cst_53 [1] : vector<2x8x8xf32> to vector<2x8xf32>
    %98 = vector.shape_cast %97 : vector<2x8xf32> to vector<2x1x8xf32>
    %cst_54 = arith.constant 8.000000e+00 : f32
    %99 = vector.broadcast %cst_54 : f32 to vector<2x1x8xf32>
    %100 = arith.divf %98, %99 : vector<2x1x8xf32>
    "tpu.trace_start"() <{level = 10 : i32, message = "bqs,bsd->bqd"}> : () -> ()
    %cst_55 = arith.constant dense<0.000000e+00> : vector<2x1x32xf32>
    %101 = tpu.matmul %100, %83, %cst_55 {dimension_numbers = #tpu.dot_dimension_numbers<[2], [1], [1], [2], [0, 0, 0, 1, 1, 2], [0], [0]>} : vector<2x1x8xf32>, vector<2x8x32xf32>, vector<2x1x32xf32> -> vector<2x1x32xf32>
    "tpu.trace_stop"() : () -> ()
    %102 = vector.shape_cast %101 : vector<2x1x32xf32> to vector<2x32xf32>
    %103 = vector.extract_strided_slice %34 {offsets = [0, 0, 96], sizes = [2, 8, 32], strides = [1, 1, 1]} : vector<2x8x128xf32> to vector<2x8x32xf32>
    %104 = vector.extract_strided_slice %35 {offsets = [0, 0, 96], sizes = [2, 8, 32], strides = [1, 1, 1]} : vector<2x8x128xf32> to vector<2x8x32xf32>
    %105 = vector.extract_strided_slice %36 {offsets = [0, 0, 96], sizes = [2, 8, 32], strides = [1, 1, 1]} : vector<2x8x128xf32> to vector<2x8x32xf32>
    "tpu.trace_start"() <{level = 10 : i32, message = "btd,bsd->bts"}> : () -> ()
    %cst_56 = arith.constant dense<0.000000e+00> : vector<2x8x8xf32>
    %106 = tpu.matmul %103, %104, %cst_56 {dimension_numbers = #tpu.dot_dimension_numbers<[2], [2], [1], [1], [0, 0, 0, 1, 1, 1], [0], [0]>} : vector<2x8x32xf32>, vector<2x8x32xf32>, vector<2x8x8xf32> -> vector<2x8x8xf32>
    "tpu.trace_stop"() : () -> ()
    %cst_57 = arith.constant 0.176776692 : f32
    %107 = vector.broadcast %cst_57 : f32 to vector<2x8x8xf32>
    %108 = arith.mulf %106, %107 : vector<2x8x8xf32>
    %cst_58 = arith.constant dense<0xFF800000> : vector<2x8xf32>
    %109 = vector.multi_reduction <maximumf>, %108, %cst_58 [2] : vector<2x8x8xf32> to vector<2x8xf32>
    %110 = vector.shape_cast %109 : vector<2x8xf32> to vector<2x8x1xf32>
    %111 = vector.broadcast %110 : vector<2x8x1xf32> to vector<2x8x8xf32>
    %112 = arith.subf %108, %111 : vector<2x8x8xf32>
    %113 = math.exp %112 : vector<2x8x8xf32>
    %cst_59 = arith.constant dense<0.000000e+00> : vector<2x8xf32>
    %114 = vector.multi_reduction <add>, %113, %cst_59 [2] : vector<2x8x8xf32> to vector<2x8xf32>
    %115 = vector.shape_cast %114 : vector<2x8xf32> to vector<2x8x1xf32>
    %116 = tpu.reciprocal %115 {approx = true} : vector<2x8x1xf32> -> vector<2x8x1xf32>
    %117 = vector.broadcast %116 : vector<2x8x1xf32> to vector<2x8x8xf32>
    %118 = arith.mulf %113, %117 : vector<2x8x8xf32>
    %cst_60 = arith.constant dense<0.000000e+00> : vector<2x8xf32>
    %119 = vector.multi_reduction <add>, %118, %cst_60 [1] : vector<2x8x8xf32> to vector<2x8xf32>
    %120 = vector.shape_cast %119 : vector<2x8xf32> to vector<2x1x8xf32>
    %cst_61 = arith.constant 8.000000e+00 : f32
    %121 = vector.broadcast %cst_61 : f32 to vector<2x1x8xf32>
    %122 = arith.divf %120, %121 : vector<2x1x8xf32>
    "tpu.trace_start"() <{level = 10 : i32, message = "bqs,bsd->bqd"}> : () -> ()
    %cst_62 = arith.constant dense<0.000000e+00> : vector<2x1x32xf32>
    %123 = tpu.matmul %122, %105, %cst_62 {dimension_numbers = #tpu.dot_dimension_numbers<[2], [1], [1], [2], [0, 0, 0, 1, 1, 2], [0], [0]>} : vector<2x1x8xf32>, vector<2x8x32xf32>, vector<2x1x32xf32> -> vector<2x1x32xf32>
    "tpu.trace_stop"() : () -> ()
    %124 = vector.shape_cast %123 : vector<2x1x32xf32> to vector<2x32xf32>
    %125 = tpu.concatenate %58, %80, %102, %124 in 1 : vector<2x32xf32>, vector<2x32xf32>, vector<2x32xf32>, vector<2x32xf32> -> vector<2x128xf32>
    %c0_63 = arith.constant 0 : index
    %c0_64 = arith.constant 0 : index
    %126 = vector.load %arg12[%c0_63, %c0_64] : memref<128x128xf32, #tpu.memory_space<vmem>>, vector<128x128xf32>
    %cst_65 = arith.constant dense<0.000000e+00> : vector<2x128xf32>
    %127 = tpu.matmul %125, %126, %cst_65 {dimension_numbers = #tpu.dot_dimension_numbers<[1], [0], [0], [1], [0, 0, 1, 1], [], []>} : vector<2x128xf32>, vector<128x128xf32>, vector<2x128xf32> -> vector<2x128xf32>
    %c0_66 = arith.constant 0 : index
    %c0_67 = arith.constant 0 : index
    %128 = vector.load %arg13[%c0_66, %c0_67] : memref<1x128xf32, #tpu.memory_space<vmem>>, vector<1x128xf32>
    %129 = vector.broadcast %128 : vector<1x128xf32> to vector<2x128xf32>
    %130 = arith.addf %127, %129 : vector<2x128xf32>
    %cst_68 = arith.constant dense<0.000000e+00> : vector<2xf32>
    %131 = vector.multi_reduction <add>, %130, %cst_68 [1] : vector<2x128xf32> to vector<2xf32>
    %132 = vector.shape_cast %131 : vector<2xf32> to vector<2x1xf32>
    %cst_69 = arith.constant 1.280000e+02 : f32
    %133 = vector.broadcast %cst_69 : f32 to vector<2x1xf32>
    %134 = arith.divf %132, %133 : vector<2x1xf32>
    %135 = vector.broadcast %134 : vector<2x1xf32> to vector<2x128xf32>
    %136 = arith.subf %130, %135 : vector<2x128xf32>
    %137 = arith.mulf %136, %136 : vector<2x128xf32>
    %cst_70 = arith.constant dense<0.000000e+00> : vector<2xf32>
    %138 = vector.multi_reduction <add>, %137, %cst_70 [1] : vector<2x128xf32> to vector<2xf32>
    %139 = vector.shape_cast %138 : vector<2xf32> to vector<2x1xf32>
    %cst_71 = arith.constant 1.280000e+02 : f32
    %140 = vector.broadcast %cst_71 : f32 to vector<2x1xf32>
    %141 = arith.divf %139, %140 : vector<2x1xf32>
    %142 = vector.broadcast %134 : vector<2x1xf32> to vector<2x128xf32>
    %143 = arith.subf %130, %142 : vector<2x128xf32>
    %cst_72 = arith.constant 9.99999974E-6 : f32
    %144 = vector.broadcast %cst_72 : f32 to vector<2x1xf32>
    %145 = arith.addf %141, %144 : vector<2x1xf32>
    %146 = math.rsqrt %145 : vector<2x1xf32>
    %147 = vector.broadcast %146 : vector<2x1xf32> to vector<2x128xf32>
    %148 = arith.mulf %143, %147 : vector<2x128xf32>
    %c0_73 = arith.constant 0 : index
    %c0_74 = arith.constant 0 : index
    %149 = vector.load %arg14[%c0_73, %c0_74] : memref<1x128xf32, #tpu.memory_space<vmem>>, vector<1x128xf32>
    %150 = vector.broadcast %149 : vector<1x128xf32> to vector<2x128xf32>
    %151 = arith.mulf %148, %150 : vector<2x128xf32>
    %c0_75 = arith.constant 0 : index
    %c0_76 = arith.constant 0 : index
    %152 = vector.load %arg15[%c0_75, %c0_76] : memref<1x128xf32, #tpu.memory_space<vmem>>, vector<1x128xf32>
    %153 = vector.broadcast %152 : vector<1x128xf32> to vector<2x128xf32>
    %154 = arith.addf %151, %153 : vector<2x128xf32>
    %c0_77 = arith.constant 0 : index
    %c0_78 = arith.constant 0 : index
    %155 = vector.load %arg16[%c0_77, %c0_78] : memref<2x128xf32, #tpu.memory_space<vmem>>, vector<2x128xf32>
    tpu.vector_store %arg16[%c0_77, %c0_78], %154 {strides = array<i32>} : memref<2x128xf32, #tpu.memory_space<vmem>>, vector<2x128xf32>,
    return
  }
  func.func @transform_0(%arg0: i32) -> (i32, i32, i32) {
    %c0_i32 = arith.constant 0 : i32
    %c0_i32_0 = arith.constant 0 : i32
    %c0_i32_1 = arith.constant 0 : i32
    return %arg0, %c0_i32, %c0_i32_0 : i32, i32, i32
  }
  func.func @transform_1(%arg0: i32) -> (i32, i32) {
    %c0_i32 = arith.constant 0 : i32
    %c0_i32_0 = arith.constant 0 : i32
    %c0_i32_1 = arith.constant 0 : i32
    return %c0_i32, %c0_i32_0 : i32, i32
  }
  func.func @transform_2(%arg0: i32) -> (i32, i32) {
    %c0_i32 = arith.constant 0 : i32
    %c0_i32_0 = arith.constant 0 : i32
    %c0_i32_1 = arith.constant 0 : i32
    return %c0_i32, %c0_i32_0 : i32, i32
  }
  func.func @transform_3(%arg0: i32) -> (i32, i32) {
    %c0_i32 = arith.constant 0 : i32
    %c0_i32_0 = arith.constant 0 : i32
    %c0_i32_1 = arith.constant 0 : i32
    return %c0_i32, %c0_i32_0 : i32, i32
  }
  func.func @transform_4(%arg0: i32) -> (i32, i32) {
    %c0_i32 = arith.constant 0 : i32
    %c0_i32_0 = arith.constant 0 : i32
    %c0_i32_1 = arith.constant 0 : i32
    return %c0_i32, %c0_i32_0 : i32, i32
  }
  func.func @transform_5(%arg0: i32) -> (i32, i32) {
    %c0_i32 = arith.constant 0 : i32
    %c0_i32_0 = arith.constant 0 : i32
    %c0_i32_1 = arith.constant 0 : i32
    return %c0_i32, %c0_i32_0 : i32, i32
  }
  func.func @transform_6(%arg0: i32) -> (i32, i32) {
    %c0_i32 = arith.constant 0 : i32
    %c0_i32_0 = arith.constant 0 : i32
    %c0_i32_1 = arith.constant 0 : i32
    return %c0_i32, %c0_i32_0 : i32, i32
  }
  func.func @transform_7(%arg0: i32) -> (i32, i32) {
    %c0_i32 = arith.constant 0 : i32
    %c0_i32_0 = arith.constant 0 : i32
    %c0_i32_1 = arith.constant 0 : i32
    return %c0_i32, %c0_i32_0 : i32, i32
  }
  func.func @transform_8(%arg0: i32) -> (i32, i32) {
    %c0_i32 = arith.constant 0 : i32
    %c0_i32_0 = arith.constant 0 : i32
    %c0_i32_1 = arith.constant 0 : i32
    return %c0_i32, %c0_i32_0 : i32, i32
  }
  func.func @transform_9(%arg0: i32) -> (i32, i32) {
    %c0_i32 = arith.constant 0 : i32
    %c0_i32_0 = arith.constant 0 : i32
    %c0_i32_1 = arith.constant 0 : i32
    return %c0_i32, %c0_i32_0 : i32, i32
  }
  func.func @transform_10(%arg0: i32) -> (i32, i32) {
    %c0_i32 = arith.constant 0 : i32
    %c0_i32_0 = arith.constant 0 : i32
    %c0_i32_1 = arith.constant 0 : i32
    return %c0_i32, %c0_i32_0 : i32, i32
  }
  func.func @transform_11(%arg0: i32) -> (i32, i32) {
    %c0_i32 = arith.constant 0 : i32
    %c0_i32_0 = arith.constant 0 : i32
    %c0_i32_1 = arith.constant 0 : i32
    return %c0_i32, %c0_i32_0 : i32, i32
  }
  func.func @transform_12(%arg0: i32) -> (i32, i32) {
    %c0_i32 = arith.constant 0 : i32
    %c0_i32_0 = arith.constant 0 : i32
    %c0_i32_1 = arith.constant 0 : i32
    return %c0_i32, %c0_i32_0 : i32, i32
  }
  func.func @transform_13(%arg0: i32) -> (i32, i32) {
    %c0_i32 = arith.constant 0 : i32
    %c0_i32_0 = arith.constant 0 : i32
    %c0_i32_1 = arith.constant 0 : i32
    return %c0_i32, %c0_i32_0 : i32, i32
  }
  func.func @transform_14(%arg0: i32) -> (i32, i32) {
    %c0_i32 = arith.constant 0 : i32
    %c0_i32_0 = arith.constant 0 : i32
    %c0_i32_1 = arith.constant 0 : i32
    return %c0_i32, %c0_i32_0 : i32, i32
  }
  func.func @transform_15(%arg0: i32) -> (i32, i32) {
    %c0_i32 = arith.constant 0 : i32
    %c0_i32_0 = arith.constant 0 : i32
    return %arg0, %c0_i32 : i32, i32
  }
}

</mosaic_0001>

<llo_original>
// kernel: tpu_custom_call.1
$region0: #{tpu_custom_call.1}
  #allocation0 [shape = 'u32[]', space=smem, size = 0x4, offset = 0x4, fixed_abs, tag = 'smem constant byte address 0x4 - core index']
  #allocation1 [shape = 'u32[144,128]{1,0:T(1,128)}', space=vmem, size = 0x12000, scoped, tag = 'internal scratch']
  #allocation2 [shape = 'f32[8,2,384]{2,1,0:T(2,128)}', space=vmem, size = 0x6000, scoped, tag = 'scratch operand']
  #allocation3 [shape = 'f32[8,2,384]{2,1,0:T(2,128)}', space=vmem, size = 0x6000, scoped, tag = 'scratch operand']
  #allocation4 [shape = 'f32[8,2,128]{2,1,0:T(2,128)}', space=vmem, size = 0x2000, scoped, tag = 'scratch operand']
  #allocation5 [shape = 'f32[8,2,128]{2,1,0:T(2,128)}', space=vmem, size = 0x2000, scoped, tag = 'scratch operand']
  %s0 = inlined_call_operand.hbm [shape: f32[2,8,200], index: 0, kind: input, shape index: {}]
  %s1 = inlined_call_operand.hbm [shape: f32[200,384], index: 1, kind: input, shape index: {}]
  %s2 = inlined_call_operand.hbm [shape: f32[128,384], index: 2, kind: input, shape index: {}]
  %s3 = inlined_call_operand.vmem [shape: f32[1,384], index: 3, kind: input, shape index: {}]
  %s4 = inlined_call_operand.vmem [shape: f32[1,384], index: 4, kind: input, shape index: {}]
  %s5 = inlined_call_operand.hbm [shape: f32[128,384], index: 5, kind: input, shape index: {}]
  %s6 = inlined_call_operand.hbm [shape: f32[128,384], index: 6, kind: input, shape index: {}]
  %s7 = inlined_call_operand.vmem [shape: f32[1,384], index: 7, kind: input, shape index: {}]
  %s8 = inlined_call_operand.vmem [shape: f32[1,384], index: 8, kind: input, shape index: {}]
  %s9 = inlined_call_operand.hbm [shape: f32[128,384], index: 9, kind: input, shape index: {}]
  %s10 = inlined_call_operand.vmem [shape: f32[1,384], index: 10, kind: input, shape index: {}]
  %s11 = inlined_call_operand.hbm [shape: f32[128,128], index: 11, kind: input, shape index: {}]
  %s12 = inlined_call_operand.vmem [shape: f32[1,128], index: 12, kind: input, shape index: {}]
  %s13 = inlined_call_operand.vmem [shape: f32[1,128], index: 13, kind: input, shape index: {}]
  %s14 = inlined_call_operand.vmem [shape: f32[1,128], index: 14, kind: input, shape index: {}]
  %s15 = inlined_call_operand.hbm [shape: f32[2,128], index: 15, kind: output, shape index: {}]
  %s16 = sld [smem:[#allocation0]]
  $region112: #{tpu_custom_call.1} parent=0
    _
  %s18 = ssub.s32 1, %s16
  %s19 = scalar_select 0, %s18, %s16
  $region1: #{tpu_custom_call.1} parent=0
    #allocation6 [shape = 'u8[16384]{0}', space=vmem, size = 0x4000, scoped, tag = 'input window, operand 0, single buffered']
    #allocation7 [shape = 's32[1]{0}', space=sflag, size = 0x4, scoped, tag = 'scoped memory for tpu_custom_call.1']
    #allocation8 [shape = 's32[1]{0}', space=sflag, size = 0x4, scoped, tag = 'scoped memory for tpu_custom_call.1']
    #allocation9 [shape = 'u8[307200]{0}', space=vmem, size = 0x4b000, scoped, tag = 'input window, operand 1, single buffered']
    #allocation10 [shape = 's32[1]{0}', space=sflag, size = 0x4, scoped, tag = 'scoped memory for tpu_custom_call.1']
    #allocation11 [shape = 'u8[196608]{0}', space=vmem, size = 0x30000, scoped, tag = 'input window, operand 2, single buffered']
    #allocation12 [shape = 'u8[196608]{0}', space=vmem, size = 0x30000, scoped, tag = 'input window, operand 5, single buffered']
    #allocation13 [shape = 's32[1]{0}', space=sflag, size = 0x4, scoped, tag = 'scoped memory for tpu_custom_call.1']
    #allocation14 [shape = 'u8[196608]{0}', space=vmem, size = 0x30000, scoped, tag = 'input window, operand 6, single buffered']
    #allocation15 [shape = 'u8[196608]{0}', space=vmem, size = 0x30000, scoped, tag = 'input window, operand 9, single buffered']
    #allocation16 [shape = 's32[1]{0}', space=sflag, size = 0x4, scoped, tag = 'scoped memory for tpu_custom_call.1']
    #allocation17 [shape = 'u8[65536]{0}', space=vmem, size = 0x10000, scoped, tag = 'input window, operand 11, single buffered']
    #allocation18 [shape = 'u8[1024]{0}', space=vmem, size = 0x400, scoped, tag = 'output window, operand 0, single buffered']
    %20 = vsyncpa [#allocation7], 0
    %21 = vsyncpa [#allocation10], 0
    %22 = vsyncpa [#allocation13], 0
    %23 = vsyncpa [#allocation16], 0
    %24 = vsyncpa [#allocation8], 0
    // Predicated region
    $region2: #{tpu_custom_call.1} parent=1 // pred_check
      _
    $region3: #{tpu_custom_call.1} parent=1 // pred_check_branch
      %26 = sbr.rel (0) target = $region5
    $region4: #{tpu_custom_call.1} parent=1 // pred_region
      %s28 = ssub.s32 512, 512
      %29 = vsyncadd [#allocation7], %s28
      %s30 = sshll.u32 [#allocation6], 4
      %s31 = int_to_ptr.vmem [resolvable:$true] %s30
      %36 = dma.hbm_to_vmem [thread:$0]  %s0, 512, %s31, [#allocation7], 256, 256, 16
    $region5: #{tpu_custom_call.1} parent=1 // pred_fallthru
      _
    // Predicated region
    $region6: #{tpu_custom_call.1} parent=1 // pred_check
      _
    $region7: #{tpu_custom_call.1} parent=1 // pred_check_branch
      %38 = sbr.rel (0) target = $region9
    $region8: #{tpu_custom_call.1} parent=1 // pred_region
      %s40 = ssub.s32 9600, 9600
      %41 = vsyncadd [#allocation10], %s40
      %s42 = sshll.u32 [#allocation9], 4
      %s43 = int_to_ptr.vmem [resolvable:$true] %s42
      %48 = dma.hbm_to_vmem [thread:$0]  %s1, 9600, %s43, [#allocation10], 384, 384, 24
    $region9: #{tpu_custom_call.1} parent=1 // pred_fallthru
      _
    // Predicated region
    $region10: #{tpu_custom_call.1} parent=1 // pred_check
      _
    $region11: #{tpu_custom_call.1} parent=1 // pred_check_branch
      %50 = sbr.rel (0) target = $region13
    $region12: #{tpu_custom_call.1} parent=1 // pred_region
      %s52 = ssub.s32 6144, 6144
      %53 = vsyncadd [#allocation10], %s52
      %s54 = sshll.u32 [#allocation11], 4
      %s55 = int_to_ptr.vmem [resolvable:$true] %s54
      %60 = dma.hbm_to_vmem [thread:$0]  %s2, 6144, %s55, [#allocation10], 384, 384, 24
    $region13: #{tpu_custom_call.1} parent=1 // pred_fallthru
      _
    // Predicated region
    $region14: #{tpu_custom_call.1} parent=1 // pred_check
      _
    $region15: #{tpu_custom_call.1} parent=1 // pred_check_branch
      %62 = sbr.rel (0) target = $region17
    $region16: #{tpu_custom_call.1} parent=1 // pred_region
      _
    $region17: #{tpu_custom_call.1} parent=1 // pred_fallthru
      _
    // Predicated region
    $region18: #{tpu_custom_call.1} parent=1 // pred_check
      _
    $region19: #{tpu_custom_call.1} parent=1 // pred_check_branch
      %64 = sbr.rel (0) target = $region21
    $region20: #{tpu_custom_call.1} parent=1 // pred_region
      _
    $region21: #{tpu_custom_call.1} parent=1 // pred_fallthru
      _
    // Predicated region
    $region22: #{tpu_custom_call.1} parent=1 // pred_check
      _
    $region23: #{tpu_custom_call.1} parent=1 // pred_check_branch
      %66 = sbr.rel (0) target = $region25
    $region24: #{tpu_custom_call.1} parent=1 // pred_region
      %s68 = ssub.s32 6144, 6144
      %69 = vsyncadd [#allocation13], %s68
      %s70 = sshll.u32 [#allocation12], 4
      %s71 = int_to_ptr.vmem [resolvable:$true] %s70
      %76 = dma.hbm_to_vmem [thread:$0]  %s5, 6144, %s71, [#allocation13], 384, 384, 24
    $region25: #{tpu_custom_call.1} parent=1 // pred_fallthru
      _
    // Predicated region
    $region26: #{tpu_custom_call.1} parent=1 // pred_check
      _
    $region27: #{tpu_custom_call.1} parent=1 // pred_check_branch
      %78 = sbr.rel (0) target = $region29
    $region28: #{tpu_custom_call.1} parent=1 // pred_region
      %s80 = ssub.s32 6144, 6144
      %81 = vsyncadd [#allocation13], %s80
      %s82 = sshll.u32 [#allocation14], 4
      %s83 = int_to_ptr.vmem [resolvable:$true] %s82
      %88 = dma.hbm_to_vmem [thread:$0]  %s6, 6144, %s83, [#allocation13], 384, 384, 24
    $region29: #{tpu_custom_call.1} parent=1 // pred_fallthru
      _
    // Predicated region
    $region30: #{tpu_custom_call.1} parent=1 // pred_check
      _
    $region31: #{tpu_custom_call.1} parent=1 // pred_check_branch
      %90 = sbr.rel (0) target = $region33
    $region32: #{tpu_custom_call.1} parent=1 // pred_region
      _
    $region33: #{tpu_custom_call.1} parent=1 // pred_fallthru
      _
    // Predicated region
    $region34: #{tpu_custom_call.1} parent=1 // pred_check
      _
    $region35: #{tpu_custom_call.1} parent=1 // pred_check_branch
      %92 = sbr.rel (0) target = $region37
    $region36: #{tpu_custom_call.1} parent=1 // pred_region
      _
    $region37: #{tpu_custom_call.1} parent=1 // pred_fallthru
      _
    // Predicated region
    $region38: #{tpu_custom_call.1} parent=1 // pred_check
      _
    $region39: #{tpu_custom_call.1} parent=1 // pred_check_branch
      %94 = sbr.rel (0) target = $region41
    $region40: #{tpu_custom_call.1} parent=1 // pred_region
      %s96 = ssub.s32 6144, 6144
      %97 = vsyncadd [#allocation16], %s96
      %s98 = sshll.u32 [#allocation15], 4
      %s99 = int_to_ptr.vmem [resolvable:$true] %s98
      %104 = dma.hbm_to_vmem [thread:$0]  %s9, 6144, %s99, [#allocation16], 384, 384, 24
    $region41: #{tpu_custom_call.1} parent=1 // pred_fallthru
      _
    // Predicated region
    $region42: #{tpu_custom_call.1} parent=1 // pred_check
      _
    $region43: #{tpu_custom_call.1} parent=1 // pred_check_branch
      %106 = sbr.rel (0) target = $region45
    $region44: #{tpu_custom_call.1} parent=1 // pred_region
      _
    $region45: #{tpu_custom_call.1} parent=1 // pred_fallthru
      _
    // Predicated region
    $region46: #{tpu_custom_call.1} parent=1 // pred_check
      _
    $region47: #{tpu_custom_call.1} parent=1 // pred_check_branch
      %108 = sbr.rel (0) target = $region49
    $region48: #{tpu_custom_call.1} parent=1 // pred_region
      %s110 = ssub.s32 2048, 2048
      %111 = vsyncadd [#allocation16], %s110
      %s112 = sshll.u32 [#allocation17], 4
      %s113 = int_to_ptr.vmem [resolvable:$true] %s112
      %118 = dma.hbm_to_vmem [thread:$0]  %s11, 2048, %s113, [#allocation16], 128, 128, 8
    $region49: #{tpu_custom_call.1} parent=1 // pred_fallthru
      _
    // Predicated region
    $region50: #{tpu_custom_call.1} parent=1 // pred_check
      _
    $region51: #{tpu_custom_call.1} parent=1 // pred_check_branch
      %120 = sbr.rel (0) target = $region53
    $region52: #{tpu_custom_call.1} parent=1 // pred_region
      _
    $region53: #{tpu_custom_call.1} parent=1 // pred_fallthru
      _
    // Predicated region
    $region54: #{tpu_custom_call.1} parent=1 // pred_check
      _
    $region55: #{tpu_custom_call.1} parent=1 // pred_check_branch
      %122 = sbr.rel (0) target = $region57
    $region56: #{tpu_custom_call.1} parent=1 // pred_region
      _
    $region57: #{tpu_custom_call.1} parent=1 // pred_fallthru
      _
    // Predicated region
    $region58: #{tpu_custom_call.1} parent=1 // pred_check
      _
    $region59: #{tpu_custom_call.1} parent=1 // pred_check_branch
      %124 = sbr.rel (0) target = $region61
    $region60: #{tpu_custom_call.1} parent=1 // pred_region
      _
    $region61: #{tpu_custom_call.1} parent=1 // pred_fallthru
      _
    // Predicated region
    $region62: #{tpu_custom_call.1} parent=1 // pred_check
      _
    $region63: #{tpu_custom_call.1} parent=1 // pred_check_branch
      %126 = sbr.rel (0) target = $region65
    $region64: #{tpu_custom_call.1} parent=1 // pred_region
      %127 = dma.done [#allocation7], 512
    $region65: #{tpu_custom_call.1} parent=1 // pred_fallthru
      _
    // Predicated region
    $region66: #{tpu_custom_call.1} parent=1 // pred_check
      _
    $region67: #{tpu_custom_call.1} parent=1 // pred_check_branch
      %129 = sbr.rel (0) target = $region69
    $region68: #{tpu_custom_call.1} parent=1 // pred_region
      %130 = dma.done [#allocation10], 9600
    $region69: #{tpu_custom_call.1} parent=1 // pred_fallthru
      _
    // Predicated region
    $region70: #{tpu_custom_call.1} parent=1 // pred_check
      _
    $region71: #{tpu_custom_call.1} parent=1 // pred_check_branch
      %132 = sbr.rel (0) target = $region73
    $region72: #{tpu_custom_call.1} parent=1 // pred_region
      %133 = dma.done [#allocation10], 6144
    $region73: #{tpu_custom_call.1} parent=1 // pred_fallthru
      _
    // Predicated region
    $region74: #{tpu_custom_call.1} parent=1 // pred_check
      _
    $region75: #{tpu_custom_call.1} parent=1 // pred_check_branch
      %135 = sbr.rel (0) target = $region77
    $region76: #{tpu_custom_call.1} parent=1 // pred_region
      %136 = dma.done [#allocation13], 6144
    $region77: #{tpu_custom_call.1} parent=1 // pred_fallthru
      _
    // Predicated region
    $region78: #{tpu_custom_call.1} parent=1 // pred_check
      _
    $region79: #{tpu_custom_call.1} parent=1 // pred_check_branch
      %138 = sbr.rel (0) target = $region81
    $region80: #{tpu_custom_call.1} parent=1 // pred_region
      %139 = dma.done [#allocation13], 6144
    $region81: #{tpu_custom_call.1} parent=1 // pred_fallthru
      _
    // Predicated region
    $region82: #{tpu_custom_call.1} parent=1 // pred_check
      _
    $region83: #{tpu_custom_call.1} parent=1 // pred_check_branch
      %141 = sbr.rel (0) target = $region85
    $region84: #{tpu_custom_call.1} parent=1 // pred_region
      %142 = dma.done [#allocation16], 6144
    $region85: #{tpu_custom_call.1} parent=1 // pred_fallthru
      _
    // Predicated region
    $region86: #{tpu_custom_call.1} parent=1 // pred_check
      _
    $region87: #{tpu_custom_call.1} parent=1 // pred_check_branch
      %144 = sbr.rel (0) target = $region89
    $region88: #{tpu_custom_call.1} parent=1 // pred_region
      %145 = dma.done [#allocation16], 2048
    $region89: #{tpu_custom_call.1} parent=1 // pred_fallthru
      _
    %v146 = vld [vmem:[#allocation6] sm:$0xff]
    %v147 = vld [vmem:[#allocation6 + $0x8] sm:$0xff]
    %v148 = vld [vmem:[#allocation6 + $0x10] sm:$0xff]
    %v149 = vld [vmem:[#allocation6 + $0x18] sm:$0xff]
    %v150 = vcombine.high %v146, 0.0
    %v152 = vunpack.c.l.s4 1983009808
    %v153 = vunpack.c.0.s8 %v152
    %v154 = vlaneseq
    %v155 = vshrl.u32 %v154, 7
    %v156 = vsub.s32 %v153, %v155
    %v157 = vrot.slane %v146, %v156
    %v159 = vunpack.c.l.s4 1983009808
    %v160 = vunpack.c.0.s8 %v159
    %v161 = vlaneseq
    %v162 = vshrl.u32 %v161, 7
    %v163 = vsub.s32 %v160, %v162
    %v164 = vrot.slane %v150, %v163
    %v165 = vcombine.high %v148, 0.0
    %v167 = vunpack.c.l.s4 1983009808
    %v168 = vunpack.c.0.s8 %v167
    %v169 = vlaneseq
    %v170 = vshrl.u32 %v169, 7
    %v171 = vsub.s32 %v168, %v170
    %v172 = vrot.slane %v148, %v171
    %v174 = vunpack.c.l.s4 1983009808
    %v175 = vunpack.c.0.s8 %v174
    %v176 = vlaneseq
    %v177 = vshrl.u32 %v176, 7
    %v178 = vsub.s32 %v175, %v177
    %v179 = vrot.slane %v165, %v178
    %v180 = vcombine.low %v157, %v172
    %v181 = vcombine.high %v157, %v172
    %v183 = vunpack.c.l.s4 1934713408
    %v184 = vunpack.c.0.s8 %v183
    %v185 = vlaneseq
    %v186 = vshrl.u32 %v185, 7
    %v187 = vsub.s32 %v184, %v186
    %v188 = vrot.slane %v180, %v187
    %v190 = vunpack.c.l.s4 1934713408
    %v191 = vunpack.c.0.s8 %v190
    %v192 = vlaneseq
    %v193 = vshrl.u32 %v192, 7
    %v194 = vsub.s32 %v191, %v193
    %v195 = vrot.slane %v181, %v194
    %v196 = vcombine.low %v164, %v179
    %v197 = vcombine.high %v164, %v179
    %v199 = vunpack.c.l.s4 1934713408
    %v200 = vunpack.c.0.s8 %v199
    %v201 = vlaneseq
    %v202 = vshrl.u32 %v201, 7
    %v203 = vsub.s32 %v200, %v202
    %v204 = vrot.slane %v196, %v203
    %v206 = vunpack.c.l.s4 1934713408
    %v207 = vunpack.c.0.s8 %v206
    %v208 = vlaneseq
    %v209 = vshrl.u32 %v208, 7
    %v210 = vsub.s32 %v207, %v209
    %v211 = vrot.slane %v197, %v210
    %v212 = vcombine.high %v188, 0.0
    %v213 = vcombine.high %v195, 0.0
    %v214 = vcombine.high %v204, 0.0
    %v215 = vcombine.high %v211, 0.0
    %v216 = vcombine.high %v147, 0.0
    %v218 = vunpack.c.l.s4 1983009808
    %v219 = vunpack.c.0.s8 %v218
    %v220 = vlaneseq
    %v221 = vshrl.u32 %v220, 7
    %v222 = vsub.s32 %v219, %v221
    %v223 = vrot.slane %v147, %v222
    %v225 = vunpack.c.l.s4 1983009808
    %v226 = vunpack.c.0.s8 %v225
    %v227 = vlaneseq
    %v228 = vshrl.u32 %v227, 7
    %v229 = vsub.s32 %v226, %v228
    %v230 = vrot.slane %v216, %v229
    %v231 = vcombine.high %v149, 0.0
    %v233 = vunpack.c.l.s4 1983009808
    %v234 = vunpack.c.0.s8 %v233
    %v235 = vlaneseq
    %v236 = vshrl.u32 %v235, 7
    %v237 = vsub.s32 %v234, %v236
    %v238 = vrot.slane %v149, %v237
    %v240 = vunpack.c.l.s4 1983009808
    %v241 = vunpack.c.0.s8 %v240
    %v242 = vlaneseq
    %v243 = vshrl.u32 %v242, 7
    %v244 = vsub.s32 %v241, %v243
    %v245 = vrot.slane %v231, %v244
    %v246 = vcombine.low %v223, %v238
    %v247 = vcombine.high %v223, %v238
    %v249 = vunpack.c.l.s4 1934713408
    %v250 = vunpack.c.0.s8 %v249
    %v251 = vlaneseq
    %v252 = vshrl.u32 %v251, 7
    %v253 = vsub.s32 %v250, %v252
    %v254 = vrot.slane %v246, %v253
    %v256 = vunpack.c.l.s4 1934713408
    %v257 = vunpack.c.0.s8 %v256
    %v258 = vlaneseq
    %v259 = vshrl.u32 %v258, 7
    %v260 = vsub.s32 %v257, %v259
    %v261 = vrot.slane %v247, %v260
    %v262 = vcombine.low %v230, %v245
    %v263 = vcombine.high %v230, %v245
    %v265 = vunpack.c.l.s4 1934713408
    %v266 = vunpack.c.0.s8 %v265
    %v267 = vlaneseq
    %v268 = vshrl.u32 %v267, 7
    %v269 = vsub.s32 %v266, %v268
    %v270 = vrot.slane %v262, %v269
    %v272 = vunpack.c.l.s4 1934713408
    %v273 = vunpack.c.0.s8 %v272
    %v274 = vlaneseq
    %v275 = vshrl.u32 %v274, 7
    %v276 = vsub.s32 %v273, %v275
    %v277 = vrot.slane %v263, %v276
    %v278 = vcombine.high %v254, 0.0
    %v279 = vcombine.high %v261, 0.0
    %v280 = vcombine.high %v270, 0.0
    %v281 = vcombine.high %v277, 0.0
    %v298 = vcombine.low %v188, %v254
    %v300 = vunpack.c.l.s4 1983009808
    %v301 = vunpack.c.0.s8 %v300
    %v302 = vlaneseq
    %v303 = vshrl.u32 %v302, 7
    %v304 = vsub.s32 %v301, %v303
    %v305 = vrot.slane %v298, %v304
    %v306 = vcombine.low %v212, %v278
    %v308 = vunpack.c.l.s4 1983009808
    %v309 = vunpack.c.0.s8 %v308
    %v310 = vlaneseq
    %v311 = vshrl.u32 %v310, 7
    %v312 = vsub.s32 %v309, %v311
    %v313 = vrot.slane %v306, %v312
    %v314 = vcombine.low %v195, %v261
    %v316 = vunpack.c.l.s4 1983009808
    %v317 = vunpack.c.0.s8 %v316
    %v318 = vlaneseq
    %v319 = vshrl.u32 %v318, 7
    %v320 = vsub.s32 %v317, %v319
    %v321 = vrot.slane %v314, %v320
    %v322 = vcombine.low %v213, %v279
    %v324 = vunpack.c.l.s4 1983009808
    %v325 = vunpack.c.0.s8 %v324
    %v326 = vlaneseq
    %v327 = vshrl.u32 %v326, 7
    %v328 = vsub.s32 %v325, %v327
    %v329 = vrot.slane %v322, %v328
    %v330 = vcombine.low %v204, %v270
    %v332 = vunpack.c.l.s4 1983009808
    %v333 = vunpack.c.0.s8 %v332
    %v334 = vlaneseq
    %v335 = vshrl.u32 %v334, 7
    %v336 = vsub.s32 %v333, %v335
    %v337 = vrot.slane %v330, %v336
    %v338 = vcombine.low %v214, %v280
    %v340 = vunpack.c.l.s4 1983009808
    %v341 = vunpack.c.0.s8 %v340
    %v342 = vlaneseq
    %v343 = vshrl.u32 %v342, 7
    %v344 = vsub.s32 %v341, %v343
    %v345 = vrot.slane %v338, %v344
    %v346 = vcombine.low %v211, %v277
    %v348 = vunpack.c.l.s4 1983009808
    %v349 = vunpack.c.0.s8 %v348
    %v350 = vlaneseq
    %v351 = vshrl.u32 %v350, 7
    %v352 = vsub.s32 %v349, %v351
    %v353 = vrot.slane %v346, %v352
    %v354 = vcombine.low %v215, %v281
    %v356 = vunpack.c.l.s4 1983009808
    %v357 = vunpack.c.0.s8 %v356
    %v358 = vlaneseq
    %v359 = vshrl.u32 %v358, 7
    %v360 = vsub.s32 %v357, %v359
    %v361 = vrot.slane %v354, %v360
    %v362 = vld [vmem:[#allocation9] sm:$0xff]
    %v363 = vld [vmem:[#allocation9 + $0x8] sm:$0xff]
    %v364 = vld [vmem:[#allocation9 + $0x10] sm:$0xff]
    %v365 = vld [vmem:[#allocation9 + $0x18] sm:$0xff]
    %v366 = vld [vmem:[#allocation9 + $0x20] sm:$0xff]
    %v367 = vld [vmem:[#allocation9 + $0x28] sm:$0xff]
    %v368 = vld [vmem:[#allocation9 + $0x30] sm:$0xff]
    %v369 = vld [vmem:[#allocation9 + $0x38] sm:$0xff]
    %v370 = vld [vmem:[#allocation9 + $0x40] sm:$0xff]
    %v371 = vld [vmem:[#allocation9 + $0x48] sm:$0xff]
    %v372 = vld [vmem:[#allocation9 + $0x50] sm:$0xff]
    %v373 = vld [vmem:[#allocation9 + $0x58] sm:$0xff]
    %v374 = vld [vmem:[#allocation9 + $0x60] sm:$0xff]
    %v375 = vld [vmem:[#allocation9 + $0x68] sm:$0xff]
    %v376 = vld [vmem:[#allocation9 + $0x70] sm:$0xff]
    %v377 = vld [vmem:[#allocation9 + $0x78] sm:$0xff]
    %v378 = vld [vmem:[#allocation9 + $0x80] sm:$0xff]
    %v379 = vld [vmem:[#allocation9 + $0x88] sm:$0xff]
    %v380 = vld [vmem:[#allocation9 + $0x90] sm:$0xff]
    %v381 = vld [vmem:[#allocation9 + $0x98] sm:$0xff]
    %v382 = vld [vmem:[#allocation9 + $0xa0] sm:$0xff]
    %v383 = vld [vmem:[#allocation9 + $0xa8] sm:$0xff]
    %v384 = vld [vmem:[#allocation9 + $0xb0] sm:$0xff]
    %v385 = vld [vmem:[#allocation9 + $0xb8] sm:$0xff]
    %v386 = vld [vmem:[#allocation9 + $0xc0] sm:$0xff]
    %v387 = vld [vmem:[#allocation9 + $0xc8] sm:$0xff]
    %v388 = vld [vmem:[#allocation9 + $0xd0] sm:$0xff]
    %v389 = vld [vmem:[#allocation9 + $0xd8] sm:$0xff]
    %v390 = vld [vmem:[#allocation9 + $0xe0] sm:$0xff]
    %v391 = vld [vmem:[#allocation9 + $0xe8] sm:$0xff]
    %v392 = vld [vmem:[#allocation9 + $0xf0] sm:$0xff]
    %v393 = vld [vmem:[#allocation9 + $0xf8] sm:$0xff]
    %v394 = vld [vmem:[#allocation9 + $0x100] sm:$0xff]
    %v395 = vld [vmem:[#allocation9 + $0x108] sm:$0xff]
    %v396 = vld [vmem:[#allocation9 + $0x110] sm:$0xff]
    %v397 = vld [vmem:[#allocation9 + $0x118] sm:$0xff]
    %v398 = vld [vmem:[#allocation9 + $0x120] sm:$0xff]
    %v399 = vld [vmem:[#allocation9 + $0x128] sm:$0xff]
    %v400 = vld [vmem:[#allocation9 + $0x130] sm:$0xff]
    %v401 = vld [vmem:[#allocation9 + $0x138] sm:$0xff]
    %v402 = vld [vmem:[#allocation9 + $0x140] sm:$0xff]
    %v403 = vld [vmem:[#allocation9 + $0x148] sm:$0xff]
    %v404 = vld [vmem:[#allocation9 + $0x150] sm:$0xff]
    %v405 = vld [vmem:[#allocation9 + $0x158] sm:$0xff]
    %v406 = vld [vmem:[#allocation9 + $0x160] sm:$0xff]
    %v407 = vld [vmem:[#allocation9 + $0x168] sm:$0xff]
    %v408 = vld [vmem:[#allocation9 + $0x170] sm:$0xff]
    %v409 = vld [vmem:[#allocation9 + $0x178] sm:$0xff]
    %v410 = vld [vmem:[#allocation9 + $0x180] sm:$0xff]
    %v411 = vld [vmem:[#allocation9 + $0x188] sm:$0xff]
    %v412 = vld [vmem:[#allocation9 + $0x190] sm:$0xff]
    %v413 = vld [vmem:[#allocation9 + $0x198] sm:$0xff]
    %v414 = vld [vmem:[#allocation9 + $0x1a0] sm:$0xff]
    %v415 = vld [vmem:[#allocation9 + $0x1a8] sm:$0xff]
    %v416 = vld [vmem:[#allocation9 + $0x1b0] sm:$0xff]
    %v417 = vld [vmem:[#allocation9 + $0x1b8] sm:$0xff]
    %v418 = vld [vmem:[#allocation9 + $0x1c0] sm:$0xff]
    %v419 = vld [vmem:[#allocation9 + $0x1c8] sm:$0xff]
    %v420 = vld [vmem:[#allocation9 + $0x1d0] sm:$0xff]
    %v421 = vld [vmem:[#allocation9 + $0x1d8] sm:$0xff]
    %v422 = vld [vmem:[#allocation9 + $0x1e0] sm:$0xff]
    %v423 = vld [vmem:[#allocation9 + $0x1e8] sm:$0xff]
    %v424 = vld [vmem:[#allocation9 + $0x1f0] sm:$0xff]
    %v425 = vld [vmem:[#allocation9 + $0x1f8] sm:$0xff]
    %v426 = vld [vmem:[#allocation9 + $0x200] sm:$0xff]
    %v427 = vld [vmem:[#allocation9 + $0x208] sm:$0xff]
    %v428 = vld [vmem:[#allocation9 + $0x210] sm:$0xff]
    %v429 = vld [vmem:[#allocation9 + $0x218] sm:$0xff]
    %v430 = vld [vmem:[#allocation9 + $0x220] sm:$0xff]
    %v431 = vld [vmem:[#allocation9 + $0x228] sm:$0xff]
    %v432 = vld [vmem:[#allocation9 + $0x230] sm:$0xff]
    %v433 = vld [vmem:[#allocation9 + $0x238] sm:$0xff]
    %v434 = vld [vmem:[#allocation9 + $0x240] sm:$0xff]
    %v435 = vld [vmem:[#allocation9 + $0x248] sm:$0xff]
    %v436 = vld [vmem:[#allocation9 + $0x250] sm:$0xff]
    %v437 = vld [vmem:[%s3] sm:$0x7]
    %v439 = vlaneseq
    %v440 = vshrl.u32 %v439, 7
    %v441 = vsub.s32 0, %v440
    %v442 = vrot.slane %v437, %v441
    %v443 = vlaneseq
    %v444 = vshrl.u32 %v443, 7
    %v445 = vsub.s32 1, %v444
    %v446 = vrot.slane %v437, %v445
    %v447 = vlaneseq
    %v448 = vshrl.u32 %v447, 7
    %v449 = vsub.s32 2, %v448
    %v450 = vrot.slane %v437, %v449
    %v454 = vcombine.low %v305, %v313
    %v455 = vcombine.low %v321, %v329
    %v457 = vunpack.c.l.s4 1983009808
    %v458 = vunpack.c.0.s8 %v457
    %v459 = vlaneseq
    %v460 = vshrl.u32 %v459, 7
    %v461 = vsub.s32 %v458, %v460
    %v462 = vrot.slane %v454, %v461
    %v464 = vunpack.c.l.s4 1983009808
    %v465 = vunpack.c.0.s8 %v464
    %v466 = vlaneseq
    %v467 = vshrl.u32 %v466, 7
    %v468 = vsub.s32 %v465, %v467
    %v469 = vrot.slane %v455, %v468
    %v470 = vcombine.low %v462, %v469
    %v471 = vcombine.high %v462, %v469
    %v472 = vcombine.low %v337, %v345
    %v473 = vcombine.low %v353, %v361
    %v475 = vunpack.c.l.s4 1983009808
    %v476 = vunpack.c.0.s8 %v475
    %v477 = vlaneseq
    %v478 = vshrl.u32 %v477, 7
    %v479 = vsub.s32 %v476, %v478
    %v480 = vrot.slane %v472, %v479
    %v482 = vunpack.c.l.s4 1983009808
    %v483 = vunpack.c.0.s8 %v482
    %v484 = vlaneseq
    %v485 = vshrl.u32 %v484, 7
    %v486 = vsub.s32 %v483, %v485
    %v487 = vrot.slane %v473, %v486
    %v488 = vcombine.low %v480, %v487
    %v489 = vcombine.high %v480, %v487
    %vm492 = vcmask 588800
    %v493 = vsel %vm492, %v471, 0
    %v495 = vsel %vm492, %v489, 0
    %497 = vmatprep.subr.mxu0 %v363
    %498 = vmatpush1.msra.mxu0 %v362
    %499 = vmatprep.subr.mxu0 %v366
    %500 = vmatpush1.msra.mxu0 %v365
    %501 = vmatprep.subr.mxu0 %v369
    %502 = vmatpush1.msra.mxu0 %v368
    %503 = vmatprep.subr.mxu0 %v372
    %504 = vmatpush1.msra.mxu0 %v371
    %505 = vmatprep.subr.mxu0 %v375
    %506 = vmatpush1.msra.mxu0 %v374
    %507 = vmatprep.subr.mxu0 %v378
    %508 = vmatpush1.msra.mxu0 %v377
    %509 = vmatprep.subr.mxu0 %v381
    %510 = vmatpush1.msra.mxu0 %v380
    %511 = vmatprep.subr.mxu0 %v384
    %512 = vmatpush1.msra.mxu0 %v383
    %513 = vmatprep.subr.mxu0 %v387
    %514 = vmatpush1.msra.mxu0 %v386
    %515 = vmatprep.subr.mxu0 %v390
    %516 = vmatpush1.msra.mxu0 %v389
    %517 = vmatprep.subr.mxu0 %v393
    %518 = vmatpush1.msra.mxu0 %v392
    %519 = vmatprep.subr.mxu0 %v396
    %520 = vmatpush1.msra.mxu0 %v395
    %521 = vmatprep.subr.mxu0 %v399
    %522 = vmatpush1.msra.mxu0 %v398
    %523 = vmatprep.subr.mxu0 %v402
    %524 = vmatpush1.msra.mxu0 %v401
    %525 = vmatprep.subr.mxu0 %v405
    %526 = vmatpush1.msra.mxu0 %v404
    %527 = vmatprep.subr.mxu0 %v408
    %528 = vmatpush1.msra.mxu0 %v407
    %529 = vmatprep.subr.mxu0 %v411
    %530 = vmatpush1.msra.mxu0 %v410
    %531 = vmatprep.subr.mxu0 %v414
    %532 = vmatpush1.msra.mxu0 %v413
    %533 = vmatprep.subr.mxu0 %v417
    %534 = vmatpush1.msra.mxu0 %v416
    %535 = vmatprep.subr.mxu0 %v420
    %536 = vmatpush1.msra.mxu0 %v419
    %537 = vmatprep.subr.mxu0 %v423
    %538 = vmatpush1.msra.mxu0 %v422
    %539 = vmatprep.subr.mxu0 %v426
    %540 = vmatpush1.msra.mxu0 %v425
    %541 = vmatprep.subr.mxu0 %v429
    %542 = vmatpush1.msra.mxu0 %v428
    %543 = vmatprep.subr.mxu0 %v432
    %544 = vmatpush1.msra.mxu0 %v431
    %545 = vmatprep.subr.mxu0 %v435
    %546 = vmatpush1.msra.mxu0 %v434
    %547 = vmatprep.subr.mxu0 0.0
    %548 = vmatpush1.msra.mxu0 0.0
    %549 = vmatprep.subr.mxu0 0.0
    %550 = vmatpush1.msra.mxu0 0.0
    %551 = vmatprep.subr.mxu0 0.0
    %552 = vmatpush1.msra.mxu0 0.0
    %553 = vmatprep.subr.mxu0 0.0
    %554 = vmatpush1.msra.mxu0 0.0
    %555 = vmatprep.subr.mxu0 0.0
    %556 = vmatpush1.msra.mxu0 0.0
    %557 = vmatprep.subr.mxu0 0.0
    %558 = vmatpush1.msra.mxu0 0.0
    %559 = vmatprep.subr.mxu0 0.0
    %560 = vmatpush1.msra.mxu0 0.0
    %561 = vmatprep.mubr.f32.mxu0 %v493
    %562 = vmatmul.mubr.f32.gmra.mrb[0].mxu0 %v470
    %v563 = vpop.f32.mrb[0].mxu0
    %v564 = vadd.f32 %v442, %v563
    %v565 = vpop.f32.mrb[0].mxu0
    %v566 = vadd.f32 %v446, %v565
    %567 = vmatprep.mubr.f32.mxu0 %v495
    %568 = vmatmul.mubr.f32.gmra.mrb[0].mxu0 %v488
    %v569 = vpop.f32.mrb[0].mxu0
    %v570 = vadd.f32 %v442, %v569
    %v571 = vpop.f32.mrb[0].mxu0
    %v572 = vadd.f32 %v446, %v571
    %573 = vdwg.mxu0
    %574 = vmatprep.subr.mxu0 0.0
    %575 = vmatpush1.msra.mxu0 %v364
    %576 = vmatprep.subr.mxu0 0.0
    %577 = vmatpush1.msra.mxu0 %v367
    %578 = vmatprep.subr.mxu0 0.0
    %579 = vmatpush1.msra.mxu0 %v370
    %580 = vmatprep.subr.mxu0 0.0
    %581 = vmatpush1.msra.mxu0 %v373
    %582 = vmatprep.subr.mxu0 0.0
    %583 = vmatpush1.msra.mxu0 %v376
    %584 = vmatprep.subr.mxu0 0.0
    %585 = vmatpush1.msra.mxu0 %v379
    %586 = vmatprep.subr.mxu0 0.0
    %587 = vmatpush1.msra.mxu0 %v382
    %588 = vmatprep.subr.mxu0 0.0
    %589 = vmatpush1.msra.mxu0 %v385
    %590 = vmatprep.subr.mxu0 0.0
    %591 = vmatpush1.msra.mxu0 %v388
    %592 = vmatprep.subr.mxu0 0.0
    %593 = vmatpush1.msra.mxu0 %v391
    %594 = vmatprep.subr.mxu0 0.0
    %595 = vmatpush1.msra.mxu0 %v394
    %596 = vmatprep.subr.mxu0 0.0
    %597 = vmatpush1.msra.mxu0 %v397
    %598 = vmatprep.subr.mxu0 0.0
    %599 = vmatpush1.msra.mxu0 %v400
    %600 = vmatprep.subr.mxu0 0.0
    %601 = vmatpush1.msra.mxu0 %v403
    %602 = vmatprep.subr.mxu0 0.0
    %603 = vmatpush1.msra.mxu0 %v406
    %604 = vmatprep.subr.mxu0 0.0
    %605 = vmatpush1.msra.mxu0 %v409
    %606 = vmatprep.subr.mxu0 0.0
    %607 = vmatpush1.msra.mxu0 %v412
    %608 = vmatprep.subr.mxu0 0.0
    %609 = vmatpush1.msra.mxu0 %v415
    %610 = vmatprep.subr.mxu0 0.0
    %611 = vmatpush1.msra.mxu0 %v418
    %612 = vmatprep.subr.mxu0 0.0
    %613 = vmatpush1.msra.mxu0 %v421
    %614 = vmatprep.subr.mxu0 0.0
    %615 = vmatpush1.msra.mxu0 %v424
    %616 = vmatprep.subr.mxu0 0.0
    %617 = vmatpush1.msra.mxu0 %v427
    %618 = vmatprep.subr.mxu0 0.0
    %619 = vmatpush1.msra.mxu0 %v430
    %620 = vmatprep.subr.mxu0 0.0
    %621 = vmatpush1.msra.mxu0 %v433
    %622 = vmatprep.subr.mxu0 0.0
    %623 = vmatpush1.msra.mxu0 %v436
    %624 = vmatprep.subr.mxu0 0.0
    %625 = vmatpush1.msra.mxu0 0.0
    %626 = vmatprep.subr.mxu0 0.0
    %627 = vmatpush1.msra.mxu0 0.0
    %628 = vmatprep.subr.mxu0 0.0
    %629 = vmatpush1.msra.mxu0 0.0
    %630 = vmatprep.subr.mxu0 0.0
    %631 = vmatpush1.msra.mxu0 0.0
    %632 = vmatprep.subr.mxu0 0.0
    %633 = vmatpush1.msra.mxu0 0.0
    %634 = vmatprep.subr.mxu0 0.0
    %635 = vmatpush1.msra.mxu0 0.0
    %636 = vmatprep.subr.mxu0 0.0
    %637 = vmatpush1.msra.mxu0 0.0
    %638 = vmatprep.mubr.f32.mxu0 %v493
    %639 = vmatmul.mubr.f32.gmra.mrb[0].mxu0 %v470
    %v640 = vpop.f32.mrb[0].mxu0
    %v641 = vadd.f32 %v450, %v640
    %v642 = vpop.f32.mrb[0].mxu0
    %643 = vmatprep.mubr.f32.mxu0 %v495
    %644 = vmatmul.mubr.f32.gmra.mrb[0].mxu0 %v488
    %v645 = vpop.f32.mrb[0].mxu0
    %v646 = vadd.f32 %v450, %v645
    %v647 = vpop.f32.mrb[0].mxu0
    %648 = vdwg.mxu0
    %v655 = vcombine.low %v564, %v566
    %v656 = vcombine.high %v564, %v566
    %v657 = vcombine.high %v641, %v641
    %v659 = vunpack.c.l.s4 1983009808
    %v660 = vunpack.c.0.s8 %v659
    %v661 = vlaneseq
    %v662 = vshrl.u32 %v661, 7
    %v663 = vsub.s32 %v660, %v662
    %v664 = vrot.slane %v655, %v663
    %v666 = vunpack.c.l.s4 1983009808
    %v667 = vunpack.c.0.s8 %v666
    %v668 = vlaneseq
    %v669 = vshrl.u32 %v668, 7
    %v670 = vsub.s32 %v667, %v669
    %v671 = vrot.slane %v656, %v670
    %v673 = vunpack.c.l.s4 1983009808
    %v674 = vunpack.c.0.s8 %v673
    %v675 = vlaneseq
    %v676 = vshrl.u32 %v675, 7
    %v677 = vsub.s32 %v674, %v676
    %v678 = vrot.slane %v641, %v677
    %v680 = vunpack.c.l.s4 1983009808
    %v681 = vunpack.c.0.s8 %v680
    %v682 = vlaneseq
    %v683 = vshrl.u32 %v682, 7
    %v684 = vsub.s32 %v681, %v683
    %v685 = vrot.slane %v657, %v684
    %v686 = vcombine.low %v664, %v678
    %v687 = vcombine.high %v664, %v678
    %v688 = vcombine.low %v671, %v685
    %v689 = vcombine.high %v671, %v685
    %v690 = vcombine.low %v570, %v572
    %v691 = vcombine.high %v570, %v572
    %v692 = vcombine.high %v646, %v646
    %v694 = vunpack.c.l.s4 1983009808
    %v695 = vunpack.c.0.s8 %v694
    %v696 = vlaneseq
    %v697 = vshrl.u32 %v696, 7
    %v698 = vsub.s32 %v695, %v697
    %v699 = vrot.slane %v690, %v698
    %v701 = vunpack.c.l.s4 1983009808
    %v702 = vunpack.c.0.s8 %v701
    %v703 = vlaneseq
    %v704 = vshrl.u32 %v703, 7
    %v705 = vsub.s32 %v702, %v704
    %v706 = vrot.slane %v691, %v705
    %v708 = vunpack.c.l.s4 1983009808
    %v709 = vunpack.c.0.s8 %v708
    %v710 = vlaneseq
    %v711 = vshrl.u32 %v710, 7
    %v712 = vsub.s32 %v709, %v711
    %v713 = vrot.slane %v646, %v712
    %v715 = vunpack.c.l.s4 1983009808
    %v716 = vunpack.c.0.s8 %v715
    %v717 = vlaneseq
    %v718 = vshrl.u32 %v717, 7
    %v719 = vsub.s32 %v716, %v718
    %v720 = vrot.slane %v692, %v719
    %v721 = vcombine.low %v699, %v713
    %v722 = vcombine.high %v699, %v713
    %v723 = vcombine.low %v706, %v720
    %v724 = vcombine.high %v706, %v720
    %733 = vst [vmem:[#allocation2] sm:$0x3f] %v686
    %734 = vst [vmem:[#allocation2 + $0x6] sm:$0x3f] %v687
    %735 = vst [vmem:[#allocation2 + $0xc] sm:$0x3f] %v688
    %736 = vst [vmem:[#allocation2 + $0x12] sm:$0x3f] %v689
    %737 = vst [vmem:[#allocation2 + $0x18] sm:$0x3f] %v721
    %738 = vst [vmem:[#allocation2 + $0x1e] sm:$0x3f] %v722
    %739 = vst [vmem:[#allocation2 + $0x24] sm:$0x3f] %v723
    %740 = vst [vmem:[#allocation2 + $0x2a] sm:$0x3f] %v724
    loop: start=0, step=1, limit=8
    $region90: #{tpu_custom_call.1} parent=1 // loop_pre_header
      _
    $region91: #{tpu_custom_call.1} parent=1 // loop_header
      %s742 = sphi 0, %s746
      %p743 = scmp.ge.s32.totalorder %s742, 8
      %v747 = vphi 0.0, %v983
    $region92: #{tpu_custom_call.1} parent=1 // loop_header_branch
      %745 = sbr.rel (%p743) target = $region96
    $region93: #{tpu_custom_call.1} parent=1 // loop_body
      %v748 = vld [vmem:[#allocation11] sm:$0xff]
      %v749 = vld [vmem:[#allocation11 + $0x8] sm:$0xff]
      %v750 = vld [vmem:[#allocation11 + $0x10] sm:$0xff]
      %v751 = vld [vmem:[#allocation11 + $0x18] sm:$0xff]
      %v752 = vld [vmem:[#allocation11 + $0x20] sm:$0xff]
      %v753 = vld [vmem:[#allocation11 + $0x28] sm:$0xff]
      %v754 = vld [vmem:[#allocation11 + $0x30] sm:$0xff]
      %v755 = vld [vmem:[#allocation11 + $0x38] sm:$0xff]
      %v756 = vld [vmem:[#allocation11 + $0x40] sm:$0xff]
      %v757 = vld [vmem:[#allocation11 + $0x48] sm:$0xff]
      %v758 = vld [vmem:[#allocation11 + $0x50] sm:$0xff]
      %v759 = vld [vmem:[#allocation11 + $0x58] sm:$0xff]
      %v760 = vld [vmem:[#allocation11 + $0x60] sm:$0xff]
      %v761 = vld [vmem:[#allocation11 + $0x68] sm:$0xff]
      %v762 = vld [vmem:[#allocation11 + $0x70] sm:$0xff]
      %v763 = vld [vmem:[#allocation11 + $0x78] sm:$0xff]
      %v764 = vld [vmem:[#allocation11 + $0x80] sm:$0xff]
      %v765 = vld [vmem:[#allocation11 + $0x88] sm:$0xff]
      %v766 = vld [vmem:[#allocation11 + $0x90] sm:$0xff]
      %v767 = vld [vmem:[#allocation11 + $0x98] sm:$0xff]
      %v768 = vld [vmem:[#allocation11 + $0xa0] sm:$0xff]
      %v769 = vld [vmem:[#allocation11 + $0xa8] sm:$0xff]
      %v770 = vld [vmem:[#allocation11 + $0xb0] sm:$0xff]
      %v771 = vld [vmem:[#allocation11 + $0xb8] sm:$0xff]
      %v772 = vld [vmem:[#allocation11 + $0xc0] sm:$0xff]
      %v773 = vld [vmem:[#allocation11 + $0xc8] sm:$0xff]
      %v774 = vld [vmem:[#allocation11 + $0xd0] sm:$0xff]
      %v775 = vld [vmem:[#allocation11 + $0xd8] sm:$0xff]
      %v776 = vld [vmem:[#allocation11 + $0xe0] sm:$0xff]
      %v777 = vld [vmem:[#allocation11 + $0xe8] sm:$0xff]
      %v778 = vld [vmem:[#allocation11 + $0xf0] sm:$0xff]
      %v779 = vld [vmem:[#allocation11 + $0xf8] sm:$0xff]
      %v780 = vld [vmem:[#allocation11 + $0x100] sm:$0xff]
      %v781 = vld [vmem:[#allocation11 + $0x108] sm:$0xff]
      %v782 = vld [vmem:[#allocation11 + $0x110] sm:$0xff]
      %v783 = vld [vmem:[#allocation11 + $0x118] sm:$0xff]
      %v784 = vld [vmem:[#allocation11 + $0x120] sm:$0xff]
      %v785 = vld [vmem:[#allocation11 + $0x128] sm:$0xff]
      %v786 = vld [vmem:[#allocation11 + $0x130] sm:$0xff]
      %v787 = vld [vmem:[#allocation11 + $0x138] sm:$0xff]
      %v788 = vld [vmem:[#allocation11 + $0x140] sm:$0xff]
      %v789 = vld [vmem:[#allocation11 + $0x148] sm:$0xff]
      %v790 = vld [vmem:[#allocation11 + $0x150] sm:$0xff]
      %v791 = vld [vmem:[#allocation11 + $0x158] sm:$0xff]
      %v792 = vld [vmem:[#allocation11 + $0x160] sm:$0xff]
      %v793 = vld [vmem:[#allocation11 + $0x168] sm:$0xff]
      %v794 = vld [vmem:[#allocation11 + $0x170] sm:$0xff]
      %v795 = vld [vmem:[#allocation11 + $0x178] sm:$0xff]
      %v796 = vld [vmem:[%s4] sm:$0x7]
      %v798 = vlaneseq
      %v799 = vshrl.u32 %v798, 7
      %v800 = vsub.s32 0, %v799
      %v801 = vrot.slane %v796, %v800
      %v802 = vlaneseq
      %v803 = vshrl.u32 %v802, 7
      %v804 = vsub.s32 1, %v803
      %v805 = vrot.slane %v796, %v804
      %v806 = vlaneseq
      %v807 = vshrl.u32 %v806, 7
      %v808 = vsub.s32 2, %v807
      %v809 = vrot.slane %v796, %v808
      %813 = vmatprep.subr.mxu0 %v749
      %814 = vmatpush1.msra.mxu0 %v748
      %815 = vmatprep.subr.mxu0 %v752
      %816 = vmatpush1.msra.mxu0 %v751
      %817 = vmatprep.subr.mxu0 %v755
      %818 = vmatpush1.msra.mxu0 %v754
      %819 = vmatprep.subr.mxu0 %v758
      %820 = vmatpush1.msra.mxu0 %v757
      %821 = vmatprep.subr.mxu0 %v761
      %822 = vmatpush1.msra.mxu0 %v760
      %823 = vmatprep.subr.mxu0 %v764
      %824 = vmatpush1.msra.mxu0 %v763
      %825 = vmatprep.subr.mxu0 %v767
      %826 = vmatpush1.msra.mxu0 %v766
      %827 = vmatprep.subr.mxu0 %v770
      %828 = vmatpush1.msra.mxu0 %v769
      %829 = vmatprep.subr.mxu0 %v773
      %830 = vmatpush1.msra.mxu0 %v772
      %831 = vmatprep.subr.mxu0 %v776
      %832 = vmatpush1.msra.mxu0 %v775
      %833 = vmatprep.subr.mxu0 %v779
      %834 = vmatpush1.msra.mxu0 %v778
      %835 = vmatprep.subr.mxu0 %v782
      %836 = vmatpush1.msra.mxu0 %v781
      %837 = vmatprep.subr.mxu0 %v785
      %838 = vmatpush1.msra.mxu0 %v784
      %839 = vmatprep.subr.mxu0 %v788
      %840 = vmatpush1.msra.mxu0 %v787
      %841 = vmatprep.subr.mxu0 %v791
      %842 = vmatpush1.msra.mxu0 %v790
      %843 = vmatprep.subr.mxu0 %v794
      %844 = vmatpush1.msra.mxu0 %v793
      %845 = vmatprep.subr.mxu0 0.0
      %846 = vmatpush1.msra.mxu0 0.0
      %847 = vmatprep.subr.mxu0 0.0
      %848 = vmatpush1.msra.mxu0 0.0
      %849 = vmatprep.subr.mxu0 0.0
      %850 = vmatpush1.msra.mxu0 0.0
      %851 = vmatprep.subr.mxu0 0.0
      %852 = vmatpush1.msra.mxu0 0.0
      %853 = vmatprep.subr.mxu0 0.0
      %854 = vmatpush1.msra.mxu0 0.0
      %855 = vmatprep.subr.mxu0 0.0
      %856 = vmatpush1.msra.mxu0 0.0
      %857 = vmatprep.subr.mxu0 0.0
      %858 = vmatpush1.msra.mxu0 0.0
      %859 = vmatprep.subr.mxu0 0.0
      %860 = vmatpush1.msra.mxu0 0.0
      %861 = vmatprep.subr.mxu0 0.0
      %862 = vmatpush1.msra.mxu0 0.0
      %863 = vmatprep.subr.mxu0 0.0
      %864 = vmatpush1.msra.mxu0 0.0
      %865 = vmatprep.subr.mxu0 0.0
      %866 = vmatpush1.msra.mxu0 0.0
      %867 = vmatprep.subr.mxu0 0.0
      %868 = vmatpush1.msra.mxu0 0.0
      %869 = vmatprep.subr.mxu0 0.0
      %870 = vmatpush1.msra.mxu0 0.0
      %871 = vmatprep.subr.mxu0 0.0
      %872 = vmatpush1.msra.mxu0 0.0
      %873 = vmatprep.subr.mxu0 0.0
      %874 = vmatpush1.msra.mxu0 0.0
      %875 = vmatprep.subr.mxu0 0.0
      %876 = vmatpush1.msra.mxu0 0.0
      %877 = vmatprep.mubr.f32.mxu0 0.0
      %878 = vmatmul.mubr.f32.gmra.mrb[0].mxu0 %v747
      %v879 = vpop.f32.mrb[0].mxu0
      %v880 = vadd.f32 %v801, %v879
      %v881 = vpop.f32.mrb[0].mxu0
      %v882 = vadd.f32 %v805, %v881
      %883 = vdwg.mxu0
      %884 = vmatprep.subr.mxu0 0.0
      %885 = vmatpush1.msra.mxu0 %v750
      %886 = vmatprep.subr.mxu0 0.0
      %887 = vmatpush1.msra.mxu0 %v753
      %888 = vmatprep.subr.mxu0 0.0
      %889 = vmatpush1.msra.mxu0 %v756
      %890 = vmatprep.subr.mxu0 0.0
      %891 = vmatpush1.msra.mxu0 %v759
      %892 = vmatprep.subr.mxu0 0.0
      %893 = vmatpush1.msra.mxu0 %v762
      %894 = vmatprep.subr.mxu0 0.0
      %895 = vmatpush1.msra.mxu0 %v765
      %896 = vmatprep.subr.mxu0 0.0
      %897 = vmatpush1.msra.mxu0 %v768
      %898 = vmatprep.subr.mxu0 0.0
      %899 = vmatpush1.msra.mxu0 %v771
      %900 = vmatprep.subr.mxu0 0.0
      %901 = vmatpush1.msra.mxu0 %v774
      %902 = vmatprep.subr.mxu0 0.0
      %903 = vmatpush1.msra.mxu0 %v777
      %904 = vmatprep.subr.mxu0 0.0
      %905 = vmatpush1.msra.mxu0 %v780
      %906 = vmatprep.subr.mxu0 0.0
      %907 = vmatpush1.msra.mxu0 %v783
      %908 = vmatprep.subr.mxu0 0.0
      %909 = vmatpush1.msra.mxu0 %v786
      %910 = vmatprep.subr.mxu0 0.0
      %911 = vmatpush1.msra.mxu0 %v789
      %912 = vmatprep.subr.mxu0 0.0
      %913 = vmatpush1.msra.mxu0 %v792
      %914 = vmatprep.subr.mxu0 0.0
      %915 = vmatpush1.msra.mxu0 %v795
      %916 = vmatprep.subr.mxu0 0.0
      %917 = vmatpush1.msra.mxu0 0.0
      %918 = vmatprep.subr.mxu0 0.0
      %919 = vmatpush1.msra.mxu0 0.0
      %920 = vmatprep.subr.mxu0 0.0
      %921 = vmatpush1.msra.mxu0 0.0
      %922 = vmatprep.subr.mxu0 0.0
      %923 = vmatpush1.msra.mxu0 0.0
      %924 = vmatprep.subr.mxu0 0.0
      %925 = vmatpush1.msra.mxu0 0.0
      %926 = vmatprep.subr.mxu0 0.0
      %927 = vmatpush1.msra.mxu0 0.0
      %928 = vmatprep.subr.mxu0 0.0
      %929 = vmatpush1.msra.mxu0 0.0
      %930 = vmatprep.subr.mxu0 0.0
      %931 = vmatpush1.msra.mxu0 0.0
      %932 = vmatprep.subr.mxu0 0.0
      %933 = vmatpush1.msra.mxu0 0.0
      %934 = vmatprep.subr.mxu0 0.0
      %935 = vmatpush1.msra.mxu0 0.0
      %936 = vmatprep.subr.mxu0 0.0
      %937 = vmatpush1.msra.mxu0 0.0
      %938 = vmatprep.subr.mxu0 0.0
      %939 = vmatpush1.msra.mxu0 0.0
      %940 = vmatprep.subr.mxu0 0.0
      %941 = vmatpush1.msra.mxu0 0.0
      %942 = vmatprep.subr.mxu0 0.0
      %943 = vmatpush1.msra.mxu0 0.0
      %944 = vmatprep.subr.mxu0 0.0
      %945 = vmatpush1.msra.mxu0 0.0
      %946 = vmatprep.subr.mxu0 0.0
      %947 = vmatpush1.msra.mxu0 0.0
      %948 = vmatprep.mubr.f32.mxu0 0.0
      %949 = vmatmul.mubr.f32.gmra.mrb[0].mxu0 %v747
      %v950 = vpop.f32.mrb[0].mxu0
      %v951 = vadd.f32 %v809, %v950
      %v952 = vpop.f32.mrb[0].mxu0
      %953 = vdwg.mxu0
      %s954 = smul.u32 %s742, 3
      %s955 = smul.addr %s954, 2
      %s956 = scalar_lea.vmem [#allocation2], %s955
      %v957 = vld [vmem:[%s956] sm:$0x3f]
      %v958 = vadd.f32 %v957, %v880
      %v959 = vxor.u32 %v958, 2147483648
      %v960 = vmul.f32 %v959, 1.442695
      %v961 = vpow.pop %v960
      %v962 = vadd.f32 %v961, 1.0
      %v963 = vrcp.pop %v962
      %v964 = vmul.f32 1.0, %v963
      %v966 = vrot.slane %v957, 2
      %v968 = vadd.f32 %v966, %v882
      %v969 = vxor.u32 %v968, 2147483648
      %v970 = vmul.f32 %v969, 1.442695
      %v971 = vpow.pop %v970
      %v972 = vadd.f32 %v971, 1.0
      %v973 = vrcp.pop %v972
      %v974 = vmul.f32 1.0, %v973
      %v975 = vmul.f32 %v964, %v951
      %v976 = vrot.slane %v957, 4
      %v978 = vadd.f32 %v976, %v975
      %v979 = vtanh.pop %v978
      %v980 = vsub.f32 1.0, %v974
      %v981 = vmul.f32 %v980, %v979
      %v982 = vmul.f32 %v974, %v747
      %v983 = vadd.f32 %v981, %v982
      %s984 = smul.u32 %s742, 2
      %s985 = scalar_lea.vmem [#allocation4], %s984
      %986 = vst [vmem:[%s985] sm:$0x3] %v983
    $region94: #{tpu_custom_call.1} parent=1 // loop_footer
      %s746 = sadd.s32 1, %s742
    $region95: #{tpu_custom_call.1} parent=1 // loop_footer_branch
      %741 = sbr.rel target = $region91
    $region96: #{tpu_custom_call.1} parent=1 // loop_exit
      _
    %v987 = vld [vmem:[#allocation4] sm:$0x3]
    %v988 = vld [vmem:[#allocation4 + $0x2] sm:$0x3]
    %v989 = vld [vmem:[#allocation4 + $0x4] sm:$0x3]
    %v990 = vld [vmem:[#allocation4 + $0x6] sm:$0x3]
    %v991 = vld [vmem:[#allocation4 + $0x8] sm:$0x3]
    %v992 = vld [vmem:[#allocation4 + $0xa] sm:$0x3]
    %v993 = vld [vmem:[#allocation4 + $0xc] sm:$0x3]
    %v994 = vld [vmem:[#allocation4 + $0xe] sm:$0x3]
    %v995 = vld [vmem:[#allocation12] sm:$0xff]
    %v996 = vld [vmem:[#allocation12 + $0x8] sm:$0xff]
    %v997 = vld [vmem:[#allocation12 + $0x10] sm:$0xff]
    %v998 = vld [vmem:[#allocation12 + $0x18] sm:$0xff]
    %v999 = vld [vmem:[#allocation12 + $0x20] sm:$0xff]
    %v1000 = vld [vmem:[#allocation12 + $0x28] sm:$0xff]
    %v1001 = vld [vmem:[#allocation12 + $0x30] sm:$0xff]
    %v1002 = vld [vmem:[#allocation12 + $0x38] sm:$0xff]
    %v1003 = vld [vmem:[#allocation12 + $0x40] sm:$0xff]
    %v1004 = vld [vmem:[#allocation12 + $0x48] sm:$0xff]
    %v1005 = vld [vmem:[#allocation12 + $0x50] sm:$0xff]
    %v1006 = vld [vmem:[#allocation12 + $0x58] sm:$0xff]
    %v1007 = vld [vmem:[#allocation12 + $0x60] sm:$0xff]
    %v1008 = vld [vmem:[#allocation12 + $0x68] sm:$0xff]
    %v1009 = vld [vmem:[#allocation12 + $0x70] sm:$0xff]
    %v1010 = vld [vmem:[#allocation12 + $0x78] sm:$0xff]
    %v1011 = vld [vmem:[#allocation12 + $0x80] sm:$0xff]
    %v1012 = vld [vmem:[#allocation12 + $0x88] sm:$0xff]
    %v1013 = vld [vmem:[#allocation12 + $0x90] sm:$0xff]
    %v1014 = vld [vmem:[#allocation12 + $0x98] sm:$0xff]
    %v1015 = vld [vmem:[#allocation12 + $0xa0] sm:$0xff]
    %v1016 = vld [vmem:[#allocation12 + $0xa8] sm:$0xff]
    %v1017 = vld [vmem:[#allocation12 + $0xb0] sm:$0xff]
    %v1018 = vld [vmem:[#allocation12 + $0xb8] sm:$0xff]
    %v1019 = vld [vmem:[#allocation12 + $0xc0] sm:$0xff]
    %v1020 = vld [vmem:[#allocation12 + $0xc8] sm:$0xff]
    %v1021 = vld [vmem:[#allocation12 + $0xd0] sm:$0xff]
    %v1022 = vld [vmem:[#allocation12 + $0xd8] sm:$0xff]
    %v1023 = vld [vmem:[#allocation12 + $0xe0] sm:$0xff]
    %v1024 = vld [vmem:[#allocation12 + $0xe8] sm:$0xff]
    %v1025 = vld [vmem:[#allocation12 + $0xf0] sm:$0xff]
    %v1026 = vld [vmem:[#allocation12 + $0xf8] sm:$0xff]
    %v1027 = vld [vmem:[#allocation12 + $0x100] sm:$0xff]
    %v1028 = vld [vmem:[#allocation12 + $0x108] sm:$0xff]
    %v1029 = vld [vmem:[#allocation12 + $0x110] sm:$0xff]
    %v1030 = vld [vmem:[#allocation12 + $0x118] sm:$0xff]
    %v1031 = vld [vmem:[#allocation12 + $0x120] sm:$0xff]
    %v1032 = vld [vmem:[#allocation12 + $0x128] sm:$0xff]
    %v1033 = vld [vmem:[#allocation12 + $0x130] sm:$0xff]
    %v1034 = vld [vmem:[#allocation12 + $0x138] sm:$0xff]
    %v1035 = vld [vmem:[#allocation12 + $0x140] sm:$0xff]
    %v1036 = vld [vmem:[#allocation12 + $0x148] sm:$0xff]
    %v1037 = vld [vmem:[#allocation12 + $0x150] sm:$0xff]
    %v1038 = vld [vmem:[#allocation12 + $0x158] sm:$0xff]
    %v1039 = vld [vmem:[#allocation12 + $0x160] sm:$0xff]
    %v1040 = vld [vmem:[#allocation12 + $0x168] sm:$0xff]
    %v1041 = vld [vmem:[#allocation12 + $0x170] sm:$0xff]
    %v1042 = vld [vmem:[#allocation12 + $0x178] sm:$0xff]
    %v1043 = vld [vmem:[%s7] sm:$0x7]
    %v1045 = vlaneseq
    %v1046 = vshrl.u32 %v1045, 7
    %v1047 = vsub.s32 0, %v1046
    %v1048 = vrot.slane %v1043, %v1047
    %v1049 = vlaneseq
    %v1050 = vshrl.u32 %v1049, 7
    %v1051 = vsub.s32 1, %v1050
    %v1052 = vrot.slane %v1043, %v1051
    %v1053 = vlaneseq
    %v1054 = vshrl.u32 %v1053, 7
    %v1055 = vsub.s32 2, %v1054
    %v1056 = vrot.slane %v1043, %v1055
    %v1068 = vcombine.low %v987, %v988
    %v1069 = vcombine.low %v989, %v990
    %v1071 = vunpack.c.l.s4 1983009808
    %v1072 = vunpack.c.0.s8 %v1071
    %v1073 = vlaneseq
    %v1074 = vshrl.u32 %v1073, 7
    %v1075 = vsub.s32 %v1072, %v1074
    %v1076 = vrot.slane %v1068, %v1075
    %v1078 = vunpack.c.l.s4 1983009808
    %v1079 = vunpack.c.0.s8 %v1078
    %v1080 = vlaneseq
    %v1081 = vshrl.u32 %v1080, 7
    %v1082 = vsub.s32 %v1079, %v1081
    %v1083 = vrot.slane %v1069, %v1082
    %v1084 = vcombine.low %v1076, %v1083
    %v1085 = vcombine.low %v991, %v992
    %v1086 = vcombine.low %v993, %v994
    %v1088 = vunpack.c.l.s4 1983009808
    %v1089 = vunpack.c.0.s8 %v1088
    %v1090 = vlaneseq
    %v1091 = vshrl.u32 %v1090, 7
    %v1092 = vsub.s32 %v1089, %v1091
    %v1093 = vrot.slane %v1085, %v1092
    %v1095 = vunpack.c.l.s4 1983009808
    %v1096 = vunpack.c.0.s8 %v1095
    %v1097 = vlaneseq
    %v1098 = vshrl.u32 %v1097, 7
    %v1099 = vsub.s32 %v1096, %v1098
    %v1100 = vrot.slane %v1086, %v1099
    %v1101 = vcombine.low %v1093, %v1100
    %1104 = vmatprep.subr.mxu0 %v996
    %1105 = vmatpush1.msra.mxu0 %v995
    %1106 = vmatprep.subr.mxu0 %v999
    %1107 = vmatpush1.msra.mxu0 %v998
    %1108 = vmatprep.subr.mxu0 %v1002
    %1109 = vmatpush1.msra.mxu0 %v1001
    %1110 = vmatprep.subr.mxu0 %v1005
    %1111 = vmatpush1.msra.mxu0 %v1004
    %1112 = vmatprep.subr.mxu0 %v1008
    %1113 = vmatpush1.msra.mxu0 %v1007
    %1114 = vmatprep.subr.mxu0 %v1011
    %1115 = vmatpush1.msra.mxu0 %v1010
    %1116 = vmatprep.subr.mxu0 %v1014
    %1117 = vmatpush1.msra.mxu0 %v1013
    %1118 = vmatprep.subr.mxu0 %v1017
    %1119 = vmatpush1.msra.mxu0 %v1016
    %1120 = vmatprep.subr.mxu0 %v1020
    %1121 = vmatpush1.msra.mxu0 %v1019
    %1122 = vmatprep.subr.mxu0 %v1023
    %1123 = vmatpush1.msra.mxu0 %v1022
    %1124 = vmatprep.subr.mxu0 %v1026
    %1125 = vmatpush1.msra.mxu0 %v1025
    %1126 = vmatprep.subr.mxu0 %v1029
    %1127 = vmatpush1.msra.mxu0 %v1028
    %1128 = vmatprep.subr.mxu0 %v1032
    %1129 = vmatpush1.msra.mxu0 %v1031
    %1130 = vmatprep.subr.mxu0 %v1035
    %1131 = vmatpush1.msra.mxu0 %v1034
    %1132 = vmatprep.subr.mxu0 %v1038
    %1133 = vmatpush1.msra.mxu0 %v1037
    %1134 = vmatprep.subr.mxu0 %v1041
    %1135 = vmatpush1.msra.mxu0 %v1040
    %1136 = vmatprep.subr.mxu0 0.0
    %1137 = vmatpush1.msra.mxu0 0.0
    %1138 = vmatprep.subr.mxu0 0.0
    %1139 = vmatpush1.msra.mxu0 0.0
    %1140 = vmatprep.subr.mxu0 0.0
    %1141 = vmatpush1.msra.mxu0 0.0
    %1142 = vmatprep.subr.mxu0 0.0
    %1143 = vmatpush1.msra.mxu0 0.0
    %1144 = vmatprep.subr.mxu0 0.0
    %1145 = vmatpush1.msra.mxu0 0.0
    %1146 = vmatprep.subr.mxu0 0.0
    %1147 = vmatpush1.msra.mxu0 0.0
    %1148 = vmatprep.subr.mxu0 0.0
    %1149 = vmatpush1.msra.mxu0 0.0
    %1150 = vmatprep.subr.mxu0 0.0
    %1151 = vmatpush1.msra.mxu0 0.0
    %1152 = vmatprep.subr.mxu0 0.0
    %1153 = vmatpush1.msra.mxu0 0.0
    %1154 = vmatprep.subr.mxu0 0.0
    %1155 = vmatpush1.msra.mxu0 0.0
    %1156 = vmatprep.subr.mxu0 0.0
    %1157 = vmatpush1.msra.mxu0 0.0
    %1158 = vmatprep.subr.mxu0 0.0
    %1159 = vmatpush1.msra.mxu0 0.0
    %1160 = vmatprep.subr.mxu0 0.0
    %1161 = vmatpush1.msra.mxu0 0.0
    %1162 = vmatprep.subr.mxu0 0.0
    %1163 = vmatpush1.msra.mxu0 0.0
    %1164 = vmatprep.subr.mxu0 0.0
    %1165 = vmatpush1.msra.mxu0 0.0
    %1166 = vmatprep.subr.mxu0 0.0
    %1167 = vmatpush1.msra.mxu0 0.0
    %1168 = vmatprep.mubr.f32.mxu0 0.0
    %1169 = vmatmul.mubr.f32.gmra.mrb[0].mxu0 %v1084
    %v1170 = vpop.f32.mrb[0].mxu0
    %v1171 = vadd.f32 %v1048, %v1170
    %v1172 = vpop.f32.mrb[0].mxu0
    %v1173 = vadd.f32 %v1052, %v1172
    %1174 = vmatprep.mubr.f32.mxu0 0.0
    %1175 = vmatmul.mubr.f32.gmra.mrb[0].mxu0 %v1101
    %v1176 = vpop.f32.mrb[0].mxu0
    %v1177 = vadd.f32 %v1048, %v1176
    %v1178 = vpop.f32.mrb[0].mxu0
    %v1179 = vadd.f32 %v1052, %v1178
    %1180 = vdwg.mxu0
    %1181 = vmatprep.subr.mxu0 0.0
    %1182 = vmatpush1.msra.mxu0 %v997
    %1183 = vmatprep.subr.mxu0 0.0
    %1184 = vmatpush1.msra.mxu0 %v1000
    %1185 = vmatprep.subr.mxu0 0.0
    %1186 = vmatpush1.msra.mxu0 %v1003
    %1187 = vmatprep.subr.mxu0 0.0
    %1188 = vmatpush1.msra.mxu0 %v1006
    %1189 = vmatprep.subr.mxu0 0.0
    %1190 = vmatpush1.msra.mxu0 %v1009
    %1191 = vmatprep.subr.mxu0 0.0
    %1192 = vmatpush1.msra.mxu0 %v1012
    %1193 = vmatprep.subr.mxu0 0.0
    %1194 = vmatpush1.msra.mxu0 %v1015
    %1195 = vmatprep.subr.mxu0 0.0
    %1196 = vmatpush1.msra.mxu0 %v1018
    %1197 = vmatprep.subr.mxu0 0.0
    %1198 = vmatpush1.msra.mxu0 %v1021
    %1199 = vmatprep.subr.mxu0 0.0
    %1200 = vmatpush1.msra.mxu0 %v1024
    %1201 = vmatprep.subr.mxu0 0.0
    %1202 = vmatpush1.msra.mxu0 %v1027
    %1203 = vmatprep.subr.mxu0 0.0
    %1204 = vmatpush1.msra.mxu0 %v1030
    %1205 = vmatprep.subr.mxu0 0.0
    %1206 = vmatpush1.msra.mxu0 %v1033
    %1207 = vmatprep.subr.mxu0 0.0
    %1208 = vmatpush1.msra.mxu0 %v1036
    %1209 = vmatprep.subr.mxu0 0.0
    %1210 = vmatpush1.msra.mxu0 %v1039
    %1211 = vmatprep.subr.mxu0 0.0
    %1212 = vmatpush1.msra.mxu0 %v1042
    %1213 = vmatprep.subr.mxu0 0.0
    %1214 = vmatpush1.msra.mxu0 0.0
    %1215 = vmatprep.subr.mxu0 0.0
    %1216 = vmatpush1.msra.mxu0 0.0
    %1217 = vmatprep.subr.mxu0 0.0
    %1218 = vmatpush1.msra.mxu0 0.0
    %1219 = vmatprep.subr.mxu0 0.0
    %1220 = vmatpush1.msra.mxu0 0.0
    %1221 = vmatprep.subr.mxu0 0.0
    %1222 = vmatpush1.msra.mxu0 0.0
    %1223 = vmatprep.subr.mxu0 0.0
    %1224 = vmatpush1.msra.mxu0 0.0
    %1225 = vmatprep.subr.mxu0 0.0
    %1226 = vmatpush1.msra.mxu0 0.0
    %1227 = vmatprep.subr.mxu0 0.0
    %1228 = vmatpush1.msra.mxu0 0.0
    %1229 = vmatprep.subr.mxu0 0.0
    %1230 = vmatpush1.msra.mxu0 0.0
    %1231 = vmatprep.subr.mxu0 0.0
    %1232 = vmatpush1.msra.mxu0 0.0
    %1233 = vmatprep.subr.mxu0 0.0
    %1234 = vmatpush1.msra.mxu0 0.0
    %1235 = vmatprep.subr.mxu0 0.0
    %1236 = vmatpush1.msra.mxu0 0.0
    %1237 = vmatprep.subr.mxu0 0.0
    %1238 = vmatpush1.msra.mxu0 0.0
    %1239 = vmatprep.subr.mxu0 0.0
    %1240 = vmatpush1.msra.mxu0 0.0
    %1241 = vmatprep.subr.mxu0 0.0
    %1242 = vmatpush1.msra.mxu0 0.0
    %1243 = vmatprep.subr.mxu0 0.0
    %1244 = vmatpush1.msra.mxu0 0.0
    %1245 = vmatprep.mubr.f32.mxu0 0.0
    %1246 = vmatmul.mubr.f32.gmra.mrb[0].mxu0 %v1084
    %v1247 = vpop.f32.mrb[0].mxu0
    %v1248 = vadd.f32 %v1056, %v1247
    %v1249 = vpop.f32.mrb[0].mxu0
    %1250 = vmatprep.mubr.f32.mxu0 0.0
    %1251 = vmatmul.mubr.f32.gmra.mrb[0].mxu0 %v1101
    %v1252 = vpop.f32.mrb[0].mxu0
    %v1253 = vadd.f32 %v1056, %v1252
    %v1254 = vpop.f32.mrb[0].mxu0
    %1255 = vdwg.mxu0
    %v1262 = vcombine.low %v1171, %v1173
    %v1263 = vcombine.high %v1171, %v1173
    %v1264 = vcombine.high %v1248, %v1248
    %v1266 = vunpack.c.l.s4 1983009808
    %v1267 = vunpack.c.0.s8 %v1266
    %v1268 = vlaneseq
    %v1269 = vshrl.u32 %v1268, 7
    %v1270 = vsub.s32 %v1267, %v1269
    %v1271 = vrot.slane %v1262, %v1270
    %v1273 = vunpack.c.l.s4 1983009808
    %v1274 = vunpack.c.0.s8 %v1273
    %v1275 = vlaneseq
    %v1276 = vshrl.u32 %v1275, 7
    %v1277 = vsub.s32 %v1274, %v1276
    %v1278 = vrot.slane %v1263, %v1277
    %v1280 = vunpack.c.l.s4 1983009808
    %v1281 = vunpack.c.0.s8 %v1280
    %v1282 = vlaneseq
    %v1283 = vshrl.u32 %v1282, 7
    %v1284 = vsub.s32 %v1281, %v1283
    %v1285 = vrot.slane %v1248, %v1284
    %v1287 = vunpack.c.l.s4 1983009808
    %v1288 = vunpack.c.0.s8 %v1287
    %v1289 = vlaneseq
    %v1290 = vshrl.u32 %v1289, 7
    %v1291 = vsub.s32 %v1288, %v1290
    %v1292 = vrot.slane %v1264, %v1291
    %v1293 = vcombine.low %v1271, %v1285
    %v1294 = vcombine.high %v1271, %v1285
    %v1295 = vcombine.low %v1278, %v1292
    %v1296 = vcombine.high %v1278, %v1292
    %v1297 = vcombine.low %v1177, %v1179
    %v1298 = vcombine.high %v1177, %v1179
    %v1299 = vcombine.high %v1253, %v1253
    %v1301 = vunpack.c.l.s4 1983009808
    %v1302 = vunpack.c.0.s8 %v1301
    %v1303 = vlaneseq
    %v1304 = vshrl.u32 %v1303, 7
    %v1305 = vsub.s32 %v1302, %v1304
    %v1306 = vrot.slane %v1297, %v1305
    %v1308 = vunpack.c.l.s4 1983009808
    %v1309 = vunpack.c.0.s8 %v1308
    %v1310 = vlaneseq
    %v1311 = vshrl.u32 %v1310, 7
    %v1312 = vsub.s32 %v1309, %v1311
    %v1313 = vrot.slane %v1298, %v1312
    %v1315 = vunpack.c.l.s4 1983009808
    %v1316 = vunpack.c.0.s8 %v1315
    %v1317 = vlaneseq
    %v1318 = vshrl.u32 %v1317, 7
    %v1319 = vsub.s32 %v1316, %v1318
    %v1320 = vrot.slane %v1253, %v1319
    %v1322 = vunpack.c.l.s4 1983009808
    %v1323 = vunpack.c.0.s8 %v1322
    %v1324 = vlaneseq
    %v1325 = vshrl.u32 %v1324, 7
    %v1326 = vsub.s32 %v1323, %v1325
    %v1327 = vrot.slane %v1299, %v1326
    %v1328 = vcombine.low %v1306, %v1320
    %v1329 = vcombine.high %v1306, %v1320
    %v1330 = vcombine.low %v1313, %v1327
    %v1331 = vcombine.high %v1313, %v1327
    %1340 = vst [vmem:[#allocation3] sm:$0x3f] %v1293
    %1341 = vst [vmem:[#allocation3 + $0x6] sm:$0x3f] %v1294
    %1342 = vst [vmem:[#allocation3 + $0xc] sm:$0x3f] %v1295
    %1343 = vst [vmem:[#allocation3 + $0x12] sm:$0x3f] %v1296
    %1344 = vst [vmem:[#allocation3 + $0x18] sm:$0x3f] %v1328
    %1345 = vst [vmem:[#allocation3 + $0x1e] sm:$0x3f] %v1329
    %1346 = vst [vmem:[#allocation3 + $0x24] sm:$0x3f] %v1330
    %1347 = vst [vmem:[#allocation3 + $0x2a] sm:$0x3f] %v1331
    loop: start=0, step=1, limit=8
    $region97: #{tpu_custom_call.1} parent=1 // loop_pre_header
      _
    $region98: #{tpu_custom_call.1} parent=1 // loop_header
      %s1349 = sphi 0, %s1353
      %p1350 = scmp.ge.s32.totalorder %s1349, 8
      %v1354 = vphi 0.0, %v1590
    $region99: #{tpu_custom_call.1} parent=1 // loop_header_branch
      %1352 = sbr.rel (%p1350) target = $region103
    $region100: #{tpu_custom_call.1} parent=1 // loop_body
      %v1355 = vld [vmem:[#allocation14] sm:$0xff]
      %v1356 = vld [vmem:[#allocation14 + $0x8] sm:$0xff]
      %v1357 = vld [vmem:[#allocation14 + $0x10] sm:$0xff]
      %v1358 = vld [vmem:[#allocation14 + $0x18] sm:$0xff]
      %v1359 = vld [vmem:[#allocation14 + $0x20] sm:$0xff]
      %v1360 = vld [vmem:[#allocation14 + $0x28] sm:$0xff]
      %v1361 = vld [vmem:[#allocation14 + $0x30] sm:$0xff]
      %v1362 = vld [vmem:[#allocation14 + $0x38] sm:$0xff]
      %v1363 = vld [vmem:[#allocation14 + $0x40] sm:$0xff]
      %v1364 = vld [vmem:[#allocation14 + $0x48] sm:$0xff]
      %v1365 = vld [vmem:[#allocation14 + $0x50] sm:$0xff]
      %v1366 = vld [vmem:[#allocation14 + $0x58] sm:$0xff]
      %v1367 = vld [vmem:[#allocation14 + $0x60] sm:$0xff]
      %v1368 = vld [vmem:[#allocation14 + $0x68] sm:$0xff]
      %v1369 = vld [vmem:[#allocation14 + $0x70] sm:$0xff]
      %v1370 = vld [vmem:[#allocation14 + $0x78] sm:$0xff]
      %v1371 = vld [vmem:[#allocation14 + $0x80] sm:$0xff]
      %v1372 = vld [vmem:[#allocation14 + $0x88] sm:$0xff]
      %v1373 = vld [vmem:[#allocation14 + $0x90] sm:$0xff]
      %v1374 = vld [vmem:[#allocation14 + $0x98] sm:$0xff]
      %v1375 = vld [vmem:[#allocation14 + $0xa0] sm:$0xff]
      %v1376 = vld [vmem:[#allocation14 + $0xa8] sm:$0xff]
      %v1377 = vld [vmem:[#allocation14 + $0xb0] sm:$0xff]
      %v1378 = vld [vmem:[#allocation14 + $0xb8] sm:$0xff]
      %v1379 = vld [vmem:[#allocation14 + $0xc0] sm:$0xff]
      %v1380 = vld [vmem:[#allocation14 + $0xc8] sm:$0xff]
      %v1381 = vld [vmem:[#allocation14 + $0xd0] sm:$0xff]
      %v1382 = vld [vmem:[#allocation14 + $0xd8] sm:$0xff]
      %v1383 = vld [vmem:[#allocation14 + $0xe0] sm:$0xff]
      %v1384 = vld [vmem:[#allocation14 + $0xe8] sm:$0xff]
      %v1385 = vld [vmem:[#allocation14 + $0xf0] sm:$0xff]
      %v1386 = vld [vmem:[#allocation14 + $0xf8] sm:$0xff]
      %v1387 = vld [vmem:[#allocation14 + $0x100] sm:$0xff]
      %v1388 = vld [vmem:[#allocation14 + $0x108] sm:$0xff]
      %v1389 = vld [vmem:[#allocation14 + $0x110] sm:$0xff]
      %v1390 = vld [vmem:[#allocation14 + $0x118] sm:$0xff]
      %v1391 = vld [vmem:[#allocation14 + $0x120] sm:$0xff]
      %v1392 = vld [vmem:[#allocation14 + $0x128] sm:$0xff]
      %v1393 = vld [vmem:[#allocation14 + $0x130] sm:$0xff]
      %v1394 = vld [vmem:[#allocation14 + $0x138] sm:$0xff]
      %v1395 = vld [vmem:[#allocation14 + $0x140] sm:$0xff]
      %v1396 = vld [vmem:[#allocation14 + $0x148] sm:$0xff]
      %v1397 = vld [vmem:[#allocation14 + $0x150] sm:$0xff]
      %v1398 = vld [vmem:[#allocation14 + $0x158] sm:$0xff]
      %v1399 = vld [vmem:[#allocation14 + $0x160] sm:$0xff]
      %v1400 = vld [vmem:[#allocation14 + $0x168] sm:$0xff]
      %v1401 = vld [vmem:[#allocation14 + $0x170] sm:$0xff]
      %v1402 = vld [vmem:[#allocation14 + $0x178] sm:$0xff]
      %v1403 = vld [vmem:[%s8] sm:$0x7]
      %v1405 = vlaneseq
      %v1406 = vshrl.u32 %v1405, 7
      %v1407 = vsub.s32 0, %v1406
      %v1408 = vrot.slane %v1403, %v1407
      %v1409 = vlaneseq
      %v1410 = vshrl.u32 %v1409, 7
      %v1411 = vsub.s32 1, %v1410
      %v1412 = vrot.slane %v1403, %v1411
      %v1413 = vlaneseq
      %v1414 = vshrl.u32 %v1413, 7
      %v1415 = vsub.s32 2, %v1414
      %v1416 = vrot.slane %v1403, %v1415
      %1420 = vmatprep.subr.mxu0 %v1356
      %1421 = vmatpush1.msra.mxu0 %v1355
      %1422 = vmatprep.subr.mxu0 %v1359
      %1423 = vmatpush1.msra.mxu0 %v1358
      %1424 = vmatprep.subr.mxu0 %v1362
      %1425 = vmatpush1.msra.mxu0 %v1361
      %1426 = vmatprep.subr.mxu0 %v1365
      %1427 = vmatpush1.msra.mxu0 %v1364
      %1428 = vmatprep.subr.mxu0 %v1368
      %1429 = vmatpush1.msra.mxu0 %v1367
      %1430 = vmatprep.subr.mxu0 %v1371
      %1431 = vmatpush1.msra.mxu0 %v1370
      %1432 = vmatprep.subr.mxu0 %v1374
      %1433 = vmatpush1.msra.mxu0 %v1373
      %1434 = vmatprep.subr.mxu0 %v1377
      %1435 = vmatpush1.msra.mxu0 %v1376
      %1436 = vmatprep.subr.mxu0 %v1380
      %1437 = vmatpush1.msra.mxu0 %v1379
      %1438 = vmatprep.subr.mxu0 %v1383
      %1439 = vmatpush1.msra.mxu0 %v1382
      %1440 = vmatprep.subr.mxu0 %v1386
      %1441 = vmatpush1.msra.mxu0 %v1385
      %1442 = vmatprep.subr.mxu0 %v1389
      %1443 = vmatpush1.msra.mxu0 %v1388
      %1444 = vmatprep.subr.mxu0 %v1392
      %1445 = vmatpush1.msra.mxu0 %v1391
      %1446 = vmatprep.subr.mxu0 %v1395
      %1447 = vmatpush1.msra.mxu0 %v1394
      %1448 = vmatprep.subr.mxu0 %v1398
      %1449 = vmatpush1.msra.mxu0 %v1397
      %1450 = vmatprep.subr.mxu0 %v1401
      %1451 = vmatpush1.msra.mxu0 %v1400
      %1452 = vmatprep.subr.mxu0 0.0
      %1453 = vmatpush1.msra.mxu0 0.0
      %1454 = vmatprep.subr.mxu0 0.0
      %1455 = vmatpush1.msra.mxu0 0.0
      %1456 = vmatprep.subr.mxu0 0.0
      %1457 = vmatpush1.msra.mxu0 0.0
      %1458 = vmatprep.subr.mxu0 0.0
      %1459 = vmatpush1.msra.mxu0 0.0
      %1460 = vmatprep.subr.mxu0 0.0
      %1461 = vmatpush1.msra.mxu0 0.0
      %1462 = vmatprep.subr.mxu0 0.0
      %1463 = vmatpush1.msra.mxu0 0.0
      %1464 = vmatprep.subr.mxu0 0.0
      %1465 = vmatpush1.msra.mxu0 0.0
      %1466 = vmatprep.subr.mxu0 0.0
      %1467 = vmatpush1.msra.mxu0 0.0
      %1468 = vmatprep.subr.mxu0 0.0
      %1469 = vmatpush1.msra.mxu0 0.0
      %1470 = vmatprep.subr.mxu0 0.0
      %1471 = vmatpush1.msra.mxu0 0.0
      %1472 = vmatprep.subr.mxu0 0.0
      %1473 = vmatpush1.msra.mxu0 0.0
      %1474 = vmatprep.subr.mxu0 0.0
      %1475 = vmatpush1.msra.mxu0 0.0
      %1476 = vmatprep.subr.mxu0 0.0
      %1477 = vmatpush1.msra.mxu0 0.0
      %1478 = vmatprep.subr.mxu0 0.0
      %1479 = vmatpush1.msra.mxu0 0.0
      %1480 = vmatprep.subr.mxu0 0.0
      %1481 = vmatpush1.msra.mxu0 0.0
      %1482 = vmatprep.subr.mxu0 0.0
      %1483 = vmatpush1.msra.mxu0 0.0
      %1484 = vmatprep.mubr.f32.mxu0 0.0
      %1485 = vmatmul.mubr.f32.gmra.mrb[0].mxu0 %v1354
      %v1486 = vpop.f32.mrb[0].mxu0
      %v1487 = vadd.f32 %v1408, %v1486
      %v1488 = vpop.f32.mrb[0].mxu0
      %v1489 = vadd.f32 %v1412, %v1488
      %1490 = vdwg.mxu0
      %1491 = vmatprep.subr.mxu0 0.0
      %1492 = vmatpush1.msra.mxu0 %v1357
      %1493 = vmatprep.subr.mxu0 0.0
      %1494 = vmatpush1.msra.mxu0 %v1360
      %1495 = vmatprep.subr.mxu0 0.0
      %1496 = vmatpush1.msra.mxu0 %v1363
      %1497 = vmatprep.subr.mxu0 0.0
      %1498 = vmatpush1.msra.mxu0 %v1366
      %1499 = vmatprep.subr.mxu0 0.0
      %1500 = vmatpush1.msra.mxu0 %v1369
      %1501 = vmatprep.subr.mxu0 0.0
      %1502 = vmatpush1.msra.mxu0 %v1372
      %1503 = vmatprep.subr.mxu0 0.0
      %1504 = vmatpush1.msra.mxu0 %v1375
      %1505 = vmatprep.subr.mxu0 0.0
      %1506 = vmatpush1.msra.mxu0 %v1378
      %1507 = vmatprep.subr.mxu0 0.0
      %1508 = vmatpush1.msra.mxu0 %v1381
      %1509 = vmatprep.subr.mxu0 0.0
      %1510 = vmatpush1.msra.mxu0 %v1384
      %1511 = vmatprep.subr.mxu0 0.0
      %1512 = vmatpush1.msra.mxu0 %v1387
      %1513 = vmatprep.subr.mxu0 0.0
      %1514 = vmatpush1.msra.mxu0 %v1390
      %1515 = vmatprep.subr.mxu0 0.0
      %1516 = vmatpush1.msra.mxu0 %v1393
      %1517 = vmatprep.subr.mxu0 0.0
      %1518 = vmatpush1.msra.mxu0 %v1396
      %1519 = vmatprep.subr.mxu0 0.0
      %1520 = vmatpush1.msra.mxu0 %v1399
      %1521 = vmatprep.subr.mxu0 0.0
      %1522 = vmatpush1.msra.mxu0 %v1402
      %1523 = vmatprep.subr.mxu0 0.0
      %1524 = vmatpush1.msra.mxu0 0.0
      %1525 = vmatprep.subr.mxu0 0.0
      %1526 = vmatpush1.msra.mxu0 0.0
      %1527 = vmatprep.subr.mxu0 0.0
      %1528 = vmatpush1.msra.mxu0 0.0
      %1529 = vmatprep.subr.mxu0 0.0
      %1530 = vmatpush1.msra.mxu0 0.0
      %1531 = vmatprep.subr.mxu0 0.0
      %1532 = vmatpush1.msra.mxu0 0.0
      %1533 = vmatprep.subr.mxu0 0.0
      %1534 = vmatpush1.msra.mxu0 0.0
      %1535 = vmatprep.subr.mxu0 0.0
      %1536 = vmatpush1.msra.mxu0 0.0
      %1537 = vmatprep.subr.mxu0 0.0
      %1538 = vmatpush1.msra.mxu0 0.0
      %1539 = vmatprep.subr.mxu0 0.0
      %1540 = vmatpush1.msra.mxu0 0.0
      %1541 = vmatprep.subr.mxu0 0.0
      %1542 = vmatpush1.msra.mxu0 0.0
      %1543 = vmatprep.subr.mxu0 0.0
      %1544 = vmatpush1.msra.mxu0 0.0
      %1545 = vmatprep.subr.mxu0 0.0
      %1546 = vmatpush1.msra.mxu0 0.0
      %1547 = vmatprep.subr.mxu0 0.0
      %1548 = vmatpush1.msra.mxu0 0.0
      %1549 = vmatprep.subr.mxu0 0.0
      %1550 = vmatpush1.msra.mxu0 0.0
      %1551 = vmatprep.subr.mxu0 0.0
      %1552 = vmatpush1.msra.mxu0 0.0
      %1553 = vmatprep.subr.mxu0 0.0
      %1554 = vmatpush1.msra.mxu0 0.0
      %1555 = vmatprep.mubr.f32.mxu0 0.0
      %1556 = vmatmul.mubr.f32.gmra.mrb[0].mxu0 %v1354
      %v1557 = vpop.f32.mrb[0].mxu0
      %v1558 = vadd.f32 %v1416, %v1557
      %v1559 = vpop.f32.mrb[0].mxu0
      %1560 = vdwg.mxu0
      %s1561 = smul.u32 %s1349, 3
      %s1562 = smul.addr %s1561, 2
      %s1563 = scalar_lea.vmem [#allocation3], %s1562
      %v1564 = vld [vmem:[%s1563] sm:$0x3f]
      %v1565 = vadd.f32 %v1564, %v1487
      %v1566 = vxor.u32 %v1565, 2147483648
      %v1567 = vmul.f32 %v1566, 1.442695
      %v1568 = vpow.pop %v1567
      %v1569 = vadd.f32 %v1568, 1.0
      %v1570 = vrcp.pop %v1569
      %v1571 = vmul.f32 1.0, %v1570
      %v1573 = vrot.slane %v1564, 2
      %v1575 = vadd.f32 %v1573, %v1489
      %v1576 = vxor.u32 %v1575, 2147483648
      %v1577 = vmul.f32 %v1576, 1.442695
      %v1578 = vpow.pop %v1577
      %v1579 = vadd.f32 %v1578, 1.0
      %v1580 = vrcp.pop %v1579
      %v1581 = vmul.f32 1.0, %v1580
      %v1582 = vmul.f32 %v1571, %v1558
      %v1583 = vrot.slane %v1564, 4
      %v1585 = vadd.f32 %v1583, %v1582
      %v1586 = vtanh.pop %v1585
      %v1587 = vsub.f32 1.0, %v1581
      %v1588 = vmul.f32 %v1587, %v1586
      %v1589 = vmul.f32 %v1581, %v1354
      %v1590 = vadd.f32 %v1588, %v1589
      %s1591 = smul.u32 %s1349, 2
      %s1592 = scalar_lea.vmem [#allocation5], %s1591
      %1593 = vst [vmem:[%s1592] sm:$0x3] %v1590
    $region101: #{tpu_custom_call.1} parent=1 // loop_footer
      %s1353 = sadd.s32 1, %s1349
    $region102: #{tpu_custom_call.1} parent=1 // loop_footer_branch
      %1348 = sbr.rel target = $region98
    $region103: #{tpu_custom_call.1} parent=1 // loop_exit
      _
    %v1594 = vld [vmem:[#allocation5] sm:$0x3]
    %v1595 = vld [vmem:[#allocation5 + $0x2] sm:$0x3]
    %v1596 = vld [vmem:[#allocation5 + $0x4] sm:$0x3]
    %v1597 = vld [vmem:[#allocation5 + $0x6] sm:$0x3]
    %v1598 = vld [vmem:[#allocation5 + $0x8] sm:$0x3]
    %v1599 = vld [vmem:[#allocation5 + $0xa] sm:$0x3]
    %v1600 = vld [vmem:[#allocation5 + $0xc] sm:$0x3]
    %v1601 = vld [vmem:[#allocation5 + $0xe] sm:$0x3]
    %v1602 = vcombine.low %v1594, %v1596
    %v1604 = vunpack.c.l.s4 1983009808
    %v1605 = vunpack.c.0.s8 %v1604
    %v1606 = vlaneseq
    %v1607 = vshrl.u32 %v1606, 7
    %v1608 = vsub.s32 %v1605, %v1607
    %v1609 = vrot.slane %v1602, %v1608
    %v1610 = vcombine.low %v1595, %v1597
    %v1612 = vunpack.c.l.s4 1983009808
    %v1613 = vunpack.c.0.s8 %v1612
    %v1614 = vlaneseq
    %v1615 = vshrl.u32 %v1614, 7
    %v1616 = vsub.s32 %v1613, %v1615
    %v1617 = vrot.slane %v1610, %v1616
    %v1618 = vcombine.low %v1598, %v1600
    %v1620 = vunpack.c.l.s4 1983009808
    %v1621 = vunpack.c.0.s8 %v1620
    %v1622 = vlaneseq
    %v1623 = vshrl.u32 %v1622, 7
    %v1624 = vsub.s32 %v1621, %v1623
    %v1625 = vrot.slane %v1618, %v1624
    %v1626 = vcombine.low %v1599, %v1601
    %v1628 = vunpack.c.l.s4 1983009808
    %v1629 = vunpack.c.0.s8 %v1628
    %v1630 = vlaneseq
    %v1631 = vshrl.u32 %v1630, 7
    %v1632 = vsub.s32 %v1629, %v1631
    %v1633 = vrot.slane %v1626, %v1632
    %v1634 = vcombine.low %v1609, %v1617
    %v1636 = vunpack.c.l.s4 1934713408
    %v1637 = vunpack.c.0.s8 %v1636
    %v1638 = vlaneseq
    %v1639 = vshrl.u32 %v1638, 7
    %v1640 = vsub.s32 %v1637, %v1639
    %v1641 = vrot.slane %v1634, %v1640
    %v1642 = vcombine.low %v1625, %v1633
    %v1644 = vunpack.c.l.s4 1934713408
    %v1645 = vunpack.c.0.s8 %v1644
    %v1646 = vlaneseq
    %v1647 = vshrl.u32 %v1646, 7
    %v1648 = vsub.s32 %v1645, %v1647
    %v1649 = vrot.slane %v1642, %v1648
    %v1650 = vcombine.low %v1641, %v1649
    %v1651 = vcombine.high %v1641, %v1649
    %v1652 = vld [vmem:[#allocation15] sm:$0xff]
    %v1653 = vld [vmem:[#allocation15 + $0x8] sm:$0xff]
    %v1654 = vld [vmem:[#allocation15 + $0x10] sm:$0xff]
    %v1655 = vld [vmem:[#allocation15 + $0x18] sm:$0xff]
    %v1656 = vld [vmem:[#allocation15 + $0x20] sm:$0xff]
    %v1657 = vld [vmem:[#allocation15 + $0x28] sm:$0xff]
    %v1658 = vld [vmem:[#allocation15 + $0x30] sm:$0xff]
    %v1659 = vld [vmem:[#allocation15 + $0x38] sm:$0xff]
    %v1660 = vld [vmem:[#allocation15 + $0x40] sm:$0xff]
    %v1661 = vld [vmem:[#allocation15 + $0x48] sm:$0xff]
    %v1662 = vld [vmem:[#allocation15 + $0x50] sm:$0xff]
    %v1663 = vld [vmem:[#allocation15 + $0x58] sm:$0xff]
    %v1664 = vld [vmem:[#allocation15 + $0x60] sm:$0xff]
    %v1665 = vld [vmem:[#allocation15 + $0x68] sm:$0xff]
    %v1666 = vld [vmem:[#allocation15 + $0x70] sm:$0xff]
    %v1667 = vld [vmem:[#allocation15 + $0x78] sm:$0xff]
    %v1668 = vld [vmem:[#allocation15 + $0x80] sm:$0xff]
    %v1669 = vld [vmem:[#allocation15 + $0x88] sm:$0xff]
    %v1670 = vld [vmem:[#allocation15 + $0x90] sm:$0xff]
    %v1671 = vld [vmem:[#allocation15 + $0x98] sm:$0xff]
    %v1672 = vld [vmem:[#allocation15 + $0xa0] sm:$0xff]
    %v1673 = vld [vmem:[#allocation15 + $0xa8] sm:$0xff]
    %v1674 = vld [vmem:[#allocation15 + $0xb0] sm:$0xff]
    %v1675 = vld [vmem:[#allocation15 + $0xb8] sm:$0xff]
    %v1676 = vld [vmem:[#allocation15 + $0xc0] sm:$0xff]
    %v1677 = vld [vmem:[#allocation15 + $0xc8] sm:$0xff]
    %v1678 = vld [vmem:[#allocation15 + $0xd0] sm:$0xff]
    %v1679 = vld [vmem:[#allocation15 + $0xd8] sm:$0xff]
    %v1680 = vld [vmem:[#allocation15 + $0xe0] sm:$0xff]
    %v1681 = vld [vmem:[#allocation15 + $0xe8] sm:$0xff]
    %v1682 = vld [vmem:[#allocation15 + $0xf0] sm:$0xff]
    %v1683 = vld [vmem:[#allocation15 + $0xf8] sm:$0xff]
    %v1684 = vld [vmem:[#allocation15 + $0x100] sm:$0xff]
    %v1685 = vld [vmem:[#allocation15 + $0x108] sm:$0xff]
    %v1686 = vld [vmem:[#allocation15 + $0x110] sm:$0xff]
    %v1687 = vld [vmem:[#allocation15 + $0x118] sm:$0xff]
    %v1688 = vld [vmem:[#allocation15 + $0x120] sm:$0xff]
    %v1689 = vld [vmem:[#allocation15 + $0x128] sm:$0xff]
    %v1690 = vld [vmem:[#allocation15 + $0x130] sm:$0xff]
    %v1691 = vld [vmem:[#allocation15 + $0x138] sm:$0xff]
    %v1692 = vld [vmem:[#allocation15 + $0x140] sm:$0xff]
    %v1693 = vld [vmem:[#allocation15 + $0x148] sm:$0xff]
    %v1694 = vld [vmem:[#allocation15 + $0x150] sm:$0xff]
    %v1695 = vld [vmem:[#allocation15 + $0x158] sm:$0xff]
    %v1696 = vld [vmem:[#allocation15 + $0x160] sm:$0xff]
    %v1697 = vld [vmem:[#allocation15 + $0x168] sm:$0xff]
    %v1698 = vld [vmem:[#allocation15 + $0x170] sm:$0xff]
    %v1699 = vld [vmem:[#allocation15 + $0x178] sm:$0xff]
    %v1700 = vld [vmem:[%s10] sm:$0x7]
    %v1702 = vlaneseq
    %v1703 = vshrl.u32 %v1702, 7
    %v1704 = vsub.s32 0, %v1703
    %v1705 = vrot.slane %v1700, %v1704
    %v1706 = vlaneseq
    %v1707 = vshrl.u32 %v1706, 7
    %v1708 = vsub.s32 1, %v1707
    %v1709 = vrot.slane %v1700, %v1708
    %v1710 = vlaneseq
    %v1711 = vshrl.u32 %v1710, 7
    %v1712 = vsub.s32 2, %v1711
    %v1713 = vrot.slane %v1700, %v1712
    %1717 = vmatprep.subr.mxu0 %v1653
    %1718 = vmatpush1.msra.mxu0 %v1652
    %1719 = vmatprep.subr.mxu0 %v1656
    %1720 = vmatpush1.msra.mxu0 %v1655
    %1721 = vmatprep.subr.mxu0 %v1659
    %1722 = vmatpush1.msra.mxu0 %v1658
    %1723 = vmatprep.subr.mxu0 %v1662
    %1724 = vmatpush1.msra.mxu0 %v1661
    %1725 = vmatprep.subr.mxu0 %v1665
    %1726 = vmatpush1.msra.mxu0 %v1664
    %1727 = vmatprep.subr.mxu0 %v1668
    %1728 = vmatpush1.msra.mxu0 %v1667
    %1729 = vmatprep.subr.mxu0 %v1671
    %1730 = vmatpush1.msra.mxu0 %v1670
    %1731 = vmatprep.subr.mxu0 %v1674
    %1732 = vmatpush1.msra.mxu0 %v1673
    %1733 = vmatprep.subr.mxu0 %v1677
    %1734 = vmatpush1.msra.mxu0 %v1676
    %1735 = vmatprep.subr.mxu0 %v1680
    %1736 = vmatpush1.msra.mxu0 %v1679
    %1737 = vmatprep.subr.mxu0 %v1683
    %1738 = vmatpush1.msra.mxu0 %v1682
    %1739 = vmatprep.subr.mxu0 %v1686
    %1740 = vmatpush1.msra.mxu0 %v1685
    %1741 = vmatprep.subr.mxu0 %v1689
    %1742 = vmatpush1.msra.mxu0 %v1688
    %1743 = vmatprep.subr.mxu0 %v1692
    %1744 = vmatpush1.msra.mxu0 %v1691
    %1745 = vmatprep.subr.mxu0 %v1695
    %1746 = vmatpush1.msra.mxu0 %v1694
    %1747 = vmatprep.subr.mxu0 %v1698
    %1748 = vmatpush1.msra.mxu0 %v1697
    %1749 = vmatprep.subr.mxu0 0.0
    %1750 = vmatpush1.msra.mxu0 0.0
    %1751 = vmatprep.subr.mxu0 0.0
    %1752 = vmatpush1.msra.mxu0 0.0
    %1753 = vmatprep.subr.mxu0 0.0
    %1754 = vmatpush1.msra.mxu0 0.0
    %1755 = vmatprep.subr.mxu0 0.0
    %1756 = vmatpush1.msra.mxu0 0.0
    %1757 = vmatprep.subr.mxu0 0.0
    %1758 = vmatpush1.msra.mxu0 0.0
    %1759 = vmatprep.subr.mxu0 0.0
    %1760 = vmatpush1.msra.mxu0 0.0
    %1761 = vmatprep.subr.mxu0 0.0
    %1762 = vmatpush1.msra.mxu0 0.0
    %1763 = vmatprep.subr.mxu0 0.0
    %1764 = vmatpush1.msra.mxu0 0.0
    %1765 = vmatprep.subr.mxu0 0.0
    %1766 = vmatpush1.msra.mxu0 0.0
    %1767 = vmatprep.subr.mxu0 0.0
    %1768 = vmatpush1.msra.mxu0 0.0
    %1769 = vmatprep.subr.mxu0 0.0
    %1770 = vmatpush1.msra.mxu0 0.0
    %1771 = vmatprep.subr.mxu0 0.0
    %1772 = vmatpush1.msra.mxu0 0.0
    %1773 = vmatprep.subr.mxu0 0.0
    %1774 = vmatpush1.msra.mxu0 0.0
    %1775 = vmatprep.subr.mxu0 0.0
    %1776 = vmatpush1.msra.mxu0 0.0
    %1777 = vmatprep.subr.mxu0 0.0
    %1778 = vmatpush1.msra.mxu0 0.0
    %1779 = vmatprep.subr.mxu0 0.0
    %1780 = vmatpush1.msra.mxu0 0.0
    %1781 = vmatprep.mubr.f32.mxu0 0.0
    %1782 = vmatmul.mubr.f32.gmra.mrb[0].mxu0 %v1650
    %v1783 = vpop.f32.mrb[0].mxu0
    %v1784 = vadd.f32 %v1705, %v1783
    %v1785 = vpop.f32.mrb[0].mxu0
    %v1786 = vadd.f32 %v1709, %v1785
    %1787 = vmatprep.mubr.f32.mxu0 0.0
    %1788 = vmatmul.mubr.f32.gmra.mrb[0].mxu0 %v1651
    %v1789 = vpop.f32.mrb[0].mxu0
    %v1790 = vadd.f32 %v1705, %v1789
    %v1791 = vpop.f32.mrb[0].mxu0
    %v1792 = vadd.f32 %v1709, %v1791
    %1793 = vdwg.mxu0
    %1794 = vmatprep.subr.mxu0 0.0
    %1795 = vmatpush1.msra.mxu0 %v1654
    %1796 = vmatprep.subr.mxu0 0.0
    %1797 = vmatpush1.msra.mxu0 %v1657
    %1798 = vmatprep.subr.mxu0 0.0
    %1799 = vmatpush1.msra.mxu0 %v1660
    %1800 = vmatprep.subr.mxu0 0.0
    %1801 = vmatpush1.msra.mxu0 %v1663
    %1802 = vmatprep.subr.mxu0 0.0
    %1803 = vmatpush1.msra.mxu0 %v1666
    %1804 = vmatprep.subr.mxu0 0.0
    %1805 = vmatpush1.msra.mxu0 %v1669
    %1806 = vmatprep.subr.mxu0 0.0
    %1807 = vmatpush1.msra.mxu0 %v1672
    %1808 = vmatprep.subr.mxu0 0.0
    %1809 = vmatpush1.msra.mxu0 %v1675
    %1810 = vmatprep.subr.mxu0 0.0
    %1811 = vmatpush1.msra.mxu0 %v1678
    %1812 = vmatprep.subr.mxu0 0.0
    %1813 = vmatpush1.msra.mxu0 %v1681
    %1814 = vmatprep.subr.mxu0 0.0
    %1815 = vmatpush1.msra.mxu0 %v1684
    %1816 = vmatprep.subr.mxu0 0.0
    %1817 = vmatpush1.msra.mxu0 %v1687
    %1818 = vmatprep.subr.mxu0 0.0
    %1819 = vmatpush1.msra.mxu0 %v1690
    %1820 = vmatprep.subr.mxu0 0.0
    %1821 = vmatpush1.msra.mxu0 %v1693
    %1822 = vmatprep.subr.mxu0 0.0
    %1823 = vmatpush1.msra.mxu0 %v1696
    %1824 = vmatprep.subr.mxu0 0.0
    %1825 = vmatpush1.msra.mxu0 %v1699
    %1826 = vmatprep.subr.mxu0 0.0
    %1827 = vmatpush1.msra.mxu0 0.0
    %1828 = vmatprep.subr.mxu0 0.0
    %1829 = vmatpush1.msra.mxu0 0.0
    %1830 = vmatprep.subr.mxu0 0.0
    %1831 = vmatpush1.msra.mxu0 0.0
    %1832 = vmatprep.subr.mxu0 0.0
    %1833 = vmatpush1.msra.mxu0 0.0
    %1834 = vmatprep.subr.mxu0 0.0
    %1835 = vmatpush1.msra.mxu0 0.0
    %1836 = vmatprep.subr.mxu0 0.0
    %1837 = vmatpush1.msra.mxu0 0.0
    %1838 = vmatprep.subr.mxu0 0.0
    %1839 = vmatpush1.msra.mxu0 0.0
    %1840 = vmatprep.subr.mxu0 0.0
    %1841 = vmatpush1.msra.mxu0 0.0
    %1842 = vmatprep.subr.mxu0 0.0
    %1843 = vmatpush1.msra.mxu0 0.0
    %1844 = vmatprep.subr.mxu0 0.0
    %1845 = vmatpush1.msra.mxu0 0.0
    %1846 = vmatprep.subr.mxu0 0.0
    %1847 = vmatpush1.msra.mxu0 0.0
    %1848 = vmatprep.subr.mxu0 0.0
    %1849 = vmatpush1.msra.mxu0 0.0
    %1850 = vmatprep.subr.mxu0 0.0
    %1851 = vmatpush1.msra.mxu0 0.0
    %1852 = vmatprep.subr.mxu0 0.0
    %1853 = vmatpush1.msra.mxu0 0.0
    %1854 = vmatprep.subr.mxu0 0.0
    %1855 = vmatpush1.msra.mxu0 0.0
    %1856 = vmatprep.subr.mxu0 0.0
    %1857 = vmatpush1.msra.mxu0 0.0
    %1858 = vmatprep.mubr.f32.mxu0 0.0
    %1859 = vmatmul.mubr.f32.gmra.mrb[0].mxu0 %v1650
    %v1860 = vpop.f32.mrb[0].mxu0
    %v1861 = vadd.f32 %v1713, %v1860
    %v1862 = vpop.f32.mrb[0].mxu0
    %1863 = vmatprep.mubr.f32.mxu0 0.0
    %1864 = vmatmul.mubr.f32.gmra.mrb[0].mxu0 %v1651
    %v1865 = vpop.f32.mrb[0].mxu0
    %v1866 = vadd.f32 %v1713, %v1865
    %v1867 = vpop.f32.mrb[0].mxu0
    %1868 = vdwg.mxu0
    %vm1869 = vcmask 261120
    %v1871 = vsel %vm1869, %v1784, 0
    %v1874 = vsel %vm1869, %v1786, 0
    %1876 = vmatprep.subr.mxu0 0.0
    %1877 = vmatpush1.xpose.msra.mxu0 %v1874
    %1878 = vmatprep.subr.mxu0 0.0
    %1879 = vmatpush1.xpose.msra.mxu0 0.0
    %1880 = vmatprep.subr.mxu0 0.0
    %1881 = vmatpush1.xpose.msra.mxu0 0.0
    %1882 = vmatprep.subr.mxu0 0.0
    %1883 = vmatpush1.xpose.msra.mxu0 0.0
    %1884 = vmatprep.subr.mxu0 0.0
    %1885 = vmatpush1.xpose.msra.mxu0 0.0
    %1886 = vmatprep.subr.mxu0 0.0
    %1887 = vmatpush1.xpose.msra.mxu0 0.0
    %1888 = vmatprep.subr.mxu0 0.0
    %1889 = vmatpush1.xpose.msra.mxu0 0.0
    %1890 = vmatprep.subr.mxu0 0.0
    %1891 = vmatpush1.xpose.msra.mxu0 0.0
    %1892 = vmatprep.subr.mxu0 0.0
    %1893 = vmatpush1.xpose.msra.mxu0 0.0
    %1894 = vmatprep.subr.mxu0 0.0
    %1895 = vmatpush1.xpose.msra.mxu0 0.0
    %1896 = vmatprep.subr.mxu0 0.0
    %1897 = vmatpush1.xpose.msra.mxu0 0.0
    %1898 = vmatprep.subr.mxu0 0.0
    %1899 = vmatpush1.xpose.msra.mxu0 0.0
    %1900 = vmatprep.subr.mxu0 0.0
    %1901 = vmatpush1.xpose.msra.mxu0 0.0
    %1902 = vmatprep.subr.mxu0 0.0
    %1903 = vmatpush1.xpose.msra.mxu0 0.0
    %1904 = vmatprep.subr.mxu0 0.0
    %1905 = vmatpush1.xpose.msra.mxu0 0.0
    %1906 = vmatprep.subr.mxu0 0.0
    %1907 = vmatpush1.xpose.msra.mxu0 0.0
    %1908 = vmatprep.subr.mxu0 0.0
    %1909 = vmatpush1.xpose.msra.mxu0 0.0
    %1910 = vmatprep.subr.mxu0 0.0
    %1911 = vmatpush1.xpose.msra.mxu0 0.0
    %1912 = vmatprep.subr.mxu0 0.0
    %1913 = vmatpush1.xpose.msra.mxu0 0.0
    %1914 = vmatprep.subr.mxu0 0.0
    %1915 = vmatpush1.xpose.msra.mxu0 0.0
    %1916 = vmatprep.subr.mxu0 0.0
    %1917 = vmatpush1.xpose.msra.mxu0 0.0
    %1918 = vmatprep.subr.mxu0 0.0
    %1919 = vmatpush1.xpose.msra.mxu0 0.0
    %1920 = vmatprep.subr.mxu0 0.0
    %1921 = vmatpush1.xpose.msra.mxu0 0.0
    %1922 = vmatprep.subr.mxu0 0.0
    %1923 = vmatpush1.xpose.msra.mxu0 0.0
    %1924 = vmatprep.subr.mxu0 0.0
    %1925 = vmatpush1.xpose.msra.mxu0 0.0
    %1926 = vmatprep.subr.mxu0 0.0
    %1927 = vmatpush1.xpose.msra.mxu0 0.0
    %1928 = vmatprep.subr.mxu0 0.0
    %1929 = vmatpush1.xpose.msra.mxu0 0.0
    %1930 = vmatprep.subr.mxu0 0.0
    %1931 = vmatpush1.xpose.msra.mxu0 0.0
    %1932 = vmatprep.subr.mxu0 0.0
    %1933 = vmatpush1.xpose.msra.mxu0 0.0
    %1934 = vmatprep.subr.mxu0 0.0
    %1935 = vmatpush1.xpose.msra.mxu0 0.0
    %1936 = vmatprep.subr.mxu0 0.0
    %1937 = vmatpush1.xpose.msra.mxu0 0.0
    %1938 = vmatprep.subr.mxu0 0.0
    %1939 = vmatpush1.xpose.msra.mxu0 0.0
    %1940 = vmatprep.mubr.f32.mxu0 0.0
    %1941 = vmatmul.mubr.f32.gmra.mrb[0].mxu0 %v1871
    %v1942 = vpop.f32.mrb[0].mxu0
    %v1943 = vadd.f32 0.0, %v1942
    %v1944 = vpop.f32.mrb[0].mxu0
    %1945 = vdwg.mxu0
    %v1947 = vsel %vm1869, %v1790, 0
    %v1950 = vsel %vm1869, %v1792, 0
    %1952 = vmatprep.subr.mxu0 0.0
    %1953 = vmatpush1.xpose.msra.mxu0 %v1950
    %1954 = vmatprep.subr.mxu0 0.0
    %1955 = vmatpush1.xpose.msra.mxu0 0.0
    %1956 = vmatprep.subr.mxu0 0.0
    %1957 = vmatpush1.xpose.msra.mxu0 0.0
    %1958 = vmatprep.subr.mxu0 0.0
    %1959 = vmatpush1.xpose.msra.mxu0 0.0
    %1960 = vmatprep.subr.mxu0 0.0
    %1961 = vmatpush1.xpose.msra.mxu0 0.0
    %1962 = vmatprep.subr.mxu0 0.0
    %1963 = vmatpush1.xpose.msra.mxu0 0.0
    %1964 = vmatprep.subr.mxu0 0.0
    %1965 = vmatpush1.xpose.msra.mxu0 0.0
    %1966 = vmatprep.subr.mxu0 0.0
    %1967 = vmatpush1.xpose.msra.mxu0 0.0
    %1968 = vmatprep.subr.mxu0 0.0
    %1969 = vmatpush1.xpose.msra.mxu0 0.0
    %1970 = vmatprep.subr.mxu0 0.0
    %1971 = vmatpush1.xpose.msra.mxu0 0.0
    %1972 = vmatprep.subr.mxu0 0.0
    %1973 = vmatpush1.xpose.msra.mxu0 0.0
    %1974 = vmatprep.subr.mxu0 0.0
    %1975 = vmatpush1.xpose.msra.mxu0 0.0
    %1976 = vmatprep.subr.mxu0 0.0
    %1977 = vmatpush1.xpose.msra.mxu0 0.0
    %1978 = vmatprep.subr.mxu0 0.0
    %1979 = vmatpush1.xpose.msra.mxu0 0.0
    %1980 = vmatprep.subr.mxu0 0.0
    %1981 = vmatpush1.xpose.msra.mxu0 0.0
    %1982 = vmatprep.subr.mxu0 0.0
    %1983 = vmatpush1.xpose.msra.mxu0 0.0
    %1984 = vmatprep.subr.mxu0 0.0
    %1985 = vmatpush1.xpose.msra.mxu0 0.0
    %1986 = vmatprep.subr.mxu0 0.0
    %1987 = vmatpush1.xpose.msra.mxu0 0.0
    %1988 = vmatprep.subr.mxu0 0.0
    %1989 = vmatpush1.xpose.msra.mxu0 0.0
    %1990 = vmatprep.subr.mxu0 0.0
    %1991 = vmatpush1.xpose.msra.mxu0 0.0
    %1992 = vmatprep.subr.mxu0 0.0
    %1993 = vmatpush1.xpose.msra.mxu0 0.0
    %1994 = vmatprep.subr.mxu0 0.0
    %1995 = vmatpush1.xpose.msra.mxu0 0.0
    %1996 = vmatprep.subr.mxu0 0.0
    %1997 = vmatpush1.xpose.msra.mxu0 0.0
    %1998 = vmatprep.subr.mxu0 0.0
    %1999 = vmatpush1.xpose.msra.mxu0 0.0
    %2000 = vmatprep.subr.mxu0 0.0
    %2001 = vmatpush1.xpose.msra.mxu0 0.0
    %2002 = vmatprep.subr.mxu0 0.0
    %2003 = vmatpush1.xpose.msra.mxu0 0.0
    %2004 = vmatprep.subr.mxu0 0.0
    %2005 = vmatpush1.xpose.msra.mxu0 0.0
    %2006 = vmatprep.subr.mxu0 0.0
    %2007 = vmatpush1.xpose.msra.mxu0 0.0
    %2008 = vmatprep.subr.mxu0 0.0
    %2009 = vmatpush1.xpose.msra.mxu0 0.0
    %2010 = vmatprep.subr.mxu0 0.0
    %2011 = vmatpush1.xpose.msra.mxu0 0.0
    %2012 = vmatprep.subr.mxu0 0.0
    %2013 = vmatpush1.xpose.msra.mxu0 0.0
    %2014 = vmatprep.subr.mxu0 0.0
    %2015 = vmatpush1.xpose.msra.mxu0 0.0
    %2016 = vmatprep.mubr.f32.mxu0 0.0
    %2017 = vmatmul.mubr.f32.gmra.mrb[0].mxu0 %v1947
    %v2018 = vpop.f32.mrb[0].mxu0
    %v2019 = vadd.f32 0.0, %v2018
    %v2020 = vpop.f32.mrb[0].mxu0
    %2021 = vdwg.mxu0
    %v2022 = vmul.f32 %v1943, 0.17677669
    %v2023 = vmul.f32 %v2019, 0.17677669
    %vm2024 = vcmask 64512
    %v2025 = vsel %vm2024, %v2022, -inf
    %2026 = vmax.xlane.f32.xlu0 %v2025
    %v2027 = vpop.xlane.xlu0 %2026
    %v2028 = vsel %vm2024, %v2023, -inf
    %2029 = vmax.xlane.f32.xlu0 %v2028
    %v2030 = vpop.xlane.xlu0 %2029
    %v2031 = vsub.f32 %v2022, %v2027
    %v2032 = vsub.f32 %v2023, %v2030
    %v2033 = vmul.f32 %v2031, 1.442695
    %v2034 = vpow.pop %v2033
    %v2035 = vmul.f32 %v2032, 1.442695
    %v2036 = vpow.pop %v2035
    %v2037 = vsel %vm2024, %v2034, 0.0
    %2038 = vadd.xlane.f32.xlu0 %v2037
    %v2039 = vpop.xlane.xlu0 %2038
    %v2040 = vsel %vm2024, %v2036, 0.0
    %2041 = vadd.xlane.f32.xlu0 %v2040
    %v2042 = vpop.xlane.xlu0 %2041
    %v2043 = vrcp.pop %v2039
    %v2044 = vrcp.pop %v2042
    %v2045 = vmul.f32 %v2034, %v2043
    %v2046 = vmul.f32 %v2036, %v2044
    %v2047 = vsel %vm2024, %v2045, 0.0
    %v2048 = vrot.slane %v2047, 4
    %v2049 = vadd.f32 %v2047, %v2048
    %v2050 = vrot.slane %v2049, 2
    %v2051 = vadd.f32 %v2049, %v2050
    %v2052 = vrot.slane %v2051, 1
    %v2053 = vadd.f32 %v2051, %v2052
    %v2054 = vsel %vm2024, %v2046, 0.0
    %v2055 = vrot.slane %v2054, 4
    %v2056 = vadd.f32 %v2054, %v2055
    %v2057 = vrot.slane %v2056, 2
    %v2058 = vadd.f32 %v2056, %v2057
    %v2059 = vrot.slane %v2058, 1
    %v2060 = vadd.f32 %v2058, %v2059
    %v2061 = vrcp.pop 8.0
    %v2062 = vmul.f32 %v2053, %v2061
    %v2063 = vmul.f32 %v2060, %v2061
    %v2065 = vsel %vm2024, %v2062, 0
    %2067 = vmatprep.subr.mxu0 0.0
    %2068 = vmatpush1.msra.mxu0 %v1861
    %2069 = vmatprep.subr.mxu0 0.0
    %2070 = vmatpush1.msra.mxu0 0.0
    %2071 = vmatprep.subr.mxu0 0.0
    %2072 = vmatpush1.msra.mxu0 0.0
    %2073 = vmatprep.subr.mxu0 0.0
    %2074 = vmatpush1.msra.mxu0 0.0
    %2075 = vmatprep.subr.mxu0 0.0
    %2076 = vmatpush1.msra.mxu0 0.0
    %2077 = vmatprep.subr.mxu0 0.0
    %2078 = vmatpush1.msra.mxu0 0.0
    %2079 = vmatprep.subr.mxu0 0.0
    %2080 = vmatpush1.msra.mxu0 0.0
    %2081 = vmatprep.subr.mxu0 0.0
    %2082 = vmatpush1.msra.mxu0 0.0
    %2083 = vmatprep.subr.mxu0 0.0
    %2084 = vmatpush1.msra.mxu0 0.0
    %2085 = vmatprep.subr.mxu0 0.0
    %2086 = vmatpush1.msra.mxu0 0.0
    %2087 = vmatprep.subr.mxu0 0.0
    %2088 = vmatpush1.msra.mxu0 0.0
    %2089 = vmatprep.subr.mxu0 0.0
    %2090 = vmatpush1.msra.mxu0 0.0
    %2091 = vmatprep.subr.mxu0 0.0
    %2092 = vmatpush1.msra.mxu0 0.0
    %2093 = vmatprep.subr.mxu0 0.0
    %2094 = vmatpush1.msra.mxu0 0.0
    %2095 = vmatprep.subr.mxu0 0.0
    %2096 = vmatpush1.msra.mxu0 0.0
    %2097 = vmatprep.subr.mxu0 0.0
    %2098 = vmatpush1.msra.mxu0 0.0
    %2099 = vmatprep.subr.mxu0 0.0
    %2100 = vmatpush1.msra.mxu0 0.0
    %2101 = vmatprep.subr.mxu0 0.0
    %2102 = vmatpush1.msra.mxu0 0.0
    %2103 = vmatprep.subr.mxu0 0.0
    %2104 = vmatpush1.msra.mxu0 0.0
    %2105 = vmatprep.subr.mxu0 0.0
    %2106 = vmatpush1.msra.mxu0 0.0
    %2107 = vmatprep.subr.mxu0 0.0
    %2108 = vmatpush1.msra.mxu0 0.0
    %2109 = vmatprep.subr.mxu0 0.0
    %2110 = vmatpush1.msra.mxu0 0.0
    %2111 = vmatprep.subr.mxu0 0.0
    %2112 = vmatpush1.msra.mxu0 0.0
    %2113 = vmatprep.subr.mxu0 0.0
    %2114 = vmatpush1.msra.mxu0 0.0
    %2115 = vmatprep.subr.mxu0 0.0
    %2116 = vmatpush1.msra.mxu0 0.0
    %2117 = vmatprep.subr.mxu0 0.0
    %2118 = vmatpush1.msra.mxu0 0.0
    %2119 = vmatprep.subr.mxu0 0.0
    %2120 = vmatpush1.msra.mxu0 0.0
    %2121 = vmatprep.subr.mxu0 0.0
    %2122 = vmatpush1.msra.mxu0 0.0
    %2123 = vmatprep.subr.mxu0 0.0
    %2124 = vmatpush1.msra.mxu0 0.0
    %2125 = vmatprep.subr.mxu0 0.0
    %2126 = vmatpush1.msra.mxu0 0.0
    %2127 = vmatprep.subr.mxu0 0.0
    %2128 = vmatpush1.msra.mxu0 0.0
    %2129 = vmatprep.subr.mxu0 0.0
    %2130 = vmatpush1.msra.mxu0 0.0
    %2131 = vmatprep.mubr.f32.mxu0 0.0
    %2132 = vmatmul.mubr.f32.gmra.mrb[0].mxu0 %v2065
    %v2133 = vpop.f32.mrb[0].mxu0
    %v2134 = vadd.f32 0.0, %v2133
    %v2135 = vpop.f32.mrb[0].mxu0
    %2136 = vdwg.mxu0
    %v2138 = vsel %vm2024, %v2063, 0
    %2140 = vmatprep.subr.mxu0 0.0
    %2141 = vmatpush1.msra.mxu0 %v1866
    %2142 = vmatprep.subr.mxu0 0.0
    %2143 = vmatpush1.msra.mxu0 0.0
    %2144 = vmatprep.subr.mxu0 0.0
    %2145 = vmatpush1.msra.mxu0 0.0
    %2146 = vmatprep.subr.mxu0 0.0
    %2147 = vmatpush1.msra.mxu0 0.0
    %2148 = vmatprep.subr.mxu0 0.0
    %2149 = vmatpush1.msra.mxu0 0.0
    %2150 = vmatprep.subr.mxu0 0.0
    %2151 = vmatpush1.msra.mxu0 0.0
    %2152 = vmatprep.subr.mxu0 0.0
    %2153 = vmatpush1.msra.mxu0 0.0
    %2154 = vmatprep.subr.mxu0 0.0
    %2155 = vmatpush1.msra.mxu0 0.0
    %2156 = vmatprep.subr.mxu0 0.0
    %2157 = vmatpush1.msra.mxu0 0.0
    %2158 = vmatprep.subr.mxu0 0.0
    %2159 = vmatpush1.msra.mxu0 0.0
    %2160 = vmatprep.subr.mxu0 0.0
    %2161 = vmatpush1.msra.mxu0 0.0
    %2162 = vmatprep.subr.mxu0 0.0
    %2163 = vmatpush1.msra.mxu0 0.0
    %2164 = vmatprep.subr.mxu0 0.0
    %2165 = vmatpush1.msra.mxu0 0.0
    %2166 = vmatprep.subr.mxu0 0.0
    %2167 = vmatpush1.msra.mxu0 0.0
    %2168 = vmatprep.subr.mxu0 0.0
    %2169 = vmatpush1.msra.mxu0 0.0
    %2170 = vmatprep.subr.mxu0 0.0
    %2171 = vmatpush1.msra.mxu0 0.0
    %2172 = vmatprep.subr.mxu0 0.0
    %2173 = vmatpush1.msra.mxu0 0.0
    %2174 = vmatprep.subr.mxu0 0.0
    %2175 = vmatpush1.msra.mxu0 0.0
    %2176 = vmatprep.subr.mxu0 0.0
    %2177 = vmatpush1.msra.mxu0 0.0
    %2178 = vmatprep.subr.mxu0 0.0
    %2179 = vmatpush1.msra.mxu0 0.0
    %2180 = vmatprep.subr.mxu0 0.0
    %2181 = vmatpush1.msra.mxu0 0.0
    %2182 = vmatprep.subr.mxu0 0.0
    %2183 = vmatpush1.msra.mxu0 0.0
    %2184 = vmatprep.subr.mxu0 0.0
    %2185 = vmatpush1.msra.mxu0 0.0
    %2186 = vmatprep.subr.mxu0 0.0
    %2187 = vmatpush1.msra.mxu0 0.0
    %2188 = vmatprep.subr.mxu0 0.0
    %2189 = vmatpush1.msra.mxu0 0.0
    %2190 = vmatprep.subr.mxu0 0.0
    %2191 = vmatpush1.msra.mxu0 0.0
    %2192 = vmatprep.subr.mxu0 0.0
    %2193 = vmatpush1.msra.mxu0 0.0
    %2194 = vmatprep.subr.mxu0 0.0
    %2195 = vmatpush1.msra.mxu0 0.0
    %2196 = vmatprep.subr.mxu0 0.0
    %2197 = vmatpush1.msra.mxu0 0.0
    %2198 = vmatprep.subr.mxu0 0.0
    %2199 = vmatpush1.msra.mxu0 0.0
    %2200 = vmatprep.subr.mxu0 0.0
    %2201 = vmatpush1.msra.mxu0 0.0
    %2202 = vmatprep.subr.mxu0 0.0
    %2203 = vmatpush1.msra.mxu0 0.0
    %2204 = vmatprep.mubr.f32.mxu0 0.0
    %2205 = vmatmul.mubr.f32.gmra.mrb[0].mxu0 %v2138
    %v2206 = vpop.f32.mrb[0].mxu0
    %v2207 = vadd.f32 0.0, %v2206
    %v2208 = vpop.f32.mrb[0].mxu0
    %2209 = vdwg.mxu0
    %2210 = vrot.lane.b32.xlu0 %v1784, 96
    %v2211 = vpop.permute.xlu0 %2210
    %2212 = vrot.lane.b32.xlu0 %v1786, 96
    %v2213 = vpop.permute.xlu0 %2212
    %v2214 = vsel %vm1869, %v2211, 0
    %v2216 = vsel %vm1869, %v2213, 0
    %2218 = vmatprep.subr.mxu0 0.0
    %2219 = vmatpush1.xpose.msra.mxu0 %v2216
    %2220 = vmatprep.subr.mxu0 0.0
    %2221 = vmatpush1.xpose.msra.mxu0 0.0
    %2222 = vmatprep.subr.mxu0 0.0
    %2223 = vmatpush1.xpose.msra.mxu0 0.0
    %2224 = vmatprep.subr.mxu0 0.0
    %2225 = vmatpush1.xpose.msra.mxu0 0.0
    %2226 = vmatprep.subr.mxu0 0.0
    %2227 = vmatpush1.xpose.msra.mxu0 0.0
    %2228 = vmatprep.subr.mxu0 0.0
    %2229 = vmatpush1.xpose.msra.mxu0 0.0
    %2230 = vmatprep.subr.mxu0 0.0
    %2231 = vmatpush1.xpose.msra.mxu0 0.0
    %2232 = vmatprep.subr.mxu0 0.0
    %2233 = vmatpush1.xpose.msra.mxu0 0.0
    %2234 = vmatprep.subr.mxu0 0.0
    %2235 = vmatpush1.xpose.msra.mxu0 0.0
    %2236 = vmatprep.subr.mxu0 0.0
    %2237 = vmatpush1.xpose.msra.mxu0 0.0
    %2238 = vmatprep.subr.mxu0 0.0
    %2239 = vmatpush1.xpose.msra.mxu0 0.0
    %2240 = vmatprep.subr.mxu0 0.0
    %2241 = vmatpush1.xpose.msra.mxu0 0.0
    %2242 = vmatprep.subr.mxu0 0.0
    %2243 = vmatpush1.xpose.msra.mxu0 0.0
    %2244 = vmatprep.subr.mxu0 0.0
    %2245 = vmatpush1.xpose.msra.mxu0 0.0
    %2246 = vmatprep.subr.mxu0 0.0
    %2247 = vmatpush1.xpose.msra.mxu0 0.0
    %2248 = vmatprep.subr.mxu0 0.0
    %2249 = vmatpush1.xpose.msra.mxu0 0.0
    %2250 = vmatprep.subr.mxu0 0.0
    %2251 = vmatpush1.xpose.msra.mxu0 0.0
    %2252 = vmatprep.subr.mxu0 0.0
    %2253 = vmatpush1.xpose.msra.mxu0 0.0
    %2254 = vmatprep.subr.mxu0 0.0
    %2255 = vmatpush1.xpose.msra.mxu0 0.0
    %2256 = vmatprep.subr.mxu0 0.0
    %2257 = vmatpush1.xpose.msra.mxu0 0.0
    %2258 = vmatprep.subr.mxu0 0.0
    %2259 = vmatpush1.xpose.msra.mxu0 0.0
    %2260 = vmatprep.subr.mxu0 0.0
    %2261 = vmatpush1.xpose.msra.mxu0 0.0
    %2262 = vmatprep.subr.mxu0 0.0
    %2263 = vmatpush1.xpose.msra.mxu0 0.0
    %2264 = vmatprep.subr.mxu0 0.0
    %2265 = vmatpush1.xpose.msra.mxu0 0.0
    %2266 = vmatprep.subr.mxu0 0.0
    %2267 = vmatpush1.xpose.msra.mxu0 0.0
    %2268 = vmatprep.subr.mxu0 0.0
    %2269 = vmatpush1.xpose.msra.mxu0 0.0
    %2270 = vmatprep.subr.mxu0 0.0
    %2271 = vmatpush1.xpose.msra.mxu0 0.0
    %2272 = vmatprep.subr.mxu0 0.0
    %2273 = vmatpush1.xpose.msra.mxu0 0.0
    %2274 = vmatprep.subr.mxu0 0.0
    %2275 = vmatpush1.xpose.msra.mxu0 0.0
    %2276 = vmatprep.subr.mxu0 0.0
    %2277 = vmatpush1.xpose.msra.mxu0 0.0
    %2278 = vmatprep.subr.mxu0 0.0
    %2279 = vmatpush1.xpose.msra.mxu0 0.0
    %2280 = vmatprep.subr.mxu0 0.0
    %2281 = vmatpush1.xpose.msra.mxu0 0.0
    %2282 = vmatprep.mubr.f32.mxu0 0.0
    %2283 = vmatmul.mubr.f32.gmra.mrb[0].mxu0 %v2214
    %v2284 = vpop.f32.mrb[0].mxu0
    %v2285 = vadd.f32 0.0, %v2284
    %v2286 = vpop.f32.mrb[0].mxu0
    %2287 = vdwg.mxu0
    %2288 = vrot.lane.b32.xlu0 %v1790, 96
    %v2289 = vpop.permute.xlu0 %2288
    %2290 = vrot.lane.b32.xlu0 %v1792, 96
    %v2291 = vpop.permute.xlu0 %2290
    %v2292 = vsel %vm1869, %v2289, 0
    %v2294 = vsel %vm1869, %v2291, 0
    %2296 = vmatprep.subr.mxu0 0.0
    %2297 = vmatpush1.xpose.msra.mxu0 %v2294
    %2298 = vmatprep.subr.mxu0 0.0
    %2299 = vmatpush1.xpose.msra.mxu0 0.0
    %2300 = vmatprep.subr.mxu0 0.0
    %2301 = vmatpush1.xpose.msra.mxu0 0.0
    %2302 = vmatprep.subr.mxu0 0.0
    %2303 = vmatpush1.xpose.msra.mxu0 0.0
    %2304 = vmatprep.subr.mxu0 0.0
    %2305 = vmatpush1.xpose.msra.mxu0 0.0
    %2306 = vmatprep.subr.mxu0 0.0
    %2307 = vmatpush1.xpose.msra.mxu0 0.0
    %2308 = vmatprep.subr.mxu0 0.0
    %2309 = vmatpush1.xpose.msra.mxu0 0.0
    %2310 = vmatprep.subr.mxu0 0.0
    %2311 = vmatpush1.xpose.msra.mxu0 0.0
    %2312 = vmatprep.subr.mxu0 0.0
    %2313 = vmatpush1.xpose.msra.mxu0 0.0
    %2314 = vmatprep.subr.mxu0 0.0
    %2315 = vmatpush1.xpose.msra.mxu0 0.0
    %2316 = vmatprep.subr.mxu0 0.0
    %2317 = vmatpush1.xpose.msra.mxu0 0.0
    %2318 = vmatprep.subr.mxu0 0.0
    %2319 = vmatpush1.xpose.msra.mxu0 0.0
    %2320 = vmatprep.subr.mxu0 0.0
    %2321 = vmatpush1.xpose.msra.mxu0 0.0
    %2322 = vmatprep.subr.mxu0 0.0
    %2323 = vmatpush1.xpose.msra.mxu0 0.0
    %2324 = vmatprep.subr.mxu0 0.0
    %2325 = vmatpush1.xpose.msra.mxu0 0.0
    %2326 = vmatprep.subr.mxu0 0.0
    %2327 = vmatpush1.xpose.msra.mxu0 0.0
    %2328 = vmatprep.subr.mxu0 0.0
    %2329 = vmatpush1.xpose.msra.mxu0 0.0
    %2330 = vmatprep.subr.mxu0 0.0
    %2331 = vmatpush1.xpose.msra.mxu0 0.0
    %2332 = vmatprep.subr.mxu0 0.0
    %2333 = vmatpush1.xpose.msra.mxu0 0.0
    %2334 = vmatprep.subr.mxu0 0.0
    %2335 = vmatpush1.xpose.msra.mxu0 0.0
    %2336 = vmatprep.subr.mxu0 0.0
    %2337 = vmatpush1.xpose.msra.mxu0 0.0
    %2338 = vmatprep.subr.mxu0 0.0
    %2339 = vmatpush1.xpose.msra.mxu0 0.0
    %2340 = vmatprep.subr.mxu0 0.0
    %2341 = vmatpush1.xpose.msra.mxu0 0.0
    %2342 = vmatprep.subr.mxu0 0.0
    %2343 = vmatpush1.xpose.msra.mxu0 0.0
    %2344 = vmatprep.subr.mxu0 0.0
    %2345 = vmatpush1.xpose.msra.mxu0 0.0
    %2346 = vmatprep.subr.mxu0 0.0
    %2347 = vmatpush1.xpose.msra.mxu0 0.0
    %2348 = vmatprep.subr.mxu0 0.0
    %2349 = vmatpush1.xpose.msra.mxu0 0.0
    %2350 = vmatprep.subr.mxu0 0.0
    %2351 = vmatpush1.xpose.msra.mxu0 0.0
    %2352 = vmatprep.subr.mxu0 0.0
    %2353 = vmatpush1.xpose.msra.mxu0 0.0
    %2354 = vmatprep.subr.mxu0 0.0
    %2355 = vmatpush1.xpose.msra.mxu0 0.0
    %2356 = vmatprep.subr.mxu0 0.0
    %2357 = vmatpush1.xpose.msra.mxu0 0.0
    %2358 = vmatprep.subr.mxu0 0.0
    %2359 = vmatpush1.xpose.msra.mxu0 0.0
    %2360 = vmatprep.mubr.f32.mxu0 0.0
    %2361 = vmatmul.mubr.f32.gmra.mrb[0].mxu0 %v2292
    %v2362 = vpop.f32.mrb[0].mxu0
    %v2363 = vadd.f32 0.0, %v2362
    %v2364 = vpop.f32.mrb[0].mxu0
    %2365 = vdwg.mxu0
    %v2366 = vmul.f32 %v2285, 0.17677669
    %v2367 = vmul.f32 %v2363, 0.17677669
    %v2368 = vsel %vm2024, %v2366, -inf
    %2369 = vmax.xlane.f32.xlu0 %v2368
    %v2370 = vpop.xlane.xlu0 %2369
    %v2371 = vsel %vm2024, %v2367, -inf
    %2372 = vmax.xlane.f32.xlu0 %v2371
    %v2373 = vpop.xlane.xlu0 %2372
    %v2374 = vsub.f32 %v2366, %v2370
    %v2375 = vsub.f32 %v2367, %v2373
    %v2376 = vmul.f32 %v2374, 1.442695
    %v2377 = vpow.pop %v2376
    %v2378 = vmul.f32 %v2375, 1.442695
    %v2379 = vpow.pop %v2378
    %v2380 = vsel %vm2024, %v2377, 0.0
    %2381 = vadd.xlane.f32.xlu0 %v2380
    %v2382 = vpop.xlane.xlu0 %2381
    %v2383 = vsel %vm2024, %v2379, 0.0
    %2384 = vadd.xlane.f32.xlu0 %v2383
    %v2385 = vpop.xlane.xlu0 %2384
    %v2386 = vrcp.pop %v2382
    %v2387 = vrcp.pop %v2385
    %v2388 = vmul.f32 %v2377, %v2386
    %v2389 = vmul.f32 %v2379, %v2387
    %v2390 = vsel %vm2024, %v2388, 0.0
    %v2391 = vrot.slane %v2390, 4
    %v2392 = vadd.f32 %v2390, %v2391
    %v2393 = vrot.slane %v2392, 2
    %v2394 = vadd.f32 %v2392, %v2393
    %v2395 = vrot.slane %v2394, 1
    %v2396 = vadd.f32 %v2394, %v2395
    %v2397 = vsel %vm2024, %v2389, 0.0
    %v2398 = vrot.slane %v2397, 4
    %v2399 = vadd.f32 %v2397, %v2398
    %v2400 = vrot.slane %v2399, 2
    %v2401 = vadd.f32 %v2399, %v2400
    %v2402 = vrot.slane %v2401, 1
    %v2403 = vadd.f32 %v2401, %v2402
    %v2404 = vmul.f32 %v2396, %v2061
    %v2405 = vmul.f32 %v2403, %v2061
    %2407 = vrot.lane.b32.xlu0 %v1861, 96
    %v2408 = vpop.permute.xlu0 %2407
    %v2411 = vsel %vm2024, %v2404, 0
    %2413 = vmatprep.subr.mxu0 0.0
    %2414 = vmatpush1.msra.mxu0 %v2408
    %2415 = vmatprep.subr.mxu0 0.0
    %2416 = vmatpush1.msra.mxu0 0.0
    %2417 = vmatprep.subr.mxu0 0.0
    %2418 = vmatpush1.msra.mxu0 0.0
    %2419 = vmatprep.subr.mxu0 0.0
    %2420 = vmatpush1.msra.mxu0 0.0
    %2421 = vmatprep.subr.mxu0 0.0
    %2422 = vmatpush1.msra.mxu0 0.0
    %2423 = vmatprep.subr.mxu0 0.0
    %2424 = vmatpush1.msra.mxu0 0.0
    %2425 = vmatprep.subr.mxu0 0.0
    %2426 = vmatpush1.msra.mxu0 0.0
    %2427 = vmatprep.subr.mxu0 0.0
    %2428 = vmatpush1.msra.mxu0 0.0
    %2429 = vmatprep.subr.mxu0 0.0
    %2430 = vmatpush1.msra.mxu0 0.0
    %2431 = vmatprep.subr.mxu0 0.0
    %2432 = vmatpush1.msra.mxu0 0.0
    %2433 = vmatprep.subr.mxu0 0.0
    %2434 = vmatpush1.msra.mxu0 0.0
    %2435 = vmatprep.subr.mxu0 0.0
    %2436 = vmatpush1.msra.mxu0 0.0
    %2437 = vmatprep.subr.mxu0 0.0
    %2438 = vmatpush1.msra.mxu0 0.0
    %2439 = vmatprep.subr.mxu0 0.0
    %2440 = vmatpush1.msra.mxu0 0.0
    %2441 = vmatprep.subr.mxu0 0.0
    %2442 = vmatpush1.msra.mxu0 0.0
    %2443 = vmatprep.subr.mxu0 0.0
    %2444 = vmatpush1.msra.mxu0 0.0
    %2445 = vmatprep.subr.mxu0 0.0
    %2446 = vmatpush1.msra.mxu0 0.0
    %2447 = vmatprep.subr.mxu0 0.0
    %2448 = vmatpush1.msra.mxu0 0.0
    %2449 = vmatprep.subr.mxu0 0.0
    %2450 = vmatpush1.msra.mxu0 0.0
    %2451 = vmatprep.subr.mxu0 0.0
    %2452 = vmatpush1.msra.mxu0 0.0
    %2453 = vmatprep.subr.mxu0 0.0
    %2454 = vmatpush1.msra.mxu0 0.0
    %2455 = vmatprep.subr.mxu0 0.0
    %2456 = vmatpush1.msra.mxu0 0.0
    %2457 = vmatprep.subr.mxu0 0.0
    %2458 = vmatpush1.msra.mxu0 0.0
    %2459 = vmatprep.subr.mxu0 0.0
    %2460 = vmatpush1.msra.mxu0 0.0
    %2461 = vmatprep.subr.mxu0 0.0
    %2462 = vmatpush1.msra.mxu0 0.0
    %2463 = vmatprep.subr.mxu0 0.0
    %2464 = vmatpush1.msra.mxu0 0.0
    %2465 = vmatprep.subr.mxu0 0.0
    %2466 = vmatpush1.msra.mxu0 0.0
    %2467 = vmatprep.subr.mxu0 0.0
    %2468 = vmatpush1.msra.mxu0 0.0
    %2469 = vmatprep.subr.mxu0 0.0
    %2470 = vmatpush1.msra.mxu0 0.0
    %2471 = vmatprep.subr.mxu0 0.0
    %2472 = vmatpush1.msra.mxu0 0.0
    %2473 = vmatprep.subr.mxu0 0.0
    %2474 = vmatpush1.msra.mxu0 0.0
    %2475 = vmatprep.subr.mxu0 0.0
    %2476 = vmatpush1.msra.mxu0 0.0
    %2477 = vmatprep.mubr.f32.mxu0 0.0
    %2478 = vmatmul.mubr.f32.gmra.mrb[0].mxu0 %v2411
    %v2479 = vpop.f32.mrb[0].mxu0
    %v2480 = vadd.f32 0.0, %v2479
    %v2481 = vpop.f32.mrb[0].mxu0
    %2482 = vdwg.mxu0
    %2484 = vrot.lane.b32.xlu0 %v1866, 96
    %v2485 = vpop.permute.xlu0 %2484
    %v2488 = vsel %vm2024, %v2405, 0
    %2490 = vmatprep.subr.mxu0 0.0
    %2491 = vmatpush1.msra.mxu0 %v2485
    %2492 = vmatprep.subr.mxu0 0.0
    %2493 = vmatpush1.msra.mxu0 0.0
    %2494 = vmatprep.subr.mxu0 0.0
    %2495 = vmatpush1.msra.mxu0 0.0
    %2496 = vmatprep.subr.mxu0 0.0
    %2497 = vmatpush1.msra.mxu0 0.0
    %2498 = vmatprep.subr.mxu0 0.0
    %2499 = vmatpush1.msra.mxu0 0.0
    %2500 = vmatprep.subr.mxu0 0.0
    %2501 = vmatpush1.msra.mxu0 0.0
    %2502 = vmatprep.subr.mxu0 0.0
    %2503 = vmatpush1.msra.mxu0 0.0
    %2504 = vmatprep.subr.mxu0 0.0
    %2505 = vmatpush1.msra.mxu0 0.0
    %2506 = vmatprep.subr.mxu0 0.0
    %2507 = vmatpush1.msra.mxu0 0.0
    %2508 = vmatprep.subr.mxu0 0.0
    %2509 = vmatpush1.msra.mxu0 0.0
    %2510 = vmatprep.subr.mxu0 0.0
    %2511 = vmatpush1.msra.mxu0 0.0
    %2512 = vmatprep.subr.mxu0 0.0
    %2513 = vmatpush1.msra.mxu0 0.0
    %2514 = vmatprep.subr.mxu0 0.0
    %2515 = vmatpush1.msra.mxu0 0.0
    %2516 = vmatprep.subr.mxu0 0.0
    %2517 = vmatpush1.msra.mxu0 0.0
    %2518 = vmatprep.subr.mxu0 0.0
    %2519 = vmatpush1.msra.mxu0 0.0
    %2520 = vmatprep.subr.mxu0 0.0
    %2521 = vmatpush1.msra.mxu0 0.0
    %2522 = vmatprep.subr.mxu0 0.0
    %2523 = vmatpush1.msra.mxu0 0.0
    %2524 = vmatprep.subr.mxu0 0.0
    %2525 = vmatpush1.msra.mxu0 0.0
    %2526 = vmatprep.subr.mxu0 0.0
    %2527 = vmatpush1.msra.mxu0 0.0
    %2528 = vmatprep.subr.mxu0 0.0
    %2529 = vmatpush1.msra.mxu0 0.0
    %2530 = vmatprep.subr.mxu0 0.0
    %2531 = vmatpush1.msra.mxu0 0.0
    %2532 = vmatprep.subr.mxu0 0.0
    %2533 = vmatpush1.msra.mxu0 0.0
    %2534 = vmatprep.subr.mxu0 0.0
    %2535 = vmatpush1.msra.mxu0 0.0
    %2536 = vmatprep.subr.mxu0 0.0
    %2537 = vmatpush1.msra.mxu0 0.0
    %2538 = vmatprep.subr.mxu0 0.0
    %2539 = vmatpush1.msra.mxu0 0.0
    %2540 = vmatprep.subr.mxu0 0.0
    %2541 = vmatpush1.msra.mxu0 0.0
    %2542 = vmatprep.subr.mxu0 0.0
    %2543 = vmatpush1.msra.mxu0 0.0
    %2544 = vmatprep.subr.mxu0 0.0
    %2545 = vmatpush1.msra.mxu0 0.0
    %2546 = vmatprep.subr.mxu0 0.0
    %2547 = vmatpush1.msra.mxu0 0.0
    %2548 = vmatprep.subr.mxu0 0.0
    %2549 = vmatpush1.msra.mxu0 0.0
    %2550 = vmatprep.subr.mxu0 0.0
    %2551 = vmatpush1.msra.mxu0 0.0
    %2552 = vmatprep.subr.mxu0 0.0
    %2553 = vmatpush1.msra.mxu0 0.0
    %2554 = vmatprep.mubr.f32.mxu0 0.0
    %2555 = vmatmul.mubr.f32.gmra.mrb[0].mxu0 %v2488
    %v2556 = vpop.f32.mrb[0].mxu0
    %v2557 = vadd.f32 0.0, %v2556
    %v2558 = vpop.f32.mrb[0].mxu0
    %2559 = vdwg.mxu0
    %2560 = vrot.lane.b32.xlu0 %v1784, 64
    %v2561 = vpop.permute.xlu0 %2560
    %2562 = vrot.lane.b32.xlu0 %v1786, 64
    %v2563 = vpop.permute.xlu0 %2562
    %v2564 = vsel %vm1869, %v2561, 0
    %v2566 = vsel %vm1869, %v2563, 0
    %2568 = vmatprep.subr.mxu0 0.0
    %2569 = vmatpush1.xpose.msra.mxu0 %v2566
    %2570 = vmatprep.subr.mxu0 0.0
    %2571 = vmatpush1.xpose.msra.mxu0 0.0
    %2572 = vmatprep.subr.mxu0 0.0
    %2573 = vmatpush1.xpose.msra.mxu0 0.0
    %2574 = vmatprep.subr.mxu0 0.0
    %2575 = vmatpush1.xpose.msra.mxu0 0.0
    %2576 = vmatprep.subr.mxu0 0.0
    %2577 = vmatpush1.xpose.msra.mxu0 0.0
    %2578 = vmatprep.subr.mxu0 0.0
    %2579 = vmatpush1.xpose.msra.mxu0 0.0
    %2580 = vmatprep.subr.mxu0 0.0
    %2581 = vmatpush1.xpose.msra.mxu0 0.0
    %2582 = vmatprep.subr.mxu0 0.0
    %2583 = vmatpush1.xpose.msra.mxu0 0.0
    %2584 = vmatprep.subr.mxu0 0.0
    %2585 = vmatpush1.xpose.msra.mxu0 0.0
    %2586 = vmatprep.subr.mxu0 0.0
    %2587 = vmatpush1.xpose.msra.mxu0 0.0
    %2588 = vmatprep.subr.mxu0 0.0
    %2589 = vmatpush1.xpose.msra.mxu0 0.0
    %2590 = vmatprep.subr.mxu0 0.0
    %2591 = vmatpush1.xpose.msra.mxu0 0.0
    %2592 = vmatprep.subr.mxu0 0.0
    %2593 = vmatpush1.xpose.msra.mxu0 0.0
    %2594 = vmatprep.subr.mxu0 0.0
    %2595 = vmatpush1.xpose.msra.mxu0 0.0
    %2596 = vmatprep.subr.mxu0 0.0
    %2597 = vmatpush1.xpose.msra.mxu0 0.0
    %2598 = vmatprep.subr.mxu0 0.0
    %2599 = vmatpush1.xpose.msra.mxu0 0.0
    %2600 = vmatprep.subr.mxu0 0.0
    %2601 = vmatpush1.xpose.msra.mxu0 0.0
    %2602 = vmatprep.subr.mxu0 0.0
    %2603 = vmatpush1.xpose.msra.mxu0 0.0
    %2604 = vmatprep.subr.mxu0 0.0
    %2605 = vmatpush1.xpose.msra.mxu0 0.0
    %2606 = vmatprep.subr.mxu0 0.0
    %2607 = vmatpush1.xpose.msra.mxu0 0.0
    %2608 = vmatprep.subr.mxu0 0.0
    %2609 = vmatpush1.xpose.msra.mxu0 0.0
    %2610 = vmatprep.subr.mxu0 0.0
    %2611 = vmatpush1.xpose.msra.mxu0 0.0
    %2612 = vmatprep.subr.mxu0 0.0
    %2613 = vmatpush1.xpose.msra.mxu0 0.0
    %2614 = vmatprep.subr.mxu0 0.0
    %2615 = vmatpush1.xpose.msra.mxu0 0.0
    %2616 = vmatprep.subr.mxu0 0.0
    %2617 = vmatpush1.xpose.msra.mxu0 0.0
    %2618 = vmatprep.subr.mxu0 0.0
    %2619 = vmatpush1.xpose.msra.mxu0 0.0
    %2620 = vmatprep.subr.mxu0 0.0
    %2621 = vmatpush1.xpose.msra.mxu0 0.0
    %2622 = vmatprep.subr.mxu0 0.0
    %2623 = vmatpush1.xpose.msra.mxu0 0.0
    %2624 = vmatprep.subr.mxu0 0.0
    %2625 = vmatpush1.xpose.msra.mxu0 0.0
    %2626 = vmatprep.subr.mxu0 0.0
    %2627 = vmatpush1.xpose.msra.mxu0 0.0
    %2628 = vmatprep.subr.mxu0 0.0
    %2629 = vmatpush1.xpose.msra.mxu0 0.0
    %2630 = vmatprep.subr.mxu0 0.0
    %2631 = vmatpush1.xpose.msra.mxu0 0.0
    %2632 = vmatprep.mubr.f32.mxu0 0.0
    %2633 = vmatmul.mubr.f32.gmra.mrb[0].mxu0 %v2564
    %v2634 = vpop.f32.mrb[0].mxu0
    %v2635 = vadd.f32 0.0, %v2634
    %v2636 = vpop.f32.mrb[0].mxu0
    %2637 = vdwg.mxu0
    %2638 = vrot.lane.b32.xlu0 %v1790, 64
    %v2639 = vpop.permute.xlu0 %2638
    %2640 = vrot.lane.b32.xlu0 %v1792, 64
    %v2641 = vpop.permute.xlu0 %2640
    %v2642 = vsel %vm1869, %v2639, 0
    %v2644 = vsel %vm1869, %v2641, 0
    %2646 = vmatprep.subr.mxu0 0.0
    %2647 = vmatpush1.xpose.msra.mxu0 %v2644
    %2648 = vmatprep.subr.mxu0 0.0
    %2649 = vmatpush1.xpose.msra.mxu0 0.0
    %2650 = vmatprep.subr.mxu0 0.0
    %2651 = vmatpush1.xpose.msra.mxu0 0.0
    %2652 = vmatprep.subr.mxu0 0.0
    %2653 = vmatpush1.xpose.msra.mxu0 0.0
    %2654 = vmatprep.subr.mxu0 0.0
    %2655 = vmatpush1.xpose.msra.mxu0 0.0
    %2656 = vmatprep.subr.mxu0 0.0
    %2657 = vmatpush1.xpose.msra.mxu0 0.0
    %2658 = vmatprep.subr.mxu0 0.0
    %2659 = vmatpush1.xpose.msra.mxu0 0.0
    %2660 = vmatprep.subr.mxu0 0.0
    %2661 = vmatpush1.xpose.msra.mxu0 0.0
    %2662 = vmatprep.subr.mxu0 0.0
    %2663 = vmatpush1.xpose.msra.mxu0 0.0
    %2664 = vmatprep.subr.mxu0 0.0
    %2665 = vmatpush1.xpose.msra.mxu0 0.0
    %2666 = vmatprep.subr.mxu0 0.0
    %2667 = vmatpush1.xpose.msra.mxu0 0.0
    %2668 = vmatprep.subr.mxu0 0.0
    %2669 = vmatpush1.xpose.msra.mxu0 0.0
    %2670 = vmatprep.subr.mxu0 0.0
    %2671 = vmatpush1.xpose.msra.mxu0 0.0
    %2672 = vmatprep.subr.mxu0 0.0
    %2673 = vmatpush1.xpose.msra.mxu0 0.0
    %2674 = vmatprep.subr.mxu0 0.0
    %2675 = vmatpush1.xpose.msra.mxu0 0.0
    %2676 = vmatprep.subr.mxu0 0.0
    %2677 = vmatpush1.xpose.msra.mxu0 0.0
    %2678 = vmatprep.subr.mxu0 0.0
    %2679 = vmatpush1.xpose.msra.mxu0 0.0
    %2680 = vmatprep.subr.mxu0 0.0
    %2681 = vmatpush1.xpose.msra.mxu0 0.0
    %2682 = vmatprep.subr.mxu0 0.0
    %2683 = vmatpush1.xpose.msra.mxu0 0.0
    %2684 = vmatprep.subr.mxu0 0.0
    %2685 = vmatpush1.xpose.msra.mxu0 0.0
    %2686 = vmatprep.subr.mxu0 0.0
    %2687 = vmatpush1.xpose.msra.mxu0 0.0
    %2688 = vmatprep.subr.mxu0 0.0
    %2689 = vmatpush1.xpose.msra.mxu0 0.0
    %2690 = vmatprep.subr.mxu0 0.0
    %2691 = vmatpush1.xpose.msra.mxu0 0.0
    %2692 = vmatprep.subr.mxu0 0.0
    %2693 = vmatpush1.xpose.msra.mxu0 0.0
    %2694 = vmatprep.subr.mxu0 0.0
    %2695 = vmatpush1.xpose.msra.mxu0 0.0
    %2696 = vmatprep.subr.mxu0 0.0
    %2697 = vmatpush1.xpose.msra.mxu0 0.0
    %2698 = vmatprep.subr.mxu0 0.0
    %2699 = vmatpush1.xpose.msra.mxu0 0.0
    %2700 = vmatprep.subr.mxu0 0.0
    %2701 = vmatpush1.xpose.msra.mxu0 0.0
    %2702 = vmatprep.subr.mxu0 0.0
    %2703 = vmatpush1.xpose.msra.mxu0 0.0
    %2704 = vmatprep.subr.mxu0 0.0
    %2705 = vmatpush1.xpose.msra.mxu0 0.0
    %2706 = vmatprep.subr.mxu0 0.0
    %2707 = vmatpush1.xpose.msra.mxu0 0.0
    %2708 = vmatprep.subr.mxu0 0.0
    %2709 = vmatpush1.xpose.msra.mxu0 0.0
    %2710 = vmatprep.mubr.f32.mxu0 0.0
    %2711 = vmatmul.mubr.f32.gmra.mrb[0].mxu0 %v2642
    %v2712 = vpop.f32.mrb[0].mxu0
    %v2713 = vadd.f32 0.0, %v2712
    %v2714 = vpop.f32.mrb[0].mxu0
    %2715 = vdwg.mxu0
    %v2716 = vmul.f32 %v2635, 0.17677669
    %v2717 = vmul.f32 %v2713, 0.17677669
    %v2718 = vsel %vm2024, %v2716, -inf
    %2719 = vmax.xlane.f32.xlu0 %v2718
    %v2720 = vpop.xlane.xlu0 %2719
    %v2721 = vsel %vm2024, %v2717, -inf
    %2722 = vmax.xlane.f32.xlu0 %v2721
    %v2723 = vpop.xlane.xlu0 %2722
    %v2724 = vsub.f32 %v2716, %v2720
    %v2725 = vsub.f32 %v2717, %v2723
    %v2726 = vmul.f32 %v2724, 1.442695
    %v2727 = vpow.pop %v2726
    %v2728 = vmul.f32 %v2725, 1.442695
    %v2729 = vpow.pop %v2728
    %v2730 = vsel %vm2024, %v2727, 0.0
    %2731 = vadd.xlane.f32.xlu0 %v2730
    %v2732 = vpop.xlane.xlu0 %2731
    %v2733 = vsel %vm2024, %v2729, 0.0
    %2734 = vadd.xlane.f32.xlu0 %v2733
    %v2735 = vpop.xlane.xlu0 %2734
    %v2736 = vrcp.pop %v2732
    %v2737 = vrcp.pop %v2735
    %v2738 = vmul.f32 %v2727, %v2736
    %v2739 = vmul.f32 %v2729, %v2737
    %v2740 = vsel %vm2024, %v2738, 0.0
    %v2741 = vrot.slane %v2740, 4
    %v2742 = vadd.f32 %v2740, %v2741
    %v2743 = vrot.slane %v2742, 2
    %v2744 = vadd.f32 %v2742, %v2743
    %v2745 = vrot.slane %v2744, 1
    %v2746 = vadd.f32 %v2744, %v2745
    %v2747 = vsel %vm2024, %v2739, 0.0
    %v2748 = vrot.slane %v2747, 4
    %v2749 = vadd.f32 %v2747, %v2748
    %v2750 = vrot.slane %v2749, 2
    %v2751 = vadd.f32 %v2749, %v2750
    %v2752 = vrot.slane %v2751, 1
    %v2753 = vadd.f32 %v2751, %v2752
    %v2754 = vmul.f32 %v2746, %v2061
    %v2755 = vmul.f32 %v2753, %v2061
    %2756 = vrot.lane.b32.xlu0 %v1861, 64
    %v2757 = vpop.permute.xlu0 %2756
    %v2760 = vsel %vm2024, %v2754, 0
    %2762 = vmatprep.subr.mxu0 0.0
    %2763 = vmatpush1.msra.mxu0 %v2757
    %2764 = vmatprep.subr.mxu0 0.0
    %2765 = vmatpush1.msra.mxu0 0.0
    %2766 = vmatprep.subr.mxu0 0.0
    %2767 = vmatpush1.msra.mxu0 0.0
    %2768 = vmatprep.subr.mxu0 0.0
    %2769 = vmatpush1.msra.mxu0 0.0
    %2770 = vmatprep.subr.mxu0 0.0
    %2771 = vmatpush1.msra.mxu0 0.0
    %2772 = vmatprep.subr.mxu0 0.0
    %2773 = vmatpush1.msra.mxu0 0.0
    %2774 = vmatprep.subr.mxu0 0.0
    %2775 = vmatpush1.msra.mxu0 0.0
    %2776 = vmatprep.subr.mxu0 0.0
    %2777 = vmatpush1.msra.mxu0 0.0
    %2778 = vmatprep.subr.mxu0 0.0
    %2779 = vmatpush1.msra.mxu0 0.0
    %2780 = vmatprep.subr.mxu0 0.0
    %2781 = vmatpush1.msra.mxu0 0.0
    %2782 = vmatprep.subr.mxu0 0.0
    %2783 = vmatpush1.msra.mxu0 0.0
    %2784 = vmatprep.subr.mxu0 0.0
    %2785 = vmatpush1.msra.mxu0 0.0
    %2786 = vmatprep.subr.mxu0 0.0
    %2787 = vmatpush1.msra.mxu0 0.0
    %2788 = vmatprep.subr.mxu0 0.0
    %2789 = vmatpush1.msra.mxu0 0.0
    %2790 = vmatprep.subr.mxu0 0.0
    %2791 = vmatpush1.msra.mxu0 0.0
    %2792 = vmatprep.subr.mxu0 0.0
    %2793 = vmatpush1.msra.mxu0 0.0
    %2794 = vmatprep.subr.mxu0 0.0
    %2795 = vmatpush1.msra.mxu0 0.0
    %2796 = vmatprep.subr.mxu0 0.0
    %2797 = vmatpush1.msra.mxu0 0.0
    %2798 = vmatprep.subr.mxu0 0.0
    %2799 = vmatpush1.msra.mxu0 0.0
    %2800 = vmatprep.subr.mxu0 0.0
    %2801 = vmatpush1.msra.mxu0 0.0
    %2802 = vmatprep.subr.mxu0 0.0
    %2803 = vmatpush1.msra.mxu0 0.0
    %2804 = vmatprep.subr.mxu0 0.0
    %2805 = vmatpush1.msra.mxu0 0.0
    %2806 = vmatprep.subr.mxu0 0.0
    %2807 = vmatpush1.msra.mxu0 0.0
    %2808 = vmatprep.subr.mxu0 0.0
    %2809 = vmatpush1.msra.mxu0 0.0
    %2810 = vmatprep.subr.mxu0 0.0
    %2811 = vmatpush1.msra.mxu0 0.0
    %2812 = vmatprep.subr.mxu0 0.0
    %2813 = vmatpush1.msra.mxu0 0.0
    %2814 = vmatprep.subr.mxu0 0.0
    %2815 = vmatpush1.msra.mxu0 0.0
    %2816 = vmatprep.subr.mxu0 0.0
    %2817 = vmatpush1.msra.mxu0 0.0
    %2818 = vmatprep.subr.mxu0 0.0
    %2819 = vmatpush1.msra.mxu0 0.0
    %2820 = vmatprep.subr.mxu0 0.0
    %2821 = vmatpush1.msra.mxu0 0.0
    %2822 = vmatprep.subr.mxu0 0.0
    %2823 = vmatpush1.msra.mxu0 0.0
    %2824 = vmatprep.subr.mxu0 0.0
    %2825 = vmatpush1.msra.mxu0 0.0
    %2826 = vmatprep.mubr.f32.mxu0 0.0
    %2827 = vmatmul.mubr.f32.gmra.mrb[0].mxu0 %v2760
    %v2828 = vpop.f32.mrb[0].mxu0
    %v2829 = vadd.f32 0.0, %v2828
    %v2830 = vpop.f32.mrb[0].mxu0
    %2831 = vdwg.mxu0
    %2832 = vrot.lane.b32.xlu0 %v1866, 64
    %v2833 = vpop.permute.xlu0 %2832
    %v2836 = vsel %vm2024, %v2755, 0
    %2838 = vmatprep.subr.mxu0 0.0
    %2839 = vmatpush1.msra.mxu0 %v2833
    %2840 = vmatprep.subr.mxu0 0.0
    %2841 = vmatpush1.msra.mxu0 0.0
    %2842 = vmatprep.subr.mxu0 0.0
    %2843 = vmatpush1.msra.mxu0 0.0
    %2844 = vmatprep.subr.mxu0 0.0
    %2845 = vmatpush1.msra.mxu0 0.0
    %2846 = vmatprep.subr.mxu0 0.0
    %2847 = vmatpush1.msra.mxu0 0.0
    %2848 = vmatprep.subr.mxu0 0.0
    %2849 = vmatpush1.msra.mxu0 0.0
    %2850 = vmatprep.subr.mxu0 0.0
    %2851 = vmatpush1.msra.mxu0 0.0
    %2852 = vmatprep.subr.mxu0 0.0
    %2853 = vmatpush1.msra.mxu0 0.0
    %2854 = vmatprep.subr.mxu0 0.0
    %2855 = vmatpush1.msra.mxu0 0.0
    %2856 = vmatprep.subr.mxu0 0.0
    %2857 = vmatpush1.msra.mxu0 0.0
    %2858 = vmatprep.subr.mxu0 0.0
    %2859 = vmatpush1.msra.mxu0 0.0
    %2860 = vmatprep.subr.mxu0 0.0
    %2861 = vmatpush1.msra.mxu0 0.0
    %2862 = vmatprep.subr.mxu0 0.0
    %2863 = vmatpush1.msra.mxu0 0.0
    %2864 = vmatprep.subr.mxu0 0.0
    %2865 = vmatpush1.msra.mxu0 0.0
    %2866 = vmatprep.subr.mxu0 0.0
    %2867 = vmatpush1.msra.mxu0 0.0
    %2868 = vmatprep.subr.mxu0 0.0
    %2869 = vmatpush1.msra.mxu0 0.0
    %2870 = vmatprep.subr.mxu0 0.0
    %2871 = vmatpush1.msra.mxu0 0.0
    %2872 = vmatprep.subr.mxu0 0.0
    %2873 = vmatpush1.msra.mxu0 0.0
    %2874 = vmatprep.subr.mxu0 0.0
    %2875 = vmatpush1.msra.mxu0 0.0
    %2876 = vmatprep.subr.mxu0 0.0
    %2877 = vmatpush1.msra.mxu0 0.0
    %2878 = vmatprep.subr.mxu0 0.0
    %2879 = vmatpush1.msra.mxu0 0.0
    %2880 = vmatprep.subr.mxu0 0.0
    %2881 = vmatpush1.msra.mxu0 0.0
    %2882 = vmatprep.subr.mxu0 0.0
    %2883 = vmatpush1.msra.mxu0 0.0
    %2884 = vmatprep.subr.mxu0 0.0
    %2885 = vmatpush1.msra.mxu0 0.0
    %2886 = vmatprep.subr.mxu0 0.0
    %2887 = vmatpush1.msra.mxu0 0.0
    %2888 = vmatprep.subr.mxu0 0.0
    %2889 = vmatpush1.msra.mxu0 0.0
    %2890 = vmatprep.subr.mxu0 0.0
    %2891 = vmatpush1.msra.mxu0 0.0
    %2892 = vmatprep.subr.mxu0 0.0
    %2893 = vmatpush1.msra.mxu0 0.0
    %2894 = vmatprep.subr.mxu0 0.0
    %2895 = vmatpush1.msra.mxu0 0.0
    %2896 = vmatprep.subr.mxu0 0.0
    %2897 = vmatpush1.msra.mxu0 0.0
    %2898 = vmatprep.subr.mxu0 0.0
    %2899 = vmatpush1.msra.mxu0 0.0
    %2900 = vmatprep.subr.mxu0 0.0
    %2901 = vmatpush1.msra.mxu0 0.0
    %2902 = vmatprep.mubr.f32.mxu0 0.0
    %2903 = vmatmul.mubr.f32.gmra.mrb[0].mxu0 %v2836
    %v2904 = vpop.f32.mrb[0].mxu0
    %v2905 = vadd.f32 0.0, %v2904
    %v2906 = vpop.f32.mrb[0].mxu0
    %2907 = vdwg.mxu0
    %2908 = vrot.lane.b32.xlu0 %v1784, 32
    %v2909 = vpop.permute.xlu0 %2908
    %2910 = vrot.lane.b32.xlu0 %v1786, 32
    %v2911 = vpop.permute.xlu0 %2910
    %v2912 = vsel %vm1869, %v2909, 0
    %v2914 = vsel %vm1869, %v2911, 0
    %2916 = vmatprep.subr.mxu0 0.0
    %2917 = vmatpush1.xpose.msra.mxu0 %v2914
    %2918 = vmatprep.subr.mxu0 0.0
    %2919 = vmatpush1.xpose.msra.mxu0 0.0
    %2920 = vmatprep.subr.mxu0 0.0
    %2921 = vmatpush1.xpose.msra.mxu0 0.0
    %2922 = vmatprep.subr.mxu0 0.0
    %2923 = vmatpush1.xpose.msra.mxu0 0.0
    %2924 = vmatprep.subr.mxu0 0.0
    %2925 = vmatpush1.xpose.msra.mxu0 0.0
    %2926 = vmatprep.subr.mxu0 0.0
    %2927 = vmatpush1.xpose.msra.mxu0 0.0
    %2928 = vmatprep.subr.mxu0 0.0
    %2929 = vmatpush1.xpose.msra.mxu0 0.0
    %2930 = vmatprep.subr.mxu0 0.0
    %2931 = vmatpush1.xpose.msra.mxu0 0.0
    %2932 = vmatprep.subr.mxu0 0.0
    %2933 = vmatpush1.xpose.msra.mxu0 0.0
    %2934 = vmatprep.subr.mxu0 0.0
    %2935 = vmatpush1.xpose.msra.mxu0 0.0
    %2936 = vmatprep.subr.mxu0 0.0
    %2937 = vmatpush1.xpose.msra.mxu0 0.0
    %2938 = vmatprep.subr.mxu0 0.0
    %2939 = vmatpush1.xpose.msra.mxu0 0.0
    %2940 = vmatprep.subr.mxu0 0.0
    %2941 = vmatpush1.xpose.msra.mxu0 0.0
    %2942 = vmatprep.subr.mxu0 0.0
    %2943 = vmatpush1.xpose.msra.mxu0 0.0
    %2944 = vmatprep.subr.mxu0 0.0
    %2945 = vmatpush1.xpose.msra.mxu0 0.0
    %2946 = vmatprep.subr.mxu0 0.0
    %2947 = vmatpush1.xpose.msra.mxu0 0.0
    %2948 = vmatprep.subr.mxu0 0.0
    %2949 = vmatpush1.xpose.msra.mxu0 0.0
    %2950 = vmatprep.subr.mxu0 0.0
    %2951 = vmatpush1.xpose.msra.mxu0 0.0
    %2952 = vmatprep.subr.mxu0 0.0
    %2953 = vmatpush1.xpose.msra.mxu0 0.0
    %2954 = vmatprep.subr.mxu0 0.0
    %2955 = vmatpush1.xpose.msra.mxu0 0.0
    %2956 = vmatprep.subr.mxu0 0.0
    %2957 = vmatpush1.xpose.msra.mxu0 0.0
    %2958 = vmatprep.subr.mxu0 0.0
    %2959 = vmatpush1.xpose.msra.mxu0 0.0
    %2960 = vmatprep.subr.mxu0 0.0
    %2961 = vmatpush1.xpose.msra.mxu0 0.0
    %2962 = vmatprep.subr.mxu0 0.0
    %2963 = vmatpush1.xpose.msra.mxu0 0.0
    %2964 = vmatprep.subr.mxu0 0.0
    %2965 = vmatpush1.xpose.msra.mxu0 0.0
    %2966 = vmatprep.subr.mxu0 0.0
    %2967 = vmatpush1.xpose.msra.mxu0 0.0
    %2968 = vmatprep.subr.mxu0 0.0
    %2969 = vmatpush1.xpose.msra.mxu0 0.0
    %2970 = vmatprep.subr.mxu0 0.0
    %2971 = vmatpush1.xpose.msra.mxu0 0.0
    %2972 = vmatprep.subr.mxu0 0.0
    %2973 = vmatpush1.xpose.msra.mxu0 0.0
    %2974 = vmatprep.subr.mxu0 0.0
    %2975 = vmatpush1.xpose.msra.mxu0 0.0
    %2976 = vmatprep.subr.mxu0 0.0
    %2977 = vmatpush1.xpose.msra.mxu0 0.0
    %2978 = vmatprep.subr.mxu0 0.0
    %2979 = vmatpush1.xpose.msra.mxu0 0.0
    %2980 = vmatprep.mubr.f32.mxu0 0.0
    %2981 = vmatmul.mubr.f32.gmra.mrb[0].mxu0 %v2912
    %v2982 = vpop.f32.mrb[0].mxu0
    %v2983 = vadd.f32 0.0, %v2982
    %v2984 = vpop.f32.mrb[0].mxu0
    %2985 = vdwg.mxu0
    %2986 = vrot.lane.b32.xlu0 %v1790, 32
    %v2987 = vpop.permute.xlu0 %2986
    %2988 = vrot.lane.b32.xlu0 %v1792, 32
    %v2989 = vpop.permute.xlu0 %2988
    %v2990 = vsel %vm1869, %v2987, 0
    %v2992 = vsel %vm1869, %v2989, 0
    %2994 = vmatprep.subr.mxu0 0.0
    %2995 = vmatpush1.xpose.msra.mxu0 %v2992
    %2996 = vmatprep.subr.mxu0 0.0
    %2997 = vmatpush1.xpose.msra.mxu0 0.0
    %2998 = vmatprep.subr.mxu0 0.0
    %2999 = vmatpush1.xpose.msra.mxu0 0.0
    %3000 = vmatprep.subr.mxu0 0.0
    %3001 = vmatpush1.xpose.msra.mxu0 0.0
    %3002 = vmatprep.subr.mxu0 0.0
    %3003 = vmatpush1.xpose.msra.mxu0 0.0
    %3004 = vmatprep.subr.mxu0 0.0
    %3005 = vmatpush1.xpose.msra.mxu0 0.0
    %3006 = vmatprep.subr.mxu0 0.0
    %3007 = vmatpush1.xpose.msra.mxu0 0.0
    %3008 = vmatprep.subr.mxu0 0.0
    %3009 = vmatpush1.xpose.msra.mxu0 0.0
    %3010 = vmatprep.subr.mxu0 0.0
    %3011 = vmatpush1.xpose.msra.mxu0 0.0
    %3012 = vmatprep.subr.mxu0 0.0
    %3013 = vmatpush1.xpose.msra.mxu0 0.0
    %3014 = vmatprep.subr.mxu0 0.0
    %3015 = vmatpush1.xpose.msra.mxu0 0.0
    %3016 = vmatprep.subr.mxu0 0.0
    %3017 = vmatpush1.xpose.msra.mxu0 0.0
    %3018 = vmatprep.subr.mxu0 0.0
    %3019 = vmatpush1.xpose.msra.mxu0 0.0
    %3020 = vmatprep.subr.mxu0 0.0
    %3021 = vmatpush1.xpose.msra.mxu0 0.0
    %3022 = vmatprep.subr.mxu0 0.0
    %3023 = vmatpush1.xpose.msra.mxu0 0.0
    %3024 = vmatprep.subr.mxu0 0.0
    %3025 = vmatpush1.xpose.msra.mxu0 0.0
    %3026 = vmatprep.subr.mxu0 0.0
    %3027 = vmatpush1.xpose.msra.mxu0 0.0
    %3028 = vmatprep.subr.mxu0 0.0
    %3029 = vmatpush1.xpose.msra.mxu0 0.0
    %3030 = vmatprep.subr.mxu0 0.0
    %3031 = vmatpush1.xpose.msra.mxu0 0.0
    %3032 = vmatprep.subr.mxu0 0.0
    %3033 = vmatpush1.xpose.msra.mxu0 0.0
    %3034 = vmatprep.subr.mxu0 0.0
    %3035 = vmatpush1.xpose.msra.mxu0 0.0
    %3036 = vmatprep.subr.mxu0 0.0
    %3037 = vmatpush1.xpose.msra.mxu0 0.0
    %3038 = vmatprep.subr.mxu0 0.0
    %3039 = vmatpush1.xpose.msra.mxu0 0.0
    %3040 = vmatprep.subr.mxu0 0.0
    %3041 = vmatpush1.xpose.msra.mxu0 0.0
    %3042 = vmatprep.subr.mxu0 0.0
    %3043 = vmatpush1.xpose.msra.mxu0 0.0
    %3044 = vmatprep.subr.mxu0 0.0
    %3045 = vmatpush1.xpose.msra.mxu0 0.0
    %3046 = vmatprep.subr.mxu0 0.0
    %3047 = vmatpush1.xpose.msra.mxu0 0.0
    %3048 = vmatprep.subr.mxu0 0.0
    %3049 = vmatpush1.xpose.msra.mxu0 0.0
    %3050 = vmatprep.subr.mxu0 0.0
    %3051 = vmatpush1.xpose.msra.mxu0 0.0
    %3052 = vmatprep.subr.mxu0 0.0
    %3053 = vmatpush1.xpose.msra.mxu0 0.0
    %3054 = vmatprep.subr.mxu0 0.0
    %3055 = vmatpush1.xpose.msra.mxu0 0.0
    %3056 = vmatprep.subr.mxu0 0.0
    %3057 = vmatpush1.xpose.msra.mxu0 0.0
    %3058 = vmatprep.mubr.f32.mxu0 0.0
    %3059 = vmatmul.mubr.f32.gmra.mrb[0].mxu0 %v2990
    %v3060 = vpop.f32.mrb[0].mxu0
    %v3061 = vadd.f32 0.0, %v3060
    %v3062 = vpop.f32.mrb[0].mxu0
    %3063 = vdwg.mxu0
    %v3064 = vmul.f32 %v2983, 0.17677669
    %v3065 = vmul.f32 %v3061, 0.17677669
    %v3066 = vsel %vm2024, %v3064, -inf
    %3067 = vmax.xlane.f32.xlu0 %v3066
    %v3068 = vpop.xlane.xlu0 %3067
    %v3069 = vsel %vm2024, %v3065, -inf
    %3070 = vmax.xlane.f32.xlu0 %v3069
    %v3071 = vpop.xlane.xlu0 %3070
    %v3072 = vsub.f32 %v3064, %v3068
    %v3073 = vsub.f32 %v3065, %v3071
    %v3074 = vmul.f32 %v3072, 1.442695
    %v3075 = vpow.pop %v3074
    %v3076 = vmul.f32 %v3073, 1.442695
    %v3077 = vpow.pop %v3076
    %v3078 = vsel %vm2024, %v3075, 0.0
    %3079 = vadd.xlane.f32.xlu0 %v3078
    %v3080 = vpop.xlane.xlu0 %3079
    %v3081 = vsel %vm2024, %v3077, 0.0
    %3082 = vadd.xlane.f32.xlu0 %v3081
    %v3083 = vpop.xlane.xlu0 %3082
    %v3084 = vrcp.pop %v3080
    %v3085 = vrcp.pop %v3083
    %v3086 = vmul.f32 %v3075, %v3084
    %v3087 = vmul.f32 %v3077, %v3085
    %v3088 = vsel %vm2024, %v3086, 0.0
    %v3089 = vrot.slane %v3088, 4
    %v3090 = vadd.f32 %v3088, %v3089
    %v3091 = vrot.slane %v3090, 2
    %v3092 = vadd.f32 %v3090, %v3091
    %v3093 = vrot.slane %v3092, 1
    %v3094 = vadd.f32 %v3092, %v3093
    %v3095 = vsel %vm2024, %v3087, 0.0
    %v3096 = vrot.slane %v3095, 4
    %v3097 = vadd.f32 %v3095, %v3096
    %v3098 = vrot.slane %v3097, 2
    %v3099 = vadd.f32 %v3097, %v3098
    %v3100 = vrot.slane %v3099, 1
    %v3101 = vadd.f32 %v3099, %v3100
    %v3102 = vmul.f32 %v3094, %v2061
    %v3103 = vmul.f32 %v3101, %v2061
    %3104 = vrot.lane.b32.xlu0 %v1861, 32
    %v3105 = vpop.permute.xlu0 %3104
    %v3108 = vsel %vm2024, %v3102, 0
    %3110 = vmatprep.subr.mxu0 0.0
    %3111 = vmatpush1.msra.mxu0 %v3105
    %3112 = vmatprep.subr.mxu0 0.0
    %3113 = vmatpush1.msra.mxu0 0.0
    %3114 = vmatprep.subr.mxu0 0.0
    %3115 = vmatpush1.msra.mxu0 0.0
    %3116 = vmatprep.subr.mxu0 0.0
    %3117 = vmatpush1.msra.mxu0 0.0
    %3118 = vmatprep.subr.mxu0 0.0
    %3119 = vmatpush1.msra.mxu0 0.0
    %3120 = vmatprep.subr.mxu0 0.0
    %3121 = vmatpush1.msra.mxu0 0.0
    %3122 = vmatprep.subr.mxu0 0.0
    %3123 = vmatpush1.msra.mxu0 0.0
    %3124 = vmatprep.subr.mxu0 0.0
    %3125 = vmatpush1.msra.mxu0 0.0
    %3126 = vmatprep.subr.mxu0 0.0
    %3127 = vmatpush1.msra.mxu0 0.0
    %3128 = vmatprep.subr.mxu0 0.0
    %3129 = vmatpush1.msra.mxu0 0.0
    %3130 = vmatprep.subr.mxu0 0.0
    %3131 = vmatpush1.msra.mxu0 0.0
    %3132 = vmatprep.subr.mxu0 0.0
    %3133 = vmatpush1.msra.mxu0 0.0
    %3134 = vmatprep.subr.mxu0 0.0
    %3135 = vmatpush1.msra.mxu0 0.0
    %3136 = vmatprep.subr.mxu0 0.0
    %3137 = vmatpush1.msra.mxu0 0.0
    %3138 = vmatprep.subr.mxu0 0.0
    %3139 = vmatpush1.msra.mxu0 0.0
    %3140 = vmatprep.subr.mxu0 0.0
    %3141 = vmatpush1.msra.mxu0 0.0
    %3142 = vmatprep.subr.mxu0 0.0
    %3143 = vmatpush1.msra.mxu0 0.0
    %3144 = vmatprep.subr.mxu0 0.0
    %3145 = vmatpush1.msra.mxu0 0.0
    %3146 = vmatprep.subr.mxu0 0.0
    %3147 = vmatpush1.msra.mxu0 0.0
    %3148 = vmatprep.subr.mxu0 0.0
    %3149 = vmatpush1.msra.mxu0 0.0
    %3150 = vmatprep.subr.mxu0 0.0
    %3151 = vmatpush1.msra.mxu0 0.0
    %3152 = vmatprep.subr.mxu0 0.0
    %3153 = vmatpush1.msra.mxu0 0.0
    %3154 = vmatprep.subr.mxu0 0.0
    %3155 = vmatpush1.msra.mxu0 0.0
    %3156 = vmatprep.subr.mxu0 0.0
    %3157 = vmatpush1.msra.mxu0 0.0
    %3158 = vmatprep.subr.mxu0 0.0
    %3159 = vmatpush1.msra.mxu0 0.0
    %3160 = vmatprep.subr.mxu0 0.0
    %3161 = vmatpush1.msra.mxu0 0.0
    %3162 = vmatprep.subr.mxu0 0.0
    %3163 = vmatpush1.msra.mxu0 0.0
    %3164 = vmatprep.subr.mxu0 0.0
    %3165 = vmatpush1.msra.mxu0 0.0
    %3166 = vmatprep.subr.mxu0 0.0
    %3167 = vmatpush1.msra.mxu0 0.0
    %3168 = vmatprep.subr.mxu0 0.0
    %3169 = vmatpush1.msra.mxu0 0.0
    %3170 = vmatprep.subr.mxu0 0.0
    %3171 = vmatpush1.msra.mxu0 0.0
    %3172 = vmatprep.subr.mxu0 0.0
    %3173 = vmatpush1.msra.mxu0 0.0
    %3174 = vmatprep.mubr.f32.mxu0 0.0
    %3175 = vmatmul.mubr.f32.gmra.mrb[0].mxu0 %v3108
    %v3176 = vpop.f32.mrb[0].mxu0
    %v3177 = vadd.f32 0.0, %v3176
    %v3178 = vpop.f32.mrb[0].mxu0
    %3179 = vdwg.mxu0
    %3180 = vrot.lane.b32.xlu0 %v1866, 32
    %v3181 = vpop.permute.xlu0 %3180
    %v3184 = vsel %vm2024, %v3103, 0
    %3186 = vmatprep.subr.mxu0 0.0
    %3187 = vmatpush1.msra.mxu0 %v3181
    %3188 = vmatprep.subr.mxu0 0.0
    %3189 = vmatpush1.msra.mxu0 0.0
    %3190 = vmatprep.subr.mxu0 0.0
    %3191 = vmatpush1.msra.mxu0 0.0
    %3192 = vmatprep.subr.mxu0 0.0
    %3193 = vmatpush1.msra.mxu0 0.0
    %3194 = vmatprep.subr.mxu0 0.0
    %3195 = vmatpush1.msra.mxu0 0.0
    %3196 = vmatprep.subr.mxu0 0.0
    %3197 = vmatpush1.msra.mxu0 0.0
    %3198 = vmatprep.subr.mxu0 0.0
    %3199 = vmatpush1.msra.mxu0 0.0
    %3200 = vmatprep.subr.mxu0 0.0
    %3201 = vmatpush1.msra.mxu0 0.0
    %3202 = vmatprep.subr.mxu0 0.0
    %3203 = vmatpush1.msra.mxu0 0.0
    %3204 = vmatprep.subr.mxu0 0.0
    %3205 = vmatpush1.msra.mxu0 0.0
    %3206 = vmatprep.subr.mxu0 0.0
    %3207 = vmatpush1.msra.mxu0 0.0
    %3208 = vmatprep.subr.mxu0 0.0
    %3209 = vmatpush1.msra.mxu0 0.0
    %3210 = vmatprep.subr.mxu0 0.0
    %3211 = vmatpush1.msra.mxu0 0.0
    %3212 = vmatprep.subr.mxu0 0.0
    %3213 = vmatpush1.msra.mxu0 0.0
    %3214 = vmatprep.subr.mxu0 0.0
    %3215 = vmatpush1.msra.mxu0 0.0
    %3216 = vmatprep.subr.mxu0 0.0
    %3217 = vmatpush1.msra.mxu0 0.0
    %3218 = vmatprep.subr.mxu0 0.0
    %3219 = vmatpush1.msra.mxu0 0.0
    %3220 = vmatprep.subr.mxu0 0.0
    %3221 = vmatpush1.msra.mxu0 0.0
    %3222 = vmatprep.subr.mxu0 0.0
    %3223 = vmatpush1.msra.mxu0 0.0
    %3224 = vmatprep.subr.mxu0 0.0
    %3225 = vmatpush1.msra.mxu0 0.0
    %3226 = vmatprep.subr.mxu0 0.0
    %3227 = vmatpush1.msra.mxu0 0.0
    %3228 = vmatprep.subr.mxu0 0.0
    %3229 = vmatpush1.msra.mxu0 0.0
    %3230 = vmatprep.subr.mxu0 0.0
    %3231 = vmatpush1.msra.mxu0 0.0
    %3232 = vmatprep.subr.mxu0 0.0
    %3233 = vmatpush1.msra.mxu0 0.0
    %3234 = vmatprep.subr.mxu0 0.0
    %3235 = vmatpush1.msra.mxu0 0.0
    %3236 = vmatprep.subr.mxu0 0.0
    %3237 = vmatpush1.msra.mxu0 0.0
    %3238 = vmatprep.subr.mxu0 0.0
    %3239 = vmatpush1.msra.mxu0 0.0
    %3240 = vmatprep.subr.mxu0 0.0
    %3241 = vmatpush1.msra.mxu0 0.0
    %3242 = vmatprep.subr.mxu0 0.0
    %3243 = vmatpush1.msra.mxu0 0.0
    %3244 = vmatprep.subr.mxu0 0.0
    %3245 = vmatpush1.msra.mxu0 0.0
    %3246 = vmatprep.subr.mxu0 0.0
    %3247 = vmatpush1.msra.mxu0 0.0
    %3248 = vmatprep.subr.mxu0 0.0
    %3249 = vmatpush1.msra.mxu0 0.0
    %3250 = vmatprep.mubr.f32.mxu0 0.0
    %3251 = vmatmul.mubr.f32.gmra.mrb[0].mxu0 %v3184
    %v3252 = vpop.f32.mrb[0].mxu0
    %v3253 = vadd.f32 0.0, %v3252
    %v3254 = vpop.f32.mrb[0].mxu0
    %3255 = vdwg.mxu0
    %v3258 = vrot.slane %v2207, 7
    %vm3259 = vcmask 1041409
    %v3260 = vsel %vm3259, %v3258, %v2134
    %v3264 = vrot.slane %v2557, 7
    %v3265 = vsel %vm3259, %v3264, %v2480
    %3266 = vrot.lane.b32.xlu0 %v3265, 32
    %v3267 = vpop.permute.xlu0 %3266
    %v3271 = vrot.slane %v2905, 7
    %v3272 = vsel %vm3259, %v3271, %v2829
    %3273 = vrot.lane.b32.xlu0 %v3272, 64
    %v3274 = vpop.permute.xlu0 %3273
    %v3278 = vrot.slane %v3253, 7
    %v3279 = vsel %vm3259, %v3278, %v3177
    %3280 = vrot.lane.b32.xlu0 %v3279, 96
    %v3281 = vpop.permute.xlu0 %3280
    %v3283 = vsel %vm1869, %v3260, %v3267
    %vm3284 = vcmask 523264
    %v3285 = vsel %vm3284, %v3283, %v3274
    %vm3286 = vcmask 785408
    %v3287 = vsel %vm3286, %v3285, %v3281
    %v3288 = vld [vmem:[#allocation17] sm:$0xff]
    %v3289 = vld [vmem:[#allocation17 + $0x8] sm:$0xff]
    %v3290 = vld [vmem:[#allocation17 + $0x10] sm:$0xff]
    %v3291 = vld [vmem:[#allocation17 + $0x18] sm:$0xff]
    %v3292 = vld [vmem:[#allocation17 + $0x20] sm:$0xff]
    %v3293 = vld [vmem:[#allocation17 + $0x28] sm:$0xff]
    %v3294 = vld [vmem:[#allocation17 + $0x30] sm:$0xff]
    %v3295 = vld [vmem:[#allocation17 + $0x38] sm:$0xff]
    %v3296 = vld [vmem:[#allocation17 + $0x40] sm:$0xff]
    %v3297 = vld [vmem:[#allocation17 + $0x48] sm:$0xff]
    %v3298 = vld [vmem:[#allocation17 + $0x50] sm:$0xff]
    %v3299 = vld [vmem:[#allocation17 + $0x58] sm:$0xff]
    %v3300 = vld [vmem:[#allocation17 + $0x60] sm:$0xff]
    %v3301 = vld [vmem:[#allocation17 + $0x68] sm:$0xff]
    %v3302 = vld [vmem:[#allocation17 + $0x70] sm:$0xff]
    %v3303 = vld [vmem:[#allocation17 + $0x78] sm:$0xff]
    %v3304 = vld [vmem:[%s12] sm:$0x1]
    %v3306 = vlaneseq
    %v3307 = vshrl.u32 %v3306, 7
    %v3308 = vsub.s32 0, %v3307
    %v3309 = vrot.slane %v3304, %v3308
    %3311 = vmatprep.subr.mxu0 0.0
    %3312 = vmatpush1.msra.mxu0 %v3288
    %3313 = vmatprep.subr.mxu0 0.0
    %3314 = vmatpush1.msra.mxu0 %v3289
    %3315 = vmatprep.subr.mxu0 0.0
    %3316 = vmatpush1.msra.mxu0 %v3290
    %3317 = vmatprep.subr.mxu0 0.0
    %3318 = vmatpush1.msra.mxu0 %v3291
    %3319 = vmatprep.subr.mxu0 0.0
    %3320 = vmatpush1.msra.mxu0 %v3292
    %3321 = vmatprep.subr.mxu0 0.0
    %3322 = vmatpush1.msra.mxu0 %v3293
    %3323 = vmatprep.subr.mxu0 0.0
    %3324 = vmatpush1.msra.mxu0 %v3294
    %3325 = vmatprep.subr.mxu0 0.0
    %3326 = vmatpush1.msra.mxu0 %v3295
    %3327 = vmatprep.subr.mxu0 0.0
    %3328 = vmatpush1.msra.mxu0 %v3296
    %3329 = vmatprep.subr.mxu0 0.0
    %3330 = vmatpush1.msra.mxu0 %v3297
    %3331 = vmatprep.subr.mxu0 0.0
    %3332 = vmatpush1.msra.mxu0 %v3298
    %3333 = vmatprep.subr.mxu0 0.0
    %3334 = vmatpush1.msra.mxu0 %v3299
    %3335 = vmatprep.subr.mxu0 0.0
    %3336 = vmatpush1.msra.mxu0 %v3300
    %3337 = vmatprep.subr.mxu0 0.0
    %3338 = vmatpush1.msra.mxu0 %v3301
    %3339 = vmatprep.subr.mxu0 0.0
    %3340 = vmatpush1.msra.mxu0 %v3302
    %3341 = vmatprep.subr.mxu0 0.0
    %3342 = vmatpush1.msra.mxu0 %v3303
    %3343 = vmatprep.subr.mxu0 0.0
    %3344 = vmatpush1.msra.mxu0 0.0
    %3345 = vmatprep.subr.mxu0 0.0
    %3346 = vmatpush1.msra.mxu0 0.0
    %3347 = vmatprep.subr.mxu0 0.0
    %3348 = vmatpush1.msra.mxu0 0.0
    %3349 = vmatprep.subr.mxu0 0.0
    %3350 = vmatpush1.msra.mxu0 0.0
    %3351 = vmatprep.subr.mxu0 0.0
    %3352 = vmatpush1.msra.mxu0 0.0
    %3353 = vmatprep.subr.mxu0 0.0
    %3354 = vmatpush1.msra.mxu0 0.0
    %3355 = vmatprep.subr.mxu0 0.0
    %3356 = vmatpush1.msra.mxu0 0.0
    %3357 = vmatprep.subr.mxu0 0.0
    %3358 = vmatpush1.msra.mxu0 0.0
    %3359 = vmatprep.subr.mxu0 0.0
    %3360 = vmatpush1.msra.mxu0 0.0
    %3361 = vmatprep.subr.mxu0 0.0
    %3362 = vmatpush1.msra.mxu0 0.0
    %3363 = vmatprep.subr.mxu0 0.0
    %3364 = vmatpush1.msra.mxu0 0.0
    %3365 = vmatprep.subr.mxu0 0.0
    %3366 = vmatpush1.msra.mxu0 0.0
    %3367 = vmatprep.subr.mxu0 0.0
    %3368 = vmatpush1.msra.mxu0 0.0
    %3369 = vmatprep.subr.mxu0 0.0
    %3370 = vmatpush1.msra.mxu0 0.0
    %3371 = vmatprep.subr.mxu0 0.0
    %3372 = vmatpush1.msra.mxu0 0.0
    %3373 = vmatprep.subr.mxu0 0.0
    %3374 = vmatpush1.msra.mxu0 0.0
    %3375 = vmatprep.mubr.f32.mxu0 0.0
    %3376 = vmatmul.mubr.f32.gmra.mrb[0].mxu0 %v3287
    %v3377 = vpop.f32.mrb[0].mxu0
    %v3378 = vadd.f32 %v3309, %v3377
    %v3379 = vpop.f32.mrb[0].mxu0
    %3380 = vdwg.mxu0
    %vm3381 = vcmask 1041408
    %v3382 = vsel %vm3381, %v3378, 0.0
    %3383 = vadd.xlane.f32.xlu0 %v3382
    %v3384 = vpop.xlane.xlu0 %3383
    %v3385 = vrcp.pop 128.0
    %v3386 = vmul.f32 %v3384, %v3385
    %v3387 = vsub.f32 %v3378, %v3386
    %v3388 = vmul.f32 %v3387, %v3387
    %v3389 = vsel %vm3381, %v3388, 0.0
    %3390 = vadd.xlane.f32.xlu0 %v3389
    %v3391 = vpop.xlane.xlu0 %3390
    %v3392 = vmul.f32 %v3391, %v3385
    %v3393 = vadd.f32 %v3392, 1e-05
    %v3394 = vrsqrt.pop %v3393
    %v3395 = vmul.f32 %v3387, %v3394
    %v3396 = vld [vmem:[%s13] sm:$0x1]
    %v3398 = vlaneseq
    %v3399 = vshrl.u32 %v3398, 7
    %v3400 = vsub.s32 0, %v3399
    %v3401 = vrot.slane %v3396, %v3400
    %v3403 = vmul.f32 %v3395, %v3401
    %v3404 = vld [vmem:[%s14] sm:$0x1]
    %v3406 = vlaneseq
    %v3407 = vshrl.u32 %v3406, 7
    %v3408 = vsub.s32 0, %v3407
    %v3409 = vrot.slane %v3404, %v3408
    %v3411 = vadd.f32 %v3403, %v3409
    %3412 = vst [vmem:[#allocation18] sm:$0x3] %v3411
    // Predicated region
    $region104: #{tpu_custom_call.1} parent=1 // pred_check
      _
    $region105: #{tpu_custom_call.1} parent=1 // pred_check_branch
      %3414 = sbr.rel (0) target = $region107
    $region106: #{tpu_custom_call.1} parent=1 // pred_region
      %s3416 = ssub.s32 32, 32
      %3417 = vsyncadd [#allocation8], %s3416
      %s3419 = sshll.u32 [#allocation18], 4
      %s3420 = int_to_ptr.vmem [resolvable:$true] %s3419
      %3422 = dma.vmem_to_hbm [thread:$0]  %s3420, 32, %s15, [#allocation8]
    $region107: #{tpu_custom_call.1} parent=1 // pred_fallthru
      _
    // Predicated region
    $region108: #{tpu_custom_call.1} parent=1 // pred_check
      _
    $region109: #{tpu_custom_call.1} parent=1 // pred_check_branch
      %3424 = sbr.rel (0) target = $region111
    $region110: #{tpu_custom_call.1} parent=1 // pred_region
      %3425 = dma.done [#allocation8], 32
    $region111: #{tpu_custom_call.1} parent=1 // pred_fallthru
      _
    %3426 = vsyncpa [#allocation7], 1
    %3427 = vsyncpa [#allocation10], 1
    %3428 = vsyncpa [#allocation13], 1
    %3429 = vsyncpa [#allocation16], 1
    %3430 = vsyncpa [#allocation8], 1

</llo_original>
